<compile_context>
chip_gen: v5e
topology: v5e:2x2
jax: 0.10.0
libtpu: 0.0.40
codegen_flags: <defaults>
</compile_context>

<pallas_src>
import functools
import numpy as np
import jax
import jax.numpy as jnp
from jax.experimental import pallas as pl
from jax.experimental.pallas import tpu as pltpu

# ---------------- model hyper-params (consistent with the module) -----------
HIDDEN = 32        # encoder_hidden_dims
LATENT = 16        # latent_size
CLASSES = 10
DOMAIN_DIMS = 1
IMG = 28           # input_dims = 784 = 28*28 (conv stack needs 28->14->7->4->1)
INPUT_DIMS = IMG * IMG
BN_EPS = 1e-5
BN_SCALE = float(1.0 / np.sqrt(1.0 + BN_EPS))   # fresh BN running stats, eval

_VMEM = pl.BlockSpec(memory_space=pltpu.MemorySpace.VMEM)
M_TILE_THRESHOLD = 2048       # single whole-array block below this many rows
M_TILE = 256                  # v7x-friendly (64 MiB VMEM) row tile for big batches


# ---------------------------- Pallas kernels --------------------------------
def _mm_bias_act_kernel(x_ref, w_ref, b_ref, o_ref, *, act):
    # bf16 (or f32) operands into the MXU, f32 accumulation + f32 epilogue.
    z = jnp.dot(x_ref[...], w_ref[...], preferred_element_type=jnp.float32)
    z = z + b_ref[...]
    if act == "relu":
        z = jnp.maximum(z, 0.0)
    elif act == "leaky0.2":
        z = jnp.where(z >= 0.0, z, 0.2 * z)
    o_ref[...] = z.astype(o_ref.dtype)


def _stn_mlp_kernel(x_ref, w1_ref, b1_ref, w2_ref, b2_ref, w3_ref, b3_ref, o_ref):
    # Fused STN head: (B,785)@(785,32) -> leaky -> @(32,32) -> leaky -> @(32,3)
    h = jnp.dot(x_ref[...], w1_ref[...], preferred_element_type=jnp.float32) + b1_ref[...]
    h = jnp.where(h >= 0.0, h, 0.2 * h)
    h = jnp.dot(h, w2_ref[...], preferred_element_type=jnp.float32) + b2_ref[...]
    h = jnp.where(h >= 0.0, h, 0.2 * h)
    o_ref[...] = jnp.dot(h, w3_ref[...], preferred_element_type=jnp.float32) + b3_ref[...]


def _fc_head_kernel(f_ref, w1_ref, b1_ref, w2_ref, b2_ref, w3_ref, b3_ref, o_ref):
    # Fused fc_pred + log_softmax: (B,16)->relu(32)->relu(32)->(10)->log_softmax
    h = jnp.dot(f_ref[...], w1_ref[...], preferred_element_type=jnp.float32) + b1_ref[...]
    h = jnp.maximum(h, 0.0)
    h = jnp.dot(h, w2_ref[...], preferred_element_type=jnp.float32) + b2_ref[...]
    h = jnp.maximum(h, 0.0)
    y = jnp.dot(h, w3_ref[...], preferred_element_type=jnp.float32) + b3_ref[...]
    m = jnp.max(y, axis=-1, keepdims=True)
    s = y - m
    lse = jnp.log(jnp.sum(jnp.exp(s), axis=-1, keepdims=True))
    o_ref[...] = s - lse


# ---------------------------- Pallas wrappers --------------------------------
def matmul_bias_act(x, w, b, act="linear", out_dtype=jnp.float32,
                    matmul_dtype=jnp.bfloat16):
    """out = act(x @ w + b). Whole-array VMEM blocks, no pad/slice round-trips."""
    M, K = x.shape
    _, N = w.shape
    x = x.astype(matmul_dtype)
    w = w.astype(matmul_dtype)
    b2d = b.astype(jnp.float32).reshape(1, N)
    kern = functools.partial(_mm_bias_act_kernel, act=act)
    in_bytes = (M * K + K * N) * jnp.dtype(matmul_dtype).itemsize + N * 4
    out_bytes = M * N * jnp.dtype(out_dtype).itemsize
    cost = pl.CostEstimate(flops=2 * M * K * N, transcendentals=0,
                           bytes_accessed=int(in_bytes + out_bytes))

    if M <= M_TILE_THRESHOLD:
        # Small-M path (this demo): one whole-array block, everything VMEM resident.
        return pl.pallas_call(
            kern,
            out_shape=jax.ShapeDtypeStruct((M, N), out_dtype),
            in_specs=[_VMEM, _VMEM, _VMEM],
            out_specs=_VMEM,
            cost_estimate=cost,
        )(x, w, b2d)

    # Large-batch path: tile M (rows are independent), shard across cores.
    grid = (pl.cdiv(M, M_TILE),)
    return pl.pallas_call(
        kern,
        out_shape=jax.ShapeDtypeStruct((M, N), out_dtype),
        grid=grid,
        in_specs=[pl.BlockSpec((M_TILE, K), lambda i: (i, 0)),
                  pl.BlockSpec((K, N), lambda i: (0, 0)),
                  pl.BlockSpec((1, N), lambda i: (0, 0))],
        out_specs=pl.BlockSpec((M_TILE, N), lambda i: (i, 0)),
        compiler_params=pltpu.CompilerParams(dimension_semantics=("parallel",)),
        cost_estimate=cost,
    )(x, w, b2d)


def stn_mlp(inp, p):
    """Fused STN spatial-transformation MLP -> A_vec (B, 3)."""
    B = inp.shape[0]
    args = (inp.astype(jnp.float32),
            p["stn_w1"], p["stn_b1"].reshape(1, -1),
            p["stn_w2"] * BN_SCALE, (p["stn_b2"] * BN_SCALE).reshape(1, -1),
            p["stn_w3"], p["stn_b3"].reshape(1, -1))
    flops = 2 * B * ((DOMAIN_DIMS + INPUT_DIMS) * HIDDEN + HIDDEN * HIDDEN + HIDDEN * 3)
    bytes_acc = sum(int(np.prod(a.shape)) for a in args) * 4 + B * 3 * 4
    return pl.pallas_call(
        _stn_mlp_kernel,
        out_shape=jax.ShapeDtypeStruct((B, 3), jnp.float32),
        in_specs=[_VMEM] * 7,
        out_specs=_VMEM,
        cost_estimate=pl.CostEstimate(flops=int(flops), transcendentals=0,
                                      bytes_accessed=int(bytes_acc)),
    )(*args)


def fc_pred_head(f, p):
    """Fused fc_pred (1x1 convs on 1x1 spatial == linear) + log_softmax -> (B, C)."""
    B = f.shape[0]
    args = (f.astype(jnp.float32),
            p["pw1"] * BN_SCALE, (p["pb1"] * BN_SCALE).reshape(1, -1),
            p["pw2"] * BN_SCALE, (p["pb2"] * BN_SCALE).reshape(1, -1),
            p["pw3"], p["pb3"].reshape(1, -1))
    flops = 2 * B * (LATENT * HIDDEN + HIDDEN * HIDDEN + HIDDEN * CLASSES)
    bytes_acc = sum(int(np.prod(a.shape)) for a in args) * 4 + B * CLASSES * 4
    return pl.pallas_call(
        _fc_head_kernel,
        out_shape=jax.ShapeDtypeStruct((B, CLASSES), jnp.float32),
        in_specs=[_VMEM] * 7,
        out_specs=_VMEM,
        cost_estimate=pl.CostEstimate(flops=int(flops),
                                      transcendentals=int(B * CLASSES),
                                      bytes_accessed=int(bytes_acc)),
    )(*args)


# ------------------------------ JAX glue -------------------------------------
def im2col_nhwc(x, kh, kw, stride, pad):
    """x: (B, H, W, C) -> (B*OH*OW, kh*kw*C) rows (NHWC, no transposes)."""
    B, H, W, C = x.shape
    xp = jnp.pad(x, ((0, 0), (pad, pad), (pad, pad), (0, 0)))
    Hp, Wp = H + 2 * pad, W + 2 * pad
    OH = (Hp - kh) // stride + 1
    OW = (Wp - kw) // stride + 1
    cols = []
    for i in range(kh):
        for j in range(kw):
            cols.append(xp[:,
                           i:i + stride * (OH - 1) + 1:stride,
                           j:j + stride * (OW - 1) + 1:stride, :])
    patches = jnp.stack(cols, axis=3)                 # (B, OH, OW, kh*kw, C)
    patches = patches.reshape(B * OH * OW, kh * kw * C)
    return patches, OH, OW


def conv2d_act(x_nhwc, w, b, stride, pad, bn, act, out_dtype=jnp.bfloat16):
    """PyTorch-style Conv2d (+ folded eval BatchNorm2d) + act, NHWC, Pallas matmul."""
    B = x_nhwc.shape[0]
    Cout, Cin, kh, kw = w.shape
    patches, OH, OW = im2col_nhwc(x_nhwc, kh, kw, stride, pad)
    # column order (i, j, ci) must match im2col_nhwc's (kh, kw, C) packing
    wmat = w.transpose(2, 3, 1, 0).reshape(kh * kw * Cin, Cout)
    bias = b
    if bn:
        wmat = wmat * BN_SCALE
        bias = bias * BN_SCALE
    out = matmul_bias_act(patches, wmat, bias, act=act, out_dtype=out_dtype)
    return out.reshape(B, OH, OW, Cout)               # NHWC, feeds next im2col directly


def affine_grid(theta, size):
    """F.affine_grid(theta, size, align_corners=False)."""
    B, C, H, W = size
    xs = (2.0 * jnp.arange(W, dtype=jnp.float32) + 1.0) / W - 1.0
    ys = (2.0 * jnp.arange(H, dtype=jnp.float32) + 1.0) / H - 1.0
    xg, yg = jnp.meshgrid(xs, ys)                     # (H, W) each
    base = jnp.stack([xg, yg, jnp.ones_like(xg)], axis=-1)   # (H, W, 3)
    return jnp.einsum("hwk,bjk->bhwj", base, theta)   # (B, H, W, 2) = (x, y)


def grid_sample(x, grid):
    """F.grid_sample(x, grid, bilinear, padding_mode='zeros', align_corners=False)."""
    B, C, H, W = x.shape
    gx, gy = grid[..., 0], grid[..., 1]
    ix = ((gx + 1.0) * W - 1.0) / 2.0
    iy = ((gy + 1.0) * H - 1.0) / 2.0
    ix0 = jnp.floor(ix)
    iy0 = jnp.floor(iy)
    wx1 = ix - ix0
    wx0 = 1.0 - wx1
    wy1 = iy - iy0
    wy0 = 1.0 - wy1
    x_flat = x.reshape(B, C, H * W)

    def corner(iy_, ix_, w_):
        valid = ((ix_ >= 0) & (ix_ <= W - 1) &
                 (iy_ >= 0) & (iy_ <= H - 1)).astype(x.dtype)
        ii = jnp.clip(ix_, 0, W - 1).astype(jnp.int32)
        jj = jnp.clip(iy_, 0, H - 1).astype(jnp.int32)
        idx = (jj * W + ii).reshape(B, 1, -1)
        v = jnp.take_along_axis(
            x_flat, jnp.broadcast_to(idx, (B, C, idx.shape[-1])), axis=2)
        v = v.reshape(B, C, *ix_.shape[1:])
        return v * (valid * w_)[:, None]

    return (corner(iy0, ix0, wy0 * wx0) + corner(iy0, ix0 + 1.0, wy0 * wx1) +
            corner(iy0 + 1.0, ix0, wy1 * wx0) + corner(iy0 + 1.0, ix0 + 1.0, wy1 * wx1))


# --------------------------- forward pass ------------------------------------
def conv_pcida_forward(p, x, domain):
    """ConvPCIDAClassifier.forward(x, domain) -> (y_pred, encoded, pred_labels)."""
    B = x.shape[0]

    # ---------------- EncoderSTN.spatial_transformation (1 fused kernel) -----
    x_flat = x.reshape(B, INPUT_DIMS)
    inp = jnp.concatenate([domain, x_flat], axis=1)          # (B, 1+784)
    A_vec = stn_mlp(inp, p)                                  # (B, 3)

    # convert_Avec_to_A: symmetric 2x2; torch.symeig -> jnp.linalg.eigh (glue)
    a, bb, c = A_vec[:, 0], A_vec[:, 1], A_vec[:, 2]
    A = jnp.stack([jnp.stack([a, bb], -1), jnp.stack([bb, c], -1)], axis=1)
    _, evs = jnp.linalg.eigh(A)          # ascending eigenvalues, columns = eigvecs
    tcos = evs[:, 0, 0]
    tsin = evs[:, 1, 0]
    zeros = jnp.zeros_like(tcos)
    theta = jnp.stack([jnp.stack([tcos, tsin, zeros], -1),
                       jnp.stack([-tsin, tcos, zeros], -1)], axis=1)   # (B,2,3)
    grid = affine_grid(theta, x.shape)
    transformed = grid_sample(x, grid)                       # (B,1,28,28) NCHW

    # ---------------- EncoderSTN.conv (NHWC, bf16 MXU operands) --------------
    t = transformed.transpose(0, 2, 3, 1)                    # (B,28,28,1)
    h1 = conv2d_act(t,  p["cw1"], p["cb1"], 2, 1, True,  "relu", jnp.bfloat16)
    h2 = conv2d_act(h1, p["cw2"], p["cb2"], 2, 1, True,  "relu", jnp.bfloat16)
    h3 = conv2d_act(h2, p["cw3"], p["cb3"], 2, 1, True,  "relu", jnp.bfloat16)
    h4 = conv2d_act(h3, p["cw4"], p["cb4"], 1, 0, False, "relu", jnp.float32)
    # h4: (B, 1, 1, LATENT)

    # ---------------- EncoderSTN.fc_pred + log_softmax (1 fused kernel) ------
    f = h4.reshape(B, LATENT)
    y_pred = fc_pred_head(f, p)                              # (B, CLASSES)

    encoded = jnp.transpose(h4, (0, 3, 1, 2))                # (B, LATENT, 1, 1), NCHW
    pred_labels = jnp.argmax(y_pred, axis=1)
    return y_pred, encoded, pred_labels


# --------------------------- parameter init ----------------------------------
def init_params(key):
    ks = jax.random.split(key, 10)

    def lin(k, fin, fout):
        k1, k2 = jax.random.split(k)
        bd = 1.0 / np.sqrt(fin)
        return (jax.random.uniform(k1, (fin, fout), jnp.float32, -bd, bd),
                jax.random.uniform(k2, (fout,), jnp.float32, -bd, bd))

    def conv(k, cout, cin, kh, kw):
        k1, k2 = jax.random.split(k)
        bd = 1.0 / np.sqrt(cin * kh * kw)
        return (jax.random.uniform(k1, (cout, cin, kh, kw), jnp.float32, -bd, bd),
                jax.random.uniform(k2, (cout,), jnp.float32, -bd, bd))

    p = {}
    p["stn_w1"], p["stn_b1"] = lin(ks[0], DOMAIN_DIMS + INPUT_DIMS, HIDDEN)
    p["stn_w2"], p["stn_b2"] = lin(ks[1], HIDDEN, HIDDEN)
    p["stn_w3"], p["stn_b3"] = lin(ks[2], HIDDEN, 3)
    p["cw1"], p["cb1"] = conv(ks[3], HIDDEN, 1, 3, 3)
    p["cw2"], p["cb2"] = conv(ks[4], HIDDEN, HIDDEN, 3, 3)
    p["cw3"], p["cb3"] = conv(ks[5], HIDDEN, HIDDEN, 3, 3)
    p["cw4"], p["cb4"] = conv(ks[6], LATENT, HIDDEN, 4, 4)
    w, b = conv(ks[7], HIDDEN, LATENT, 1, 1)
    p["pw1"], p["pb1"] = w.reshape(HIDDEN, LATENT).T, b
    w, b = conv(ks[8], HIDDEN, HIDDEN, 1, 1)
    p["pw2"], p["pb2"] = w.reshape(HIDDEN, HIDDEN).T, b
    p["pw3"], p["pb3"] = lin(ks[9], HIDDEN, CLASSES)
    return p


# ------------------------------- main -----------------------------------------
if __name__ == "__main__":
    key = jax.random.PRNGKey(0)
    kp, kx, kd = jax.random.split(key, 3)
    params = init_params(kp)

    B = 4
    x = jax.random.normal(kx, (B, 1, IMG, IMG), jnp.float32)       # NCHW, like PyTorch
    domain = jax.random.uniform(kd, (B, DOMAIN_DIMS), jnp.float32)

    forward = jax.jit(conv_pcida_forward)
    y_pred, encoded, pred_labels = forward(params, x, domain)
    jax.block_until_ready((y_pred, encoded, pred_labels))

    assert y_pred.shape == (B, CLASSES)
    assert encoded.shape == (B, LATENT, 1, 1)
    assert pred_labels.shape == (B,)
    assert bool(jnp.all(jnp.isfinite(y_pred)))
    # log_softmax rows must sum (in prob space) to 1
    assert bool(jnp.allclose(jnp.exp(y_pred).sum(axis=1), 1.0, atol=1e-4))
    print("KERNEL_OK")
</pallas_src>

<mosaic_0001>
module attributes {stable_mosaic.version = 11 : i64} {
  func.func @_stn_mlp_kernel(%arg0: memref<4x785xf32, #tpu.memory_space<vmem>>, %arg1: memref<785x32xf32, #tpu.memory_space<vmem>>, %arg2: memref<1x32xf32, #tpu.memory_space<vmem>>, %arg3: memref<32x32xf32, #tpu.memory_space<vmem>>, %arg4: memref<1x32xf32, #tpu.memory_space<vmem>>, %arg5: memref<32x3xf32, #tpu.memory_space<vmem>>, %arg6: memref<1x3xf32, #tpu.memory_space<vmem>>, %arg7: memref<4x3xf32, #tpu.memory_space<vmem>>) attributes {dimension_semantics = [], scalar_prefetch = 0 : i64, scratch_operands = 0 : i64, tpu.core_type = #tpu.core_type<tc>} {
    %c0 = arith.constant 0 : index
    %c0_0 = arith.constant 0 : index
    %0 = vector.load %arg0[%c0, %c0_0] : memref<4x785xf32, #tpu.memory_space<vmem>>, vector<4x785xf32>
    %c0_1 = arith.constant 0 : index
    %c0_2 = arith.constant 0 : index
    %1 = vector.load %arg1[%c0_1, %c0_2] : memref<785x32xf32, #tpu.memory_space<vmem>>, vector<785x32xf32>
    %cst = arith.constant dense<0.000000e+00> : vector<4x32xf32>
    %2 = tpu.matmul %0, %1, %cst {dimension_numbers = #tpu.dot_dimension_numbers<[1], [0], [0], [1], [0, 0, 1, 1], [], []>} : vector<4x785xf32>, vector<785x32xf32>, vector<4x32xf32> -> vector<4x32xf32>
    %c0_3 = arith.constant 0 : index
    %c0_4 = arith.constant 0 : index
    %3 = vector.load %arg2[%c0_3, %c0_4] : memref<1x32xf32, #tpu.memory_space<vmem>>, vector<1x32xf32>
    %4 = vector.broadcast %3 : vector<1x32xf32> to vector<4x32xf32>
    %5 = arith.addf %2, %4 : vector<4x32xf32>
    %cst_5 = arith.constant 0.000000e+00 : f32
    %6 = vector.broadcast %cst_5 : f32 to vector<4x32xf32>
    %7 = arith.cmpf oge, %5, %6 : vector<4x32xf32>
    %cst_6 = arith.constant 2.000000e-01 : f32
    %8 = vector.broadcast %cst_6 : f32 to vector<4x32xf32>
    %9 = arith.mulf %8, %5 : vector<4x32xf32>
    %10 = arith.select %7, %5, %9 : vector<4x32xi1>, vector<4x32xf32>
    %c0_7 = arith.constant 0 : index
    %c0_8 = arith.constant 0 : index
    %11 = vector.load %arg3[%c0_7, %c0_8] : memref<32x32xf32, #tpu.memory_space<vmem>>, vector<32x32xf32>
    %cst_9 = arith.constant dense<0.000000e+00> : vector<4x32xf32>
    %12 = tpu.matmul %10, %11, %cst_9 {dimension_numbers = #tpu.dot_dimension_numbers<[1], [0], [0], [1], [0, 0, 1, 1], [], []>} : vector<4x32xf32>, vector<32x32xf32>, vector<4x32xf32> -> vector<4x32xf32>
    %c0_10 = arith.constant 0 : index
    %c0_11 = arith.constant 0 : index
    %13 = vector.load %arg4[%c0_10, %c0_11] : memref<1x32xf32, #tpu.memory_space<vmem>>, vector<1x32xf32>
    %14 = vector.broadcast %13 : vector<1x32xf32> to vector<4x32xf32>
    %15 = arith.addf %12, %14 : vector<4x32xf32>
    %cst_12 = arith.constant 0.000000e+00 : f32
    %16 = vector.broadcast %cst_12 : f32 to vector<4x32xf32>
    %17 = arith.cmpf oge, %15, %16 : vector<4x32xf32>
    %cst_13 = arith.constant 2.000000e-01 : f32
    %18 = vector.broadcast %cst_13 : f32 to vector<4x32xf32>
    %19 = arith.mulf %18, %15 : vector<4x32xf32>
    %20 = arith.select %17, %15, %19 : vector<4x32xi1>, vector<4x32xf32>
    %c0_14 = arith.constant 0 : index
    %c0_15 = arith.constant 0 : index
    %21 = vector.load %arg5[%c0_14, %c0_15] : memref<32x3xf32, #tpu.memory_space<vmem>>, vector<32x3xf32>
    %cst_16 = arith.constant dense<0.000000e+00> : vector<4x3xf32>
    %22 = tpu.matmul %20, %21, %cst_16 {dimension_numbers = #tpu.dot_dimension_numbers<[1], [0], [0], [1], [0, 0, 1, 1], [], []>} : vector<4x32xf32>, vector<32x3xf32>, vector<4x3xf32> -> vector<4x3xf32>
    %c0_17 = arith.constant 0 : index
    %c0_18 = arith.constant 0 : index
    %23 = vector.load %arg6[%c0_17, %c0_18] : memref<1x3xf32, #tpu.memory_space<vmem>>, vector<1x3xf32>
    %24 = vector.broadcast %23 : vector<1x3xf32> to vector<4x3xf32>
    %25 = arith.addf %22, %24 : vector<4x3xf32>
    %c0_19 = arith.constant 0 : index
    %c0_20 = arith.constant 0 : index
    %26 = vector.load %arg7[%c0_19, %c0_20] : memref<4x3xf32, #tpu.memory_space<vmem>>, vector<4x3xf32>
    tpu.vector_store %arg7[%c0_19, %c0_20], %25 {strides = array<i32>} : memref<4x3xf32, #tpu.memory_space<vmem>>, vector<4x3xf32>,
    return
  }
}

module attributes {stable_mosaic.version = 11 : i64} {
  func.func @_mm_bias_act_kernel(%arg0: memref<784x9xbf16, #tpu.memory_space<vmem>>, %arg1: memref<9x32xbf16, #tpu.memory_space<vmem>>, %arg2: memref<1x32xf32, #tpu.memory_space<vmem>>, %arg3: memref<784x32xbf16, #tpu.memory_space<vmem>>) attributes {dimension_semantics = [], scalar_prefetch = 0 : i64, scratch_operands = 0 : i64, tpu.core_type = #tpu.core_type<tc>} {
    %c0 = arith.constant 0 : index
    %c0_0 = arith.constant 0 : index
    %0 = vector.load %arg0[%c0, %c0_0] : memref<784x9xbf16, #tpu.memory_space<vmem>>, vector<784x9xbf16>
    %c0_1 = arith.constant 0 : index
    %c0_2 = arith.constant 0 : index
    %1 = vector.load %arg1[%c0_1, %c0_2] : memref<9x32xbf16, #tpu.memory_space<vmem>>, vector<9x32xbf16>
    %cst = arith.constant dense<0.000000e+00> : vector<784x32xf32>
    %2 = tpu.matmul %0, %1, %cst {dimension_numbers = #tpu.dot_dimension_numbers<[1], [0], [0], [1], [0, 0, 1, 1], [], []>} : vector<784x9xbf16>, vector<9x32xbf16>, vector<784x32xf32> -> vector<784x32xf32>
    %c0_3 = arith.constant 0 : index
    %c0_4 = arith.constant 0 : index
    %3 = vector.load %arg2[%c0_3, %c0_4] : memref<1x32xf32, #tpu.memory_space<vmem>>, vector<1x32xf32>
    %4 = vector.broadcast %3 : vector<1x32xf32> to vector<784x32xf32>
    %5 = arith.addf %2, %4 : vector<784x32xf32>
    %cst_5 = arith.constant 0.000000e+00 : f32
    %6 = vector.broadcast %cst_5 : f32 to vector<784x32xf32>
    %7 = arith.maximumf %5, %6 : vector<784x32xf32>
    %8 = arith.truncf %7 : vector<784x32xf32> to vector<784x32xbf16>
    %c0_6 = arith.constant 0 : index
    %c0_7 = arith.constant 0 : index
    %9 = vector.load %arg3[%c0_6, %c0_7] : memref<784x32xbf16, #tpu.memory_space<vmem>>, vector<784x32xbf16>
    tpu.vector_store %arg3[%c0_6, %c0_7], %8 {strides = array<i32>} : memref<784x32xbf16, #tpu.memory_space<vmem>>, vector<784x32xbf16>,
    return
  }
}

module attributes {stable_mosaic.version = 11 : i64} {
  func.func @_mm_bias_act_kernel(%arg0: memref<196x288xbf16, #tpu.memory_space<vmem>>, %arg1: memref<288x32xbf16, #tpu.memory_space<vmem>>, %arg2: memref<1x32xf32, #tpu.memory_space<vmem>>, %arg3: memref<196x32xbf16, #tpu.memory_space<vmem>>) attributes {dimension_semantics = [], scalar_prefetch = 0 : i64, scratch_operands = 0 : i64, tpu.core_type = #tpu.core_type<tc>} {
    %c0 = arith.constant 0 : index
    %c0_0 = arith.constant 0 : index
    %0 = vector.load %arg0[%c0, %c0_0] : memref<196x288xbf16, #tpu.memory_space<vmem>>, vector<196x288xbf16>
    %c0_1 = arith.constant 0 : index
    %c0_2 = arith.constant 0 : index
    %1 = vector.load %arg1[%c0_1, %c0_2] : memref<288x32xbf16, #tpu.memory_space<vmem>>, vector<288x32xbf16>
    %cst = arith.constant dense<0.000000e+00> : vector<196x32xf32>
    %2 = tpu.matmul %0, %1, %cst {dimension_numbers = #tpu.dot_dimension_numbers<[1], [0], [0], [1], [0, 0, 1, 1], [], []>} : vector<196x288xbf16>, vector<288x32xbf16>, vector<196x32xf32> -> vector<196x32xf32>
    %c0_3 = arith.constant 0 : index
    %c0_4 = arith.constant 0 : index
    %3 = vector.load %arg2[%c0_3, %c0_4] : memref<1x32xf32, #tpu.memory_space<vmem>>, vector<1x32xf32>
    %4 = vector.broadcast %3 : vector<1x32xf32> to vector<196x32xf32>
    %5 = arith.addf %2, %4 : vector<196x32xf32>
    %cst_5 = arith.constant 0.000000e+00 : f32
    %6 = vector.broadcast %cst_5 : f32 to vector<196x32xf32>
    %7 = arith.maximumf %5, %6 : vector<196x32xf32>
    %8 = arith.truncf %7 : vector<196x32xf32> to vector<196x32xbf16>
    %c0_6 = arith.constant 0 : index
    %c0_7 = arith.constant 0 : index
    %9 = vector.load %arg3[%c0_6, %c0_7] : memref<196x32xbf16, #tpu.memory_space<vmem>>, vector<196x32xbf16>
    tpu.vector_store %arg3[%c0_6, %c0_7], %8 {strides = array<i32>} : memref<196x32xbf16, #tpu.memory_space<vmem>>, vector<196x32xbf16>,
    return
  }
}

module attributes {stable_mosaic.version = 11 : i64} {
  func.func @_mm_bias_act_kernel(%arg0: memref<64x288xbf16, #tpu.memory_space<vmem>>, %arg1: memref<288x32xbf16, #tpu.memory_space<vmem>>, %arg2: memref<1x32xf32, #tpu.memory_space<vmem>>, %arg3: memref<64x32xbf16, #tpu.memory_space<vmem>>) attributes {dimension_semantics = [], scalar_prefetch = 0 : i64, scratch_operands = 0 : i64, tpu.core_type = #tpu.core_type<tc>} {
    %c0 = arith.constant 0 : index
    %c0_0 = arith.constant 0 : index
    %0 = vector.load %arg0[%c0, %c0_0] : memref<64x288xbf16, #tpu.memory_space<vmem>>, vector<64x288xbf16>
    %c0_1 = arith.constant 0 : index
    %c0_2 = arith.constant 0 : index
    %1 = vector.load %arg1[%c0_1, %c0_2] : memref<288x32xbf16, #tpu.memory_space<vmem>>, vector<288x32xbf16>
    %cst = arith.constant dense<0.000000e+00> : vector<64x32xf32>
    %2 = tpu.matmul %0, %1, %cst {dimension_numbers = #tpu.dot_dimension_numbers<[1], [0], [0], [1], [0, 0, 1, 1], [], []>} : vector<64x288xbf16>, vector<288x32xbf16>, vector<64x32xf32> -> vector<64x32xf32>
    %c0_3 = arith.constant 0 : index
    %c0_4 = arith.constant 0 : index
    %3 = vector.load %arg2[%c0_3, %c0_4] : memref<1x32xf32, #tpu.memory_space<vmem>>, vector<1x32xf32>
    %4 = vector.broadcast %3 : vector<1x32xf32> to vector<64x32xf32>
    %5 = arith.addf %2, %4 : vector<64x32xf32>
    %cst_5 = arith.constant 0.000000e+00 : f32
    %6 = vector.broadcast %cst_5 : f32 to vector<64x32xf32>
    %7 = arith.maximumf %5, %6 : vector<64x32xf32>
    %8 = arith.truncf %7 : vector<64x32xf32> to vector<64x32xbf16>
    %c0_6 = arith.constant 0 : index
    %c0_7 = arith.constant 0 : index
    %9 = vector.load %arg3[%c0_6, %c0_7] : memref<64x32xbf16, #tpu.memory_space<vmem>>, vector<64x32xbf16>
    tpu.vector_store %arg3[%c0_6, %c0_7], %8 {strides = array<i32>} : memref<64x32xbf16, #tpu.memory_space<vmem>>, vector<64x32xbf16>,
    return
  }
}

module attributes {stable_mosaic.version = 11 : i64} {
  func.func @_mm_bias_act_kernel(%arg0: memref<4x512xbf16, #tpu.memory_space<vmem>>, %arg1: memref<512x16xbf16, #tpu.memory_space<vmem>>, %arg2: memref<1x16xf32, #tpu.memory_space<vmem>>, %arg3: memref<4x16xf32, #tpu.memory_space<vmem>>) attributes {dimension_semantics = [], scalar_prefetch = 0 : i64, scratch_operands = 0 : i64, tpu.core_type = #tpu.core_type<tc>} {
    %c0 = arith.constant 0 : index
    %c0_0 = arith.constant 0 : index
    %0 = vector.load %arg0[%c0, %c0_0] : memref<4x512xbf16, #tpu.memory_space<vmem>>, vector<4x512xbf16>
    %c0_1 = arith.constant 0 : index
    %c0_2 = arith.constant 0 : index
    %1 = vector.load %arg1[%c0_1, %c0_2] : memref<512x16xbf16, #tpu.memory_space<vmem>>, vector<512x16xbf16>
    %cst = arith.constant dense<0.000000e+00> : vector<4x16xf32>
    %2 = tpu.matmul %0, %1, %cst {dimension_numbers = #tpu.dot_dimension_numbers<[1], [0], [0], [1], [0, 0, 1, 1], [], []>} : vector<4x512xbf16>, vector<512x16xbf16>, vector<4x16xf32> -> vector<4x16xf32>
    %c0_3 = arith.constant 0 : index
    %c0_4 = arith.constant 0 : index
    %3 = vector.load %arg2[%c0_3, %c0_4] : memref<1x16xf32, #tpu.memory_space<vmem>>, vector<1x16xf32>
    %4 = vector.broadcast %3 : vector<1x16xf32> to vector<4x16xf32>
    %5 = arith.addf %2, %4 : vector<4x16xf32>
    %cst_5 = arith.constant 0.000000e+00 : f32
    %6 = vector.broadcast %cst_5 : f32 to vector<4x16xf32>
    %7 = arith.maximumf %5, %6 : vector<4x16xf32>
    %c0_6 = arith.constant 0 : index
    %c0_7 = arith.constant 0 : index
    %8 = vector.load %arg3[%c0_6, %c0_7] : memref<4x16xf32, #tpu.memory_space<vmem>>, vector<4x16xf32>
    tpu.vector_store %arg3[%c0_6, %c0_7], %7 {strides = array<i32>} : memref<4x16xf32, #tpu.memory_space<vmem>>, vector<4x16xf32>,
    return
  }
}

module attributes {stable_mosaic.version = 11 : i64} {
  func.func @_fc_head_kernel(%arg0: memref<4x16xf32, #tpu.memory_space<vmem>>, %arg1: memref<16x32xf32, #tpu.memory_space<vmem>>, %arg2: memref<1x32xf32, #tpu.memory_space<vmem>>, %arg3: memref<32x32xf32, #tpu.memory_space<vmem>>, %arg4: memref<1x32xf32, #tpu.memory_space<vmem>>, %arg5: memref<32x10xf32, #tpu.memory_space<vmem>>, %arg6: memref<1x10xf32, #tpu.memory_space<vmem>>, %arg7: memref<4x10xf32, #tpu.memory_space<vmem>>) attributes {dimension_semantics = [], scalar_prefetch = 0 : i64, scratch_operands = 0 : i64, tpu.core_type = #tpu.core_type<tc>} {
    %c0 = arith.constant 0 : index
    %c0_0 = arith.constant 0 : index
    %0 = vector.load %arg0[%c0, %c0_0] : memref<4x16xf32, #tpu.memory_space<vmem>>, vector<4x16xf32>
    %c0_1 = arith.constant 0 : index
    %c0_2 = arith.constant 0 : index
    %1 = vector.load %arg1[%c0_1, %c0_2] : memref<16x32xf32, #tpu.memory_space<vmem>>, vector<16x32xf32>
    %cst = arith.constant dense<0.000000e+00> : vector<4x32xf32>
    %2 = tpu.matmul %0, %1, %cst {dimension_numbers = #tpu.dot_dimension_numbers<[1], [0], [0], [1], [0, 0, 1, 1], [], []>} : vector<4x16xf32>, vector<16x32xf32>, vector<4x32xf32> -> vector<4x32xf32>
    %c0_3 = arith.constant 0 : index
    %c0_4 = arith.constant 0 : index
    %3 = vector.load %arg2[%c0_3, %c0_4] : memref<1x32xf32, #tpu.memory_space<vmem>>, vector<1x32xf32>
    %4 = vector.broadcast %3 : vector<1x32xf32> to vector<4x32xf32>
    %5 = arith.addf %2, %4 : vector<4x32xf32>
    %cst_5 = arith.constant 0.000000e+00 : f32
    %6 = vector.broadcast %cst_5 : f32 to vector<4x32xf32>
    %7 = arith.maximumf %5, %6 : vector<4x32xf32>
    %c0_6 = arith.constant 0 : index
    %c0_7 = arith.constant 0 : index
    %8 = vector.load %arg3[%c0_6, %c0_7] : memref<32x32xf32, #tpu.memory_space<vmem>>, vector<32x32xf32>
    %cst_8 = arith.constant dense<0.000000e+00> : vector<4x32xf32>
    %9 = tpu.matmul %7, %8, %cst_8 {dimension_numbers = #tpu.dot_dimension_numbers<[1], [0], [0], [1], [0, 0, 1, 1], [], []>} : vector<4x32xf32>, vector<32x32xf32>, vector<4x32xf32> -> vector<4x32xf32>
    %c0_9 = arith.constant 0 : index
    %c0_10 = arith.constant 0 : index
    %10 = vector.load %arg4[%c0_9, %c0_10] : memref<1x32xf32, #tpu.memory_space<vmem>>, vector<1x32xf32>
    %11 = vector.broadcast %10 : vector<1x32xf32> to vector<4x32xf32>
    %12 = arith.addf %9, %11 : vector<4x32xf32>
    %cst_11 = arith.constant 0.000000e+00 : f32
    %13 = vector.broadcast %cst_11 : f32 to vector<4x32xf32>
    %14 = arith.maximumf %12, %13 : vector<4x32xf32>
    %c0_12 = arith.constant 0 : index
    %c0_13 = arith.constant 0 : index
    %15 = vector.load %arg5[%c0_12, %c0_13] : memref<32x10xf32, #tpu.memory_space<vmem>>, vector<32x10xf32>
    %cst_14 = arith.constant dense<0.000000e+00> : vector<4x10xf32>
    %16 = tpu.matmul %14, %15, %cst_14 {dimension_numbers = #tpu.dot_dimension_numbers<[1], [0], [0], [1], [0, 0, 1, 1], [], []>} : vector<4x32xf32>, vector<32x10xf32>, vector<4x10xf32> -> vector<4x10xf32>
    %c0_15 = arith.constant 0 : index
    %c0_16 = arith.constant 0 : index
    %17 = vector.load %arg6[%c0_15, %c0_16] : memref<1x10xf32, #tpu.memory_space<vmem>>, vector<1x10xf32>
    %18 = vector.broadcast %17 : vector<1x10xf32> to vector<4x10xf32>
    %19 = arith.addf %16, %18 : vector<4x10xf32>
    %cst_17 = arith.constant dense<0xFF800000> : vector<4xf32>
    %20 = vector.multi_reduction <maximumf>, %19, %cst_17 [1] : vector<4x10xf32> to vector<4xf32>
    %21 = vector.shape_cast %20 : vector<4xf32> to vector<4x1xf32>
    %22 = vector.broadcast %21 : vector<4x1xf32> to vector<4x10xf32>
    %23 = arith.subf %19, %22 : vector<4x10xf32>
    %24 = math.exp %23 : vector<4x10xf32>
    %cst_18 = arith.constant dense<0.000000e+00> : vector<4xf32>
    %25 = vector.multi_reduction <add>, %24, %cst_18 [1] : vector<4x10xf32> to vector<4xf32>
    %26 = vector.shape_cast %25 : vector<4xf32> to vector<4x1xf32>
    %27 = math.log %26 : vector<4x1xf32>
    %28 = vector.broadcast %27 : vector<4x1xf32> to vector<4x10xf32>
    %29 = arith.subf %23, %28 : vector<4x10xf32>
    %c0_19 = arith.constant 0 : index
    %c0_20 = arith.constant 0 : index
    %30 = vector.load %arg7[%c0_19, %c0_20] : memref<4x10xf32, #tpu.memory_space<vmem>>, vector<4x10xf32>
    tpu.vector_store %arg7[%c0_19, %c0_20], %29 {strides = array<i32>} : memref<4x10xf32, #tpu.memory_space<vmem>>, vector<4x10xf32>,
    return
  }
}

</mosaic_0001>

<llo_original>
// kernel: conv_pcida_forward.6
$region0: #{conv_pcida_forward.6}
  #allocation0 [shape = 'u32[]', space=smem, size = 0x4, offset = 0x4, fixed_abs, tag = 'smem constant byte address 0x4 - core index']
  #allocation1 [shape = 'u32[72,128]{1,0:T(1,128)}', space=vmem, size = 0x9000, scoped, tag = 'internal scratch']
  %s0 = inlined_call_operand.vmem [shape: f32[4,785], index: 0, kind: input, shape index: {}]
  %s1 = inlined_call_operand.vmem [shape: f32[785,32], index: 1, kind: input, shape index: {}]
  %s2 = inlined_call_operand.vmem [shape: f32[1,32], index: 2, kind: input, shape index: {}]
  %s3 = inlined_call_operand.vmem [shape: f32[32,32], index: 3, kind: input, shape index: {}]
  %s4 = inlined_call_operand.vmem [shape: f32[1,32], index: 4, kind: input, shape index: {}]
  %s5 = inlined_call_operand.vmem [shape: f32[32,3], index: 5, kind: input, shape index: {}]
  %s6 = inlined_call_operand.vmem [shape: f32[1,3], index: 6, kind: input, shape index: {}]
  %s7 = inlined_call_operand.vmem [shape: f32[4,3], index: 7, kind: output, shape index: {}]
  %s8 = sld [smem:[#allocation0]]
  $region38: #{conv_pcida_forward.6} parent=0
    _
  %s10 = ssub.s32 1, %s8
  %s11 = scalar_select 0, %s10, %s8
  // Predicated region
  $region2: #{conv_pcida_forward.6} parent=0 // pred_check
    _
  $region3: #{conv_pcida_forward.6} parent=0 // pred_check_branch
    %13 = sbr.rel (0) target = $region5
  $region4: #{conv_pcida_forward.6} parent=0 // pred_region
    _
  $region5: #{conv_pcida_forward.6} parent=0 // pred_fallthru
    _
  // Predicated region
  $region6: #{conv_pcida_forward.6} parent=0 // pred_check
    _
  $region7: #{conv_pcida_forward.6} parent=0 // pred_check_branch
    %15 = sbr.rel (0) target = $region9
  $region8: #{conv_pcida_forward.6} parent=0 // pred_region
    _
  $region9: #{conv_pcida_forward.6} parent=0 // pred_fallthru
    _
  // Predicated region
  $region10: #{conv_pcida_forward.6} parent=0 // pred_check
    _
  $region11: #{conv_pcida_forward.6} parent=0 // pred_check_branch
    %17 = sbr.rel (0) target = $region13
  $region12: #{conv_pcida_forward.6} parent=0 // pred_region
    _
  $region13: #{conv_pcida_forward.6} parent=0 // pred_fallthru
    _
  // Predicated region
  $region14: #{conv_pcida_forward.6} parent=0 // pred_check
    _
  $region15: #{conv_pcida_forward.6} parent=0 // pred_check_branch
    %19 = sbr.rel (0) target = $region17
  $region16: #{conv_pcida_forward.6} parent=0 // pred_region
    _
  $region17: #{conv_pcida_forward.6} parent=0 // pred_fallthru
    _
  // Predicated region
  $region18: #{conv_pcida_forward.6} parent=0 // pred_check
    _
  $region19: #{conv_pcida_forward.6} parent=0 // pred_check_branch
    %21 = sbr.rel (0) target = $region21
  $region20: #{conv_pcida_forward.6} parent=0 // pred_region
    _
  $region21: #{conv_pcida_forward.6} parent=0 // pred_fallthru
    _
  // Predicated region
  $region22: #{conv_pcida_forward.6} parent=0 // pred_check
    _
  $region23: #{conv_pcida_forward.6} parent=0 // pred_check_branch
    %23 = sbr.rel (0) target = $region25
  $region24: #{conv_pcida_forward.6} parent=0 // pred_region
    _
  $region25: #{conv_pcida_forward.6} parent=0 // pred_fallthru
    _
  // Predicated region
  $region26: #{conv_pcida_forward.6} parent=0 // pred_check
    _
  $region27: #{conv_pcida_forward.6} parent=0 // pred_check_branch
    %25 = sbr.rel (0) target = $region29
  $region28: #{conv_pcida_forward.6} parent=0 // pred_region
    _
  $region29: #{conv_pcida_forward.6} parent=0 // pred_fallthru
    _
  %v26 = vld [vmem:[%s0] sm:$0xff]
  %v27 = vld [vmem:[%s0 + $0x8] sm:$0xff]
  %v28 = vld [vmem:[%s0 + $0x10] sm:$0xff]
  %v29 = vld [vmem:[%s0 + $0x18] sm:$0xf]
  %v30 = vld [vmem:[%s1] sm:$0xff]
  %v31 = vld [vmem:[%s1 + $0x8] sm:$0xff]
  %v32 = vld [vmem:[%s1 + $0x10] sm:$0xff]
  %v33 = vld [vmem:[%s1 + $0x18] sm:$0xff]
  %v34 = vld [vmem:[%s1 + $0x20] sm:$0xff]
  %v35 = vld [vmem:[%s1 + $0x28] sm:$0xff]
  %v36 = vld [vmem:[%s1 + $0x30] sm:$0xff]
  %v37 = vld [vmem:[%s1 + $0x38] sm:$0xff]
  %v38 = vld [vmem:[%s1 + $0x40] sm:$0xff]
  %v39 = vld [vmem:[%s1 + $0x48] sm:$0xff]
  %v40 = vld [vmem:[%s1 + $0x50] sm:$0xff]
  %v41 = vld [vmem:[%s1 + $0x58] sm:$0xff]
  %v42 = vld [vmem:[%s1 + $0x60] sm:$0xff]
  %v43 = vld [vmem:[%s1 + $0x68] sm:$0xff]
  %v44 = vld [vmem:[%s1 + $0x70] sm:$0xff]
  %v45 = vld [vmem:[%s1 + $0x78] sm:$0xff]
  %v46 = vld [vmem:[%s1 + $0x80] sm:$0xff]
  %v47 = vld [vmem:[%s1 + $0x88] sm:$0xff]
  %v48 = vld [vmem:[%s1 + $0x90] sm:$0xff]
  %v49 = vld [vmem:[%s1 + $0x98] sm:$0xff]
  %v50 = vld [vmem:[%s1 + $0xa0] sm:$0xff]
  %v51 = vld [vmem:[%s1 + $0xa8] sm:$0xff]
  %v52 = vld [vmem:[%s1 + $0xb0] sm:$0xff]
  %v53 = vld [vmem:[%s1 + $0xb8] sm:$0xff]
  %v54 = vld [vmem:[%s1 + $0xc0] sm:$0xff]
  %v55 = vld [vmem:[%s1 + $0xc8] sm:$0xff]
  %v56 = vld [vmem:[%s1 + $0xd0] sm:$0xff]
  %v57 = vld [vmem:[%s1 + $0xd8] sm:$0xff]
  %v58 = vld [vmem:[%s1 + $0xe0] sm:$0xff]
  %v59 = vld [vmem:[%s1 + $0xe8] sm:$0xff]
  %v60 = vld [vmem:[%s1 + $0xf0] sm:$0xff]
  %v61 = vld [vmem:[%s1 + $0xf8] sm:$0xff]
  %v62 = vld [vmem:[%s1 + $0x100] sm:$0xff]
  %v63 = vld [vmem:[%s1 + $0x108] sm:$0xff]
  %v64 = vld [vmem:[%s1 + $0x110] sm:$0xff]
  %v65 = vld [vmem:[%s1 + $0x118] sm:$0xff]
  %v66 = vld [vmem:[%s1 + $0x120] sm:$0xff]
  %v67 = vld [vmem:[%s1 + $0x128] sm:$0xff]
  %v68 = vld [vmem:[%s1 + $0x130] sm:$0xff]
  %v69 = vld [vmem:[%s1 + $0x138] sm:$0xff]
  %v70 = vld [vmem:[%s1 + $0x140] sm:$0xff]
  %v71 = vld [vmem:[%s1 + $0x148] sm:$0xff]
  %v72 = vld [vmem:[%s1 + $0x150] sm:$0xff]
  %v73 = vld [vmem:[%s1 + $0x158] sm:$0xff]
  %v74 = vld [vmem:[%s1 + $0x160] sm:$0xff]
  %v75 = vld [vmem:[%s1 + $0x168] sm:$0xff]
  %v76 = vld [vmem:[%s1 + $0x170] sm:$0xff]
  %v77 = vld [vmem:[%s1 + $0x178] sm:$0xff]
  %v78 = vld [vmem:[%s1 + $0x180] sm:$0xff]
  %v79 = vld [vmem:[%s1 + $0x188] sm:$0xff]
  %v80 = vld [vmem:[%s1 + $0x190] sm:$0xff]
  %v81 = vld [vmem:[%s1 + $0x198] sm:$0xff]
  %v82 = vld [vmem:[%s1 + $0x1a0] sm:$0xff]
  %v83 = vld [vmem:[%s1 + $0x1a8] sm:$0xff]
  %v84 = vld [vmem:[%s1 + $0x1b0] sm:$0xff]
  %v85 = vld [vmem:[%s1 + $0x1b8] sm:$0xff]
  %v86 = vld [vmem:[%s1 + $0x1c0] sm:$0xff]
  %v87 = vld [vmem:[%s1 + $0x1c8] sm:$0xff]
  %v88 = vld [vmem:[%s1 + $0x1d0] sm:$0xff]
  %v89 = vld [vmem:[%s1 + $0x1d8] sm:$0xff]
  %v90 = vld [vmem:[%s1 + $0x1e0] sm:$0xff]
  %v91 = vld [vmem:[%s1 + $0x1e8] sm:$0xff]
  %v92 = vld [vmem:[%s1 + $0x1f0] sm:$0xff]
  %v93 = vld [vmem:[%s1 + $0x1f8] sm:$0xff]
  %v94 = vld [vmem:[%s1 + $0x200] sm:$0xff]
  %v95 = vld [vmem:[%s1 + $0x208] sm:$0xff]
  %v96 = vld [vmem:[%s1 + $0x210] sm:$0xff]
  %v97 = vld [vmem:[%s1 + $0x218] sm:$0xff]
  %v98 = vld [vmem:[%s1 + $0x220] sm:$0xff]
  %v99 = vld [vmem:[%s1 + $0x228] sm:$0xff]
  %v100 = vld [vmem:[%s1 + $0x230] sm:$0xff]
  %v101 = vld [vmem:[%s1 + $0x238] sm:$0xff]
  %v102 = vld [vmem:[%s1 + $0x240] sm:$0xff]
  %v103 = vld [vmem:[%s1 + $0x248] sm:$0xff]
  %v104 = vld [vmem:[%s1 + $0x250] sm:$0xff]
  %v105 = vld [vmem:[%s1 + $0x258] sm:$0xff]
  %v106 = vld [vmem:[%s1 + $0x260] sm:$0xff]
  %v107 = vld [vmem:[%s1 + $0x268] sm:$0xff]
  %v108 = vld [vmem:[%s1 + $0x270] sm:$0xff]
  %v109 = vld [vmem:[%s1 + $0x278] sm:$0xff]
  %v110 = vld [vmem:[%s1 + $0x280] sm:$0xff]
  %v111 = vld [vmem:[%s1 + $0x288] sm:$0xff]
  %v112 = vld [vmem:[%s1 + $0x290] sm:$0xff]
  %v113 = vld [vmem:[%s1 + $0x298] sm:$0xff]
  %v114 = vld [vmem:[%s1 + $0x2a0] sm:$0xff]
  %v115 = vld [vmem:[%s1 + $0x2a8] sm:$0xff]
  %v116 = vld [vmem:[%s1 + $0x2b0] sm:$0xff]
  %v117 = vld [vmem:[%s1 + $0x2b8] sm:$0xff]
  %v118 = vld [vmem:[%s1 + $0x2c0] sm:$0xff]
  %v119 = vld [vmem:[%s1 + $0x2c8] sm:$0xff]
  %v120 = vld [vmem:[%s1 + $0x2d0] sm:$0xff]
  %v121 = vld [vmem:[%s1 + $0x2d8] sm:$0xff]
  %v122 = vld [vmem:[%s1 + $0x2e0] sm:$0xff]
  %v123 = vld [vmem:[%s1 + $0x2e8] sm:$0xff]
  %v124 = vld [vmem:[%s1 + $0x2f0] sm:$0xff]
  %v125 = vld [vmem:[%s1 + $0x2f8] sm:$0xff]
  %v126 = vld [vmem:[%s1 + $0x300] sm:$0xff]
  %v127 = vld [vmem:[%s1 + $0x308] sm:$0xff]
  %v128 = vld [vmem:[%s1 + $0x310] sm:$0x1]
  %v129 = vld [vmem:[%s2] sm:$0x1]
  %v131 = vperm.slane %v129, 0
  %137 = vst [vmem:[#allocation1] ss:$2 sm:$0xff] %v26
  %s138 = scalar_lea.vmem [#allocation1], 16
  %139 = vst [vmem:[%s138] ss:$2 sm:$0xff] %v27
  %s140 = scalar_lea.vmem [#allocation1], 32
  %141 = vst [vmem:[%s140] ss:$2 sm:$0xff] %v28
  %s142 = scalar_lea.vmem [#allocation1], 48
  %143 = vst [vmem:[%s142] ss:$2 sm:$0xff] %v29
  %v144 = vld.sshfl [vmem:[#allocation1] sm:$0xff pattern:$0x75316420]
  %v145 = vld.sshfl [vmem:[#allocation1 + $0x8] sm:$0xff pattern:$0x75316420]
  %v146 = vld.sshfl [vmem:[#allocation1 + $0x10] sm:$0xff pattern:$0x75316420]
  %v147 = vld.sshfl [vmem:[#allocation1 + $0x18] sm:$0xff pattern:$0x75316420]
  %v148 = vld.sshfl [vmem:[#allocation1 + $0x20] sm:$0xff pattern:$0x75316420]
  %v149 = vld.sshfl [vmem:[#allocation1 + $0x28] sm:$0xff pattern:$0x75316420]
  %v150 = vld.sshfl [vmem:[#allocation1 + $0x30] sm:$0xff pattern:$0x75316420]
  %vm157 = vcmask 138240
  %v158 = vsel %vm157, %v150, 0
  %vm160 = vcmask 1040384
  %v162 = vsel %vm160, %v128, 0
  %164 = vmatpush.msra.mxu0 %v45
  %165 = vmatpush.msra.mxu0 %v44
  %166 = vmatpush.msra.mxu0 %v43
  %167 = vmatpush.msra.mxu0 %v42
  %168 = vmatpush.msra.mxu0 %v41
  %169 = vmatpush.msra.mxu0 %v40
  %170 = vmatpush.msra.mxu0 %v39
  %171 = vmatpush.msra.mxu0 %v38
  %172 = vmatpush.msra.mxu0 %v37
  %173 = vmatpush.msra.mxu0 %v36
  %174 = vmatpush.msra.mxu0 %v35
  %175 = vmatpush.msra.mxu0 %v34
  %176 = vmatpush.msra.mxu0 %v33
  %177 = vmatpush.msra.mxu0 %v32
  %178 = vmatpush.msra.mxu0 %v31
  %179 = vmatpush.msra.mxu0 %v30
  %180 = vmatmul.f32.gmra.mxu0 %v144
  %v181 = vpop.f32.mrf.mxu0
  %v182 = vadd.f32 %v131, %v181
  %183 = vdwg.mxu0
  %184 = vmatpush.msra.mxu0 %v61
  %185 = vmatpush.msra.mxu0 %v60
  %186 = vmatpush.msra.mxu0 %v59
  %187 = vmatpush.msra.mxu0 %v58
  %188 = vmatpush.msra.mxu0 %v57
  %189 = vmatpush.msra.mxu0 %v56
  %190 = vmatpush.msra.mxu0 %v55
  %191 = vmatpush.msra.mxu0 %v54
  %192 = vmatpush.msra.mxu0 %v53
  %193 = vmatpush.msra.mxu0 %v52
  %194 = vmatpush.msra.mxu0 %v51
  %195 = vmatpush.msra.mxu0 %v50
  %196 = vmatpush.msra.mxu0 %v49
  %197 = vmatpush.msra.mxu0 %v48
  %198 = vmatpush.msra.mxu0 %v47
  %199 = vmatpush.msra.mxu0 %v46
  %200 = vmatmul.f32.gmra.mxu0 %v145
  %v201 = vpop.f32.mrf.mxu0
  %v202 = vadd.f32 %v182, %v201
  %203 = vdwg.mxu0
  %204 = vmatpush.msra.mxu0 %v77
  %205 = vmatpush.msra.mxu0 %v76
  %206 = vmatpush.msra.mxu0 %v75
  %207 = vmatpush.msra.mxu0 %v74
  %208 = vmatpush.msra.mxu0 %v73
  %209 = vmatpush.msra.mxu0 %v72
  %210 = vmatpush.msra.mxu0 %v71
  %211 = vmatpush.msra.mxu0 %v70
  %212 = vmatpush.msra.mxu0 %v69
  %213 = vmatpush.msra.mxu0 %v68
  %214 = vmatpush.msra.mxu0 %v67
  %215 = vmatpush.msra.mxu0 %v66
  %216 = vmatpush.msra.mxu0 %v65
  %217 = vmatpush.msra.mxu0 %v64
  %218 = vmatpush.msra.mxu0 %v63
  %219 = vmatpush.msra.mxu0 %v62
  %220 = vmatmul.f32.gmra.mxu0 %v146
  %v221 = vpop.f32.mrf.mxu0
  %v222 = vadd.f32 %v202, %v221
  %223 = vdwg.mxu0
  %224 = vmatpush.msra.mxu0 %v93
  %225 = vmatpush.msra.mxu0 %v92
  %226 = vmatpush.msra.mxu0 %v91
  %227 = vmatpush.msra.mxu0 %v90
  %228 = vmatpush.msra.mxu0 %v89
  %229 = vmatpush.msra.mxu0 %v88
  %230 = vmatpush.msra.mxu0 %v87
  %231 = vmatpush.msra.mxu0 %v86
  %232 = vmatpush.msra.mxu0 %v85
  %233 = vmatpush.msra.mxu0 %v84
  %234 = vmatpush.msra.mxu0 %v83
  %235 = vmatpush.msra.mxu0 %v82
  %236 = vmatpush.msra.mxu0 %v81
  %237 = vmatpush.msra.mxu0 %v80
  %238 = vmatpush.msra.mxu0 %v79
  %239 = vmatpush.msra.mxu0 %v78
  %240 = vmatmul.f32.gmra.mxu0 %v147
  %v241 = vpop.f32.mrf.mxu0
  %v242 = vadd.f32 %v222, %v241
  %243 = vdwg.mxu0
  %244 = vmatpush.msra.mxu0 %v109
  %245 = vmatpush.msra.mxu0 %v108
  %246 = vmatpush.msra.mxu0 %v107
  %247 = vmatpush.msra.mxu0 %v106
  %248 = vmatpush.msra.mxu0 %v105
  %249 = vmatpush.msra.mxu0 %v104
  %250 = vmatpush.msra.mxu0 %v103
  %251 = vmatpush.msra.mxu0 %v102
  %252 = vmatpush.msra.mxu0 %v101
  %253 = vmatpush.msra.mxu0 %v100
  %254 = vmatpush.msra.mxu0 %v99
  %255 = vmatpush.msra.mxu0 %v98
  %256 = vmatpush.msra.mxu0 %v97
  %257 = vmatpush.msra.mxu0 %v96
  %258 = vmatpush.msra.mxu0 %v95
  %259 = vmatpush.msra.mxu0 %v94
  %260 = vmatmul.f32.gmra.mxu0 %v148
  %v261 = vpop.f32.mrf.mxu0
  %v262 = vadd.f32 %v242, %v261
  %263 = vdwg.mxu0
  %264 = vmatpush.msra.mxu0 %v125
  %265 = vmatpush.msra.mxu0 %v124
  %266 = vmatpush.msra.mxu0 %v123
  %267 = vmatpush.msra.mxu0 %v122
  %268 = vmatpush.msra.mxu0 %v121
  %269 = vmatpush.msra.mxu0 %v120
  %270 = vmatpush.msra.mxu0 %v119
  %271 = vmatpush.msra.mxu0 %v118
  %272 = vmatpush.msra.mxu0 %v117
  %273 = vmatpush.msra.mxu0 %v116
  %274 = vmatpush.msra.mxu0 %v115
  %275 = vmatpush.msra.mxu0 %v114
  %276 = vmatpush.msra.mxu0 %v113
  %277 = vmatpush.msra.mxu0 %v112
  %278 = vmatpush.msra.mxu0 %v111
  %279 = vmatpush.msra.mxu0 %v110
  %280 = vmatmul.f32.gmra.mxu0 %v149
  %v281 = vpop.f32.mrf.mxu0
  %v282 = vadd.f32 %v262, %v281
  %283 = vdwg.mxu0
  %284 = vmatpush.msra.mxu0 0.0
  %285 = vmatpush.msra.mxu0 0.0
  %286 = vmatpush.msra.mxu0 0.0
  %287 = vmatpush.msra.mxu0 0.0
  %288 = vmatpush.msra.mxu0 0.0
  %289 = vmatpush.msra.mxu0 0.0
  %290 = vmatpush.msra.mxu0 0.0
  %291 = vmatpush.msra.mxu0 0.0
  %292 = vmatpush.msra.mxu0 0.0
  %293 = vmatpush.msra.mxu0 0.0
  %294 = vmatpush.msra.mxu0 0.0
  %295 = vmatpush.msra.mxu0 0.0
  %296 = vmatpush.msra.mxu0 0.0
  %297 = vmatpush.msra.mxu0 %v162
  %298 = vmatpush.msra.mxu0 %v127
  %299 = vmatpush.msra.mxu0 %v126
  %300 = vmatmul.f32.gmra.mxu0 %v158
  %v301 = vpop.f32.mrf.mxu0
  %v302 = vadd.f32 %v282, %v301
  %303 = vdwg.mxu0
  %vm304 = vcmp.ge.f32.partialorder %v302, 0.0
  %v305 = vmul.f32 %v302, 0.2
  %v306 = vsel %vm304, %v302, %v305
  %v307 = vld [vmem:[%s3] sm:$0xff]
  %v308 = vld [vmem:[%s3 + $0x8] sm:$0xff]
  %v309 = vld [vmem:[%s3 + $0x10] sm:$0xff]
  %v310 = vld [vmem:[%s3 + $0x18] sm:$0xff]
  %v311 = vld [vmem:[%s4] sm:$0x1]
  %v313 = vperm.slane %v311, 0
  %vm315 = vcmask 261120
  %v317 = vsel %vm315, %v306, 0
  %319 = vmatpush.msra.mxu0 0.0
  %320 = vmatpush.msra.mxu0 0.0
  %321 = vmatpush.msra.mxu0 0.0
  %322 = vmatpush.msra.mxu0 0.0
  %323 = vmatpush.msra.mxu0 0.0
  %324 = vmatpush.msra.mxu0 0.0
  %325 = vmatpush.msra.mxu0 0.0
  %326 = vmatpush.msra.mxu0 0.0
  %327 = vmatpush.msra.mxu0 0.0
  %328 = vmatpush.msra.mxu0 0.0
  %329 = vmatpush.msra.mxu0 0.0
  %330 = vmatpush.msra.mxu0 0.0
  %331 = vmatpush.msra.mxu0 %v310
  %332 = vmatpush.msra.mxu0 %v309
  %333 = vmatpush.msra.mxu0 %v308
  %334 = vmatpush.msra.mxu0 %v307
  %335 = vmatmul.f32.gmra.mxu0 %v317
  %v336 = vpop.f32.mrf.mxu0
  %v337 = vadd.f32 %v313, %v336
  %338 = vdwg.mxu0
  %vm339 = vcmp.ge.f32.partialorder %v337, 0.0
  %v340 = vmul.f32 %v337, 0.2
  %v341 = vsel %vm339, %v337, %v340
  %v342 = vld [vmem:[%s5] sm:$0xff]
  %v343 = vld [vmem:[%s5 + $0x8] sm:$0xff]
  %v344 = vld [vmem:[%s5 + $0x10] sm:$0xff]
  %v345 = vld [vmem:[%s5 + $0x18] sm:$0xff]
  %v346 = vld [vmem:[%s6] sm:$0x1]
  %v348 = vperm.slane %v346, 0
  %v351 = vsel %vm315, %v341, 0
  %353 = vmatpush.msra.mxu0 0.0
  %354 = vmatpush.msra.mxu0 0.0
  %355 = vmatpush.msra.mxu0 0.0
  %356 = vmatpush.msra.mxu0 0.0
  %357 = vmatpush.msra.mxu0 0.0
  %358 = vmatpush.msra.mxu0 0.0
  %359 = vmatpush.msra.mxu0 0.0
  %360 = vmatpush.msra.mxu0 0.0
  %361 = vmatpush.msra.mxu0 0.0
  %362 = vmatpush.msra.mxu0 0.0
  %363 = vmatpush.msra.mxu0 0.0
  %364 = vmatpush.msra.mxu0 0.0
  %365 = vmatpush.msra.mxu0 %v345
  %366 = vmatpush.msra.mxu0 %v344
  %367 = vmatpush.msra.mxu0 %v343
  %368 = vmatpush.msra.mxu0 %v342
  %369 = vmatmul.f32.gmra.mxu0 %v351
  %v370 = vpop.f32.mrf.mxu0
  %v371 = vadd.f32 %v348, %v370
  %372 = vdwg.mxu0
  %vm373 = vcmask 19456
  %374 = vst.msk [vmem:[%s7] sm:$0xf] %vm373, %v371
  // Predicated region
  $region30: #{conv_pcida_forward.6} parent=0 // pred_check
    _
  $region31: #{conv_pcida_forward.6} parent=0 // pred_check_branch
    %376 = sbr.rel (0) target = $region33
  $region32: #{conv_pcida_forward.6} parent=0 // pred_region
    _
  $region33: #{conv_pcida_forward.6} parent=0 // pred_fallthru
    _
  // Predicated region
  $region34: #{conv_pcida_forward.6} parent=0 // pred_check
    _
  $region35: #{conv_pcida_forward.6} parent=0 // pred_check_branch
    %378 = sbr.rel (0) target = $region37
  $region36: #{conv_pcida_forward.6} parent=0 // pred_region
    _
  $region37: #{conv_pcida_forward.6} parent=0 // pred_fallthru
    _

// kernel: conv_pcida_forward.7
$region0: #{conv_pcida_forward.7}
  #allocation0 [shape = 'u32[]', space=smem, size = 0x4, offset = 0x4, fixed_abs, tag = 'smem constant byte address 0x4 - core index']
  #allocation1 [shape = 'u32[72,128]{1,0:T(1,128)}', space=vmem, size = 0x9000, scoped, tag = 'internal scratch']
  %s0 = inlined_call_operand.vmem [shape: bf16[784,9], index: 0, kind: input, shape index: {}]
  %s1 = inlined_call_operand.vmem [shape: bf16[9,32], index: 1, kind: input, shape index: {}]
  %s2 = inlined_call_operand.vmem [shape: f32[1,32], index: 2, kind: input, shape index: {}]
  %s3 = inlined_call_operand.vmem [shape: bf16[784,32], index: 3, kind: output, shape index: {}]
  %s4 = sld [smem:[#allocation0]]
  $region22: #{conv_pcida_forward.7} parent=0
    _
  %s6 = ssub.s32 1, %s4
  %s7 = scalar_select 0, %s6, %s4
  // Predicated region
  $region2: #{conv_pcida_forward.7} parent=0 // pred_check
    _
  $region3: #{conv_pcida_forward.7} parent=0 // pred_check_branch
    %9 = sbr.rel (0) target = $region5
  $region4: #{conv_pcida_forward.7} parent=0 // pred_region
    _
  $region5: #{conv_pcida_forward.7} parent=0 // pred_fallthru
    _
  // Predicated region
  $region6: #{conv_pcida_forward.7} parent=0 // pred_check
    _
  $region7: #{conv_pcida_forward.7} parent=0 // pred_check_branch
    %11 = sbr.rel (0) target = $region9
  $region8: #{conv_pcida_forward.7} parent=0 // pred_region
    _
  $region9: #{conv_pcida_forward.7} parent=0 // pred_fallthru
    _
  // Predicated region
  $region10: #{conv_pcida_forward.7} parent=0 // pred_check
    _
  $region11: #{conv_pcida_forward.7} parent=0 // pred_check_branch
    %13 = sbr.rel (0) target = $region13
  $region12: #{conv_pcida_forward.7} parent=0 // pred_region
    _
  $region13: #{conv_pcida_forward.7} parent=0 // pred_fallthru
    _
  %v15 = vld [vmem:[%s0] sm:$0xf]
  %v16 = vld [vmem:[%s0 + $0x4] sm:$0xf]
  %v17 = vld [vmem:[%s0 + $0x8] sm:$0xf]
  %v18 = vld [vmem:[%s0 + $0xc] sm:$0xf]
  %v19 = vld [vmem:[%s0 + $0x10] sm:$0xf]
  %v20 = vld [vmem:[%s0 + $0x14] sm:$0xf]
  %v21 = vld [vmem:[%s0 + $0x18] sm:$0xf]
  %v22 = vld [vmem:[%s0 + $0x1c] sm:$0xf]
  %v23 = vld [vmem:[%s0 + $0x20] sm:$0xf]
  %v24 = vld [vmem:[%s0 + $0x24] sm:$0xf]
  %v25 = vld [vmem:[%s0 + $0x28] sm:$0xf]
  %v26 = vld [vmem:[%s0 + $0x2c] sm:$0xf]
  %v27 = vld [vmem:[%s0 + $0x30] sm:$0xf]
  %v28 = vld [vmem:[%s0 + $0x34] sm:$0xf]
  %v29 = vld [vmem:[%s0 + $0x38] sm:$0xf]
  %v30 = vld [vmem:[%s0 + $0x3c] sm:$0xf]
  %v31 = vld [vmem:[%s0 + $0x40] sm:$0xf]
  %v32 = vld [vmem:[%s0 + $0x44] sm:$0xf]
  %v33 = vld [vmem:[%s0 + $0x48] sm:$0xf]
  %v34 = vld [vmem:[%s0 + $0x4c] sm:$0xf]
  %v35 = vld [vmem:[%s0 + $0x50] sm:$0xf]
  %v36 = vld [vmem:[%s0 + $0x54] sm:$0xf]
  %v37 = vld [vmem:[%s0 + $0x58] sm:$0xf]
  %v38 = vld [vmem:[%s0 + $0x5c] sm:$0xf]
  %v39 = vld [vmem:[%s0 + $0x60] sm:$0xf]
  %v40 = vld [vmem:[%s0 + $0x64] sm:$0xf]
  %v41 = vld [vmem:[%s0 + $0x68] sm:$0xf]
  %v42 = vld [vmem:[%s0 + $0x6c] sm:$0xf]
  %v43 = vld [vmem:[%s0 + $0x70] sm:$0xf]
  %v44 = vld [vmem:[%s0 + $0x74] sm:$0xf]
  %v45 = vld [vmem:[%s0 + $0x78] sm:$0xf]
  %v46 = vld [vmem:[%s0 + $0x7c] sm:$0xf]
  %v47 = vld [vmem:[%s0 + $0x80] sm:$0xf]
  %v48 = vld [vmem:[%s0 + $0x84] sm:$0xf]
  %v49 = vld [vmem:[%s0 + $0x88] sm:$0xf]
  %v50 = vld [vmem:[%s0 + $0x8c] sm:$0xf]
  %v51 = vld [vmem:[%s0 + $0x90] sm:$0xf]
  %v52 = vld [vmem:[%s0 + $0x94] sm:$0xf]
  %v53 = vld [vmem:[%s0 + $0x98] sm:$0xf]
  %v54 = vld [vmem:[%s0 + $0x9c] sm:$0xf]
  %v55 = vld [vmem:[%s0 + $0xa0] sm:$0xf]
  %v56 = vld [vmem:[%s0 + $0xa4] sm:$0xf]
  %v57 = vld [vmem:[%s0 + $0xa8] sm:$0xf]
  %v58 = vld [vmem:[%s0 + $0xac] sm:$0xf]
  %v59 = vld [vmem:[%s0 + $0xb0] sm:$0xf]
  %v60 = vld [vmem:[%s0 + $0xb4] sm:$0xf]
  %v61 = vld [vmem:[%s0 + $0xb8] sm:$0xf]
  %v62 = vld [vmem:[%s0 + $0xbc] sm:$0xf]
  %v63 = vld [vmem:[%s0 + $0xc0] sm:$0xf]
  %v64 = vld [vmem:[%s0 + $0xc4] sm:$0xf]
  %v65 = vld [vmem:[%s0 + $0xc8] sm:$0xf]
  %v66 = vld [vmem:[%s0 + $0xcc] sm:$0xf]
  %v67 = vld [vmem:[%s0 + $0xd0] sm:$0xf]
  %v68 = vld [vmem:[%s0 + $0xd4] sm:$0xf]
  %v69 = vld [vmem:[%s0 + $0xd8] sm:$0xf]
  %v70 = vld [vmem:[%s0 + $0xdc] sm:$0xf]
  %v71 = vld [vmem:[%s0 + $0xe0] sm:$0xf]
  %v72 = vld [vmem:[%s0 + $0xe4] sm:$0xf]
  %v73 = vld [vmem:[%s0 + $0xe8] sm:$0xf]
  %v74 = vld [vmem:[%s0 + $0xec] sm:$0xf]
  %v75 = vld [vmem:[%s0 + $0xf0] sm:$0xf]
  %v76 = vld [vmem:[%s0 + $0xf4] sm:$0xf]
  %v77 = vld [vmem:[%s0 + $0xf8] sm:$0xf]
  %v78 = vld [vmem:[%s0 + $0xfc] sm:$0xf]
  %v79 = vld [vmem:[%s0 + $0x100] sm:$0xf]
  %v80 = vld [vmem:[%s0 + $0x104] sm:$0xf]
  %v81 = vld [vmem:[%s0 + $0x108] sm:$0xf]
  %v82 = vld [vmem:[%s0 + $0x10c] sm:$0xf]
  %v83 = vld [vmem:[%s0 + $0x110] sm:$0xf]
  %v84 = vld [vmem:[%s0 + $0x114] sm:$0xf]
  %v85 = vld [vmem:[%s0 + $0x118] sm:$0xf]
  %v86 = vld [vmem:[%s0 + $0x11c] sm:$0xf]
  %v87 = vld [vmem:[%s0 + $0x120] sm:$0xf]
  %v88 = vld [vmem:[%s0 + $0x124] sm:$0xf]
  %v89 = vld [vmem:[%s0 + $0x128] sm:$0xf]
  %v90 = vld [vmem:[%s0 + $0x12c] sm:$0xf]
  %v91 = vld [vmem:[%s0 + $0x130] sm:$0xf]
  %v92 = vld [vmem:[%s0 + $0x134] sm:$0xf]
  %v93 = vld [vmem:[%s0 + $0x138] sm:$0xf]
  %v94 = vld [vmem:[%s0 + $0x13c] sm:$0xf]
  %v95 = vld [vmem:[%s0 + $0x140] sm:$0xf]
  %v96 = vld [vmem:[%s0 + $0x144] sm:$0xf]
  %v97 = vld [vmem:[%s0 + $0x148] sm:$0xf]
  %v98 = vld [vmem:[%s0 + $0x14c] sm:$0xf]
  %v99 = vld [vmem:[%s0 + $0x150] sm:$0xf]
  %v100 = vld [vmem:[%s0 + $0x154] sm:$0xf]
  %v101 = vld [vmem:[%s0 + $0x158] sm:$0xf]
  %v102 = vld [vmem:[%s0 + $0x15c] sm:$0xf]
  %v103 = vld [vmem:[%s0 + $0x160] sm:$0xf]
  %v104 = vld [vmem:[%s0 + $0x164] sm:$0xf]
  %v105 = vld [vmem:[%s0 + $0x168] sm:$0xf]
  %v106 = vld [vmem:[%s0 + $0x16c] sm:$0xf]
  %v107 = vld [vmem:[%s0 + $0x170] sm:$0xf]
  %v108 = vld [vmem:[%s0 + $0x174] sm:$0xf]
  %v109 = vld [vmem:[%s0 + $0x178] sm:$0xf]
  %v110 = vld [vmem:[%s0 + $0x17c] sm:$0xf]
  %v111 = vld [vmem:[%s0 + $0x180] sm:$0xf]
  %v112 = vld [vmem:[%s0 + $0x184] sm:$0xf]
  %v113 = vld [vmem:[%s1] sm:$0xf]
  %v114 = vld [vmem:[%s1 + $0x4] sm:$0x1]
  %v115 = vld [vmem:[%s2] sm:$0x1]
  %v117 = vperm.slane %v115, 0
  %v217 = vunpack.c.l.b16 %v15
  %v218 = vunpack.c.l.b16 %v16
  %v219 = vunpack.c.l.b16 %v17
  %v220 = vunpack.c.l.b16 %v18
  %v221 = vunpack.c.l.b16 %v19
  %v222 = vunpack.c.l.b16 %v20
  %v223 = vunpack.c.l.b16 %v21
  %v224 = vunpack.c.l.b16 %v22
  %v225 = vunpack.c.l.b16 %v23
  %v226 = vunpack.c.l.b16 %v24
  %v227 = vunpack.c.l.b16 %v25
  %v228 = vunpack.c.l.b16 %v26
  %v229 = vunpack.c.l.b16 %v27
  %v230 = vunpack.c.l.b16 %v28
  %v231 = vunpack.c.l.b16 %v29
  %v232 = vunpack.c.l.b16 %v30
  %v233 = vunpack.c.l.b16 %v31
  %v234 = vunpack.c.l.b16 %v32
  %v235 = vunpack.c.l.b16 %v33
  %v236 = vunpack.c.l.b16 %v34
  %v237 = vunpack.c.l.b16 %v35
  %v238 = vunpack.c.l.b16 %v36
  %v239 = vunpack.c.l.b16 %v37
  %v240 = vunpack.c.l.b16 %v38
  %v241 = vunpack.c.l.b16 %v39
  %v242 = vunpack.c.l.b16 %v40
  %v243 = vunpack.c.l.b16 %v41
  %v244 = vunpack.c.l.b16 %v42
  %v245 = vunpack.c.l.b16 %v43
  %v246 = vunpack.c.l.b16 %v44
  %v247 = vunpack.c.l.b16 %v45
  %v248 = vunpack.c.l.b16 %v46
  %v249 = vunpack.c.l.b16 %v47
  %v250 = vunpack.c.l.b16 %v48
  %v251 = vunpack.c.l.b16 %v49
  %v252 = vunpack.c.l.b16 %v50
  %v253 = vunpack.c.l.b16 %v51
  %v254 = vunpack.c.l.b16 %v52
  %v255 = vunpack.c.l.b16 %v53
  %v256 = vunpack.c.l.b16 %v54
  %v257 = vunpack.c.l.b16 %v55
  %v258 = vunpack.c.l.b16 %v56
  %v259 = vunpack.c.l.b16 %v57
  %v260 = vunpack.c.l.b16 %v58
  %v261 = vunpack.c.l.b16 %v59
  %v262 = vunpack.c.l.b16 %v60
  %v263 = vunpack.c.l.b16 %v61
  %v264 = vunpack.c.l.b16 %v62
  %v265 = vunpack.c.l.b16 %v63
  %v266 = vunpack.c.l.b16 %v64
  %v267 = vunpack.c.l.b16 %v65
  %v268 = vunpack.c.l.b16 %v66
  %v269 = vunpack.c.l.b16 %v67
  %v270 = vunpack.c.l.b16 %v68
  %v271 = vunpack.c.l.b16 %v69
  %v272 = vunpack.c.l.b16 %v70
  %v273 = vunpack.c.l.b16 %v71
  %v274 = vunpack.c.l.b16 %v72
  %v275 = vunpack.c.l.b16 %v73
  %v276 = vunpack.c.l.b16 %v74
  %v277 = vunpack.c.l.b16 %v75
  %v278 = vunpack.c.l.b16 %v76
  %v279 = vunpack.c.l.b16 %v77
  %v280 = vunpack.c.l.b16 %v78
  %v281 = vunpack.c.l.b16 %v79
  %v282 = vunpack.c.l.b16 %v80
  %v283 = vunpack.c.l.b16 %v81
  %v284 = vunpack.c.l.b16 %v82
  %v285 = vunpack.c.l.b16 %v83
  %v286 = vunpack.c.l.b16 %v84
  %v287 = vunpack.c.l.b16 %v85
  %v288 = vunpack.c.l.b16 %v86
  %v289 = vunpack.c.l.b16 %v87
  %v290 = vunpack.c.l.b16 %v88
  %v291 = vunpack.c.l.b16 %v89
  %v292 = vunpack.c.l.b16 %v90
  %v293 = vunpack.c.l.b16 %v91
  %v294 = vunpack.c.l.b16 %v92
  %v295 = vunpack.c.l.b16 %v93
  %v296 = vunpack.c.l.b16 %v94
  %v297 = vunpack.c.l.b16 %v95
  %v298 = vunpack.c.l.b16 %v96
  %v299 = vunpack.c.l.b16 %v97
  %v300 = vunpack.c.l.b16 %v98
  %v301 = vunpack.c.l.b16 %v99
  %v302 = vunpack.c.l.b16 %v100
  %v303 = vunpack.c.l.b16 %v101
  %v304 = vunpack.c.l.b16 %v102
  %v305 = vunpack.c.l.b16 %v103
  %v306 = vunpack.c.l.b16 %v104
  %v307 = vunpack.c.l.b16 %v105
  %v308 = vunpack.c.l.b16 %v106
  %v309 = vunpack.c.l.b16 %v107
  %v310 = vunpack.c.l.b16 %v108
  %v311 = vunpack.c.l.b16 %v109
  %v312 = vunpack.c.l.b16 %v110
  %v313 = vunpack.c.l.b16 %v111
  %v314 = vunpack.c.l.b16 %v112
  %v315 = vpack.c.b16 %v218, %v217
  %v316 = vpack.c.b16 %v220, %v219
  %v317 = vpack.c.b16 %v222, %v221
  %v318 = vpack.c.b16 %v224, %v223
  %v319 = vpack.c.b16 %v226, %v225
  %v320 = vpack.c.b16 %v228, %v227
  %v321 = vpack.c.b16 %v230, %v229
  %v322 = vpack.c.b16 %v232, %v231
  %v323 = vpack.c.b16 %v234, %v233
  %v324 = vpack.c.b16 %v236, %v235
  %v325 = vpack.c.b16 %v238, %v237
  %v326 = vpack.c.b16 %v240, %v239
  %v327 = vpack.c.b16 %v242, %v241
  %v328 = vpack.c.b16 %v244, %v243
  %v329 = vpack.c.b16 %v246, %v245
  %v330 = vpack.c.b16 %v248, %v247
  %v331 = vpack.c.b16 %v250, %v249
  %v332 = vpack.c.b16 %v252, %v251
  %v333 = vpack.c.b16 %v254, %v253
  %v334 = vpack.c.b16 %v256, %v255
  %v335 = vpack.c.b16 %v258, %v257
  %v336 = vpack.c.b16 %v260, %v259
  %v337 = vpack.c.b16 %v262, %v261
  %v338 = vpack.c.b16 %v264, %v263
  %v339 = vpack.c.b16 %v266, %v265
  %v340 = vpack.c.b16 %v268, %v267
  %v341 = vpack.c.b16 %v270, %v269
  %v342 = vpack.c.b16 %v272, %v271
  %v343 = vpack.c.b16 %v274, %v273
  %v344 = vpack.c.b16 %v276, %v275
  %v345 = vpack.c.b16 %v278, %v277
  %v346 = vpack.c.b16 %v280, %v279
  %v347 = vpack.c.b16 %v282, %v281
  %v348 = vpack.c.b16 %v284, %v283
  %v349 = vpack.c.b16 %v286, %v285
  %v350 = vpack.c.b16 %v288, %v287
  %v351 = vpack.c.b16 %v290, %v289
  %v352 = vpack.c.b16 %v292, %v291
  %v353 = vpack.c.b16 %v294, %v293
  %v354 = vpack.c.b16 %v296, %v295
  %v355 = vpack.c.b16 %v298, %v297
  %v356 = vpack.c.b16 %v300, %v299
  %v357 = vpack.c.b16 %v302, %v301
  %v358 = vpack.c.b16 %v304, %v303
  %v359 = vpack.c.b16 %v306, %v305
  %v360 = vpack.c.b16 %v308, %v307
  %v361 = vpack.c.b16 %v310, %v309
  %v362 = vpack.c.b16 %v312, %v311
  %v363 = vpack.c.b16 %v314, %v313
  %v366 = vunpack.c.l.b16 %v113
  %v367 = vunpack.c.l.b16 %v114
  %v368 = vpack.c.b16 %v367, %v366
  %vm369 = vcmask 72704
  %v371 = vsel %vm369, %v315, 0
  %v374 = vsel %vm369, %v316, 0
  %v377 = vsel %vm369, %v317, 0
  %v380 = vsel %vm369, %v318, 0
  %v383 = vsel %vm369, %v319, 0
  %v386 = vsel %vm369, %v320, 0
  %v389 = vsel %vm369, %v321, 0
  %v392 = vsel %vm369, %v322, 0
  %v395 = vsel %vm369, %v323, 0
  %v398 = vsel %vm369, %v324, 0
  %v401 = vsel %vm369, %v325, 0
  %v404 = vsel %vm369, %v326, 0
  %v407 = vsel %vm369, %v327, 0
  %v410 = vsel %vm369, %v328, 0
  %v413 = vsel %vm369, %v329, 0
  %v416 = vsel %vm369, %v330, 0
  %v419 = vsel %vm369, %v331, 0
  %v422 = vsel %vm369, %v332, 0
  %v425 = vsel %vm369, %v333, 0
  %v428 = vsel %vm369, %v334, 0
  %v431 = vsel %vm369, %v335, 0
  %v434 = vsel %vm369, %v336, 0
  %v437 = vsel %vm369, %v337, 0
  %v440 = vsel %vm369, %v338, 0
  %v443 = vsel %vm369, %v339, 0
  %v446 = vsel %vm369, %v340, 0
  %v449 = vsel %vm369, %v341, 0
  %v452 = vsel %vm369, %v342, 0
  %v455 = vsel %vm369, %v343, 0
  %v458 = vsel %vm369, %v344, 0
  %v461 = vsel %vm369, %v345, 0
  %v464 = vsel %vm369, %v346, 0
  %v467 = vsel %vm369, %v347, 0
  %v470 = vsel %vm369, %v348, 0
  %v473 = vsel %vm369, %v349, 0
  %v476 = vsel %vm369, %v350, 0
  %v479 = vsel %vm369, %v351, 0
  %v482 = vsel %vm369, %v352, 0
  %v485 = vsel %vm369, %v353, 0
  %v488 = vsel %vm369, %v354, 0
  %v491 = vsel %vm369, %v355, 0
  %v494 = vsel %vm369, %v356, 0
  %v497 = vsel %vm369, %v357, 0
  %v500 = vsel %vm369, %v358, 0
  %v503 = vsel %vm369, %v359, 0
  %v506 = vsel %vm369, %v360, 0
  %v509 = vsel %vm369, %v361, 0
  %v512 = vsel %vm369, %v362, 0
  %v515 = vsel %vm369, %v363, 0
  %vm517 = vcmask 1043456
  %vm518 = vcmask 1044480
  %v519 = vsel %vm517, 4294967295, 65535
  %v520 = vsel %vm518, %v519, 0
  %v522 = vand.u32 %v368, %v520
  %524 = vmatpush.bf16.msra.mxu0 0
  %525 = vmatpush.bf16.msra.mxu0 0
  %526 = vmatpush.bf16.msra.mxu0 0
  %527 = vmatpush.bf16.msra.mxu0 0
  %528 = vmatpush.bf16.msra.mxu0 0
  %529 = vmatpush.bf16.msra.mxu0 0
  %530 = vmatpush.bf16.msra.mxu0 0
  %531 = vmatpush.bf16.msra.mxu0 %v522
  %532 = vmatmul.bf16.gmra.mxu0 %v371
  %v533 = vpop.f32.mrf.mxu0
  %v534 = vadd.f32 %v117, %v533
  %v535 = vpop.f32.mrf.mxu0
  %v536 = vadd.f32 %v117, %v535
  %537 = vmatmul.bf16.gmra.mxu0 %v374
  %v538 = vpop.f32.mrf.mxu0
  %v539 = vadd.f32 %v117, %v538
  %v540 = vpop.f32.mrf.mxu0
  %v541 = vadd.f32 %v117, %v540
  %542 = vmatmul.bf16.gmra.mxu0 %v377
  %v543 = vpop.f32.mrf.mxu0
  %v544 = vadd.f32 %v117, %v543
  %v545 = vpop.f32.mrf.mxu0
  %v546 = vadd.f32 %v117, %v545
  %547 = vmatmul.bf16.gmra.mxu0 %v380
  %v548 = vpop.f32.mrf.mxu0
  %v549 = vadd.f32 %v117, %v548
  %v550 = vpop.f32.mrf.mxu0
  %v551 = vadd.f32 %v117, %v550
  %552 = vmatmul.bf16.gmra.mxu0 %v383
  %v553 = vpop.f32.mrf.mxu0
  %v554 = vadd.f32 %v117, %v553
  %v555 = vpop.f32.mrf.mxu0
  %v556 = vadd.f32 %v117, %v555
  %557 = vmatmul.bf16.gmra.mxu0 %v386
  %v558 = vpop.f32.mrf.mxu0
  %v559 = vadd.f32 %v117, %v558
  %v560 = vpop.f32.mrf.mxu0
  %v561 = vadd.f32 %v117, %v560
  %562 = vmatmul.bf16.gmra.mxu0 %v389
  %v563 = vpop.f32.mrf.mxu0
  %v564 = vadd.f32 %v117, %v563
  %v565 = vpop.f32.mrf.mxu0
  %v566 = vadd.f32 %v117, %v565
  %567 = vmatmul.bf16.gmra.mxu0 %v392
  %v568 = vpop.f32.mrf.mxu0
  %v569 = vadd.f32 %v117, %v568
  %v570 = vpop.f32.mrf.mxu0
  %v571 = vadd.f32 %v117, %v570
  %572 = vmatmul.bf16.gmra.mxu0 %v395
  %v573 = vpop.f32.mrf.mxu0
  %v574 = vadd.f32 %v117, %v573
  %v575 = vpop.f32.mrf.mxu0
  %v576 = vadd.f32 %v117, %v575
  %577 = vmatmul.bf16.gmra.mxu0 %v398
  %v578 = vpop.f32.mrf.mxu0
  %v579 = vadd.f32 %v117, %v578
  %v580 = vpop.f32.mrf.mxu0
  %v581 = vadd.f32 %v117, %v580
  %582 = vmatmul.bf16.gmra.mxu0 %v401
  %v583 = vpop.f32.mrf.mxu0
  %v584 = vadd.f32 %v117, %v583
  %v585 = vpop.f32.mrf.mxu0
  %v586 = vadd.f32 %v117, %v585
  %587 = vmatmul.bf16.gmra.mxu0 %v404
  %v588 = vpop.f32.mrf.mxu0
  %v589 = vadd.f32 %v117, %v588
  %v590 = vpop.f32.mrf.mxu0
  %v591 = vadd.f32 %v117, %v590
  %592 = vmatmul.bf16.gmra.mxu0 %v407
  %v593 = vpop.f32.mrf.mxu0
  %v594 = vadd.f32 %v117, %v593
  %v595 = vpop.f32.mrf.mxu0
  %v596 = vadd.f32 %v117, %v595
  %597 = vmatmul.bf16.gmra.mxu0 %v410
  %v598 = vpop.f32.mrf.mxu0
  %v599 = vadd.f32 %v117, %v598
  %v600 = vpop.f32.mrf.mxu0
  %v601 = vadd.f32 %v117, %v600
  %602 = vmatmul.bf16.gmra.mxu0 %v413
  %v603 = vpop.f32.mrf.mxu0
  %v604 = vadd.f32 %v117, %v603
  %v605 = vpop.f32.mrf.mxu0
  %v606 = vadd.f32 %v117, %v605
  %607 = vmatmul.bf16.gmra.mxu0 %v416
  %v608 = vpop.f32.mrf.mxu0
  %v609 = vadd.f32 %v117, %v608
  %v610 = vpop.f32.mrf.mxu0
  %v611 = vadd.f32 %v117, %v610
  %612 = vmatmul.bf16.gmra.mxu0 %v419
  %v613 = vpop.f32.mrf.mxu0
  %v614 = vadd.f32 %v117, %v613
  %v615 = vpop.f32.mrf.mxu0
  %v616 = vadd.f32 %v117, %v615
  %617 = vmatmul.bf16.gmra.mxu0 %v422
  %v618 = vpop.f32.mrf.mxu0
  %v619 = vadd.f32 %v117, %v618
  %v620 = vpop.f32.mrf.mxu0
  %v621 = vadd.f32 %v117, %v620
  %622 = vmatmul.bf16.gmra.mxu0 %v425
  %v623 = vpop.f32.mrf.mxu0
  %v624 = vadd.f32 %v117, %v623
  %v625 = vpop.f32.mrf.mxu0
  %v626 = vadd.f32 %v117, %v625
  %627 = vmatmul.bf16.gmra.mxu0 %v428
  %v628 = vpop.f32.mrf.mxu0
  %v629 = vadd.f32 %v117, %v628
  %v630 = vpop.f32.mrf.mxu0
  %v631 = vadd.f32 %v117, %v630
  %632 = vmatmul.bf16.gmra.mxu0 %v431
  %v633 = vpop.f32.mrf.mxu0
  %v634 = vadd.f32 %v117, %v633
  %v635 = vpop.f32.mrf.mxu0
  %v636 = vadd.f32 %v117, %v635
  %637 = vmatmul.bf16.gmra.mxu0 %v434
  %v638 = vpop.f32.mrf.mxu0
  %v639 = vadd.f32 %v117, %v638
  %v640 = vpop.f32.mrf.mxu0
  %v641 = vadd.f32 %v117, %v640
  %642 = vmatmul.bf16.gmra.mxu0 %v437
  %v643 = vpop.f32.mrf.mxu0
  %v644 = vadd.f32 %v117, %v643
  %v645 = vpop.f32.mrf.mxu0
  %v646 = vadd.f32 %v117, %v645
  %647 = vmatmul.bf16.gmra.mxu0 %v440
  %v648 = vpop.f32.mrf.mxu0
  %v649 = vadd.f32 %v117, %v648
  %v650 = vpop.f32.mrf.mxu0
  %v651 = vadd.f32 %v117, %v650
  %652 = vmatmul.bf16.gmra.mxu0 %v443
  %v653 = vpop.f32.mrf.mxu0
  %v654 = vadd.f32 %v117, %v653
  %v655 = vpop.f32.mrf.mxu0
  %v656 = vadd.f32 %v117, %v655
  %657 = vmatmul.bf16.gmra.mxu0 %v446
  %v658 = vpop.f32.mrf.mxu0
  %v659 = vadd.f32 %v117, %v658
  %v660 = vpop.f32.mrf.mxu0
  %v661 = vadd.f32 %v117, %v660
  %662 = vmatmul.bf16.gmra.mxu0 %v449
  %v663 = vpop.f32.mrf.mxu0
  %v664 = vadd.f32 %v117, %v663
  %v665 = vpop.f32.mrf.mxu0
  %v666 = vadd.f32 %v117, %v665
  %667 = vmatmul.bf16.gmra.mxu0 %v452
  %v668 = vpop.f32.mrf.mxu0
  %v669 = vadd.f32 %v117, %v668
  %v670 = vpop.f32.mrf.mxu0
  %v671 = vadd.f32 %v117, %v670
  %672 = vmatmul.bf16.gmra.mxu0 %v455
  %v673 = vpop.f32.mrf.mxu0
  %v674 = vadd.f32 %v117, %v673
  %v675 = vpop.f32.mrf.mxu0
  %v676 = vadd.f32 %v117, %v675
  %677 = vmatmul.bf16.gmra.mxu0 %v458
  %v678 = vpop.f32.mrf.mxu0
  %v679 = vadd.f32 %v117, %v678
  %v680 = vpop.f32.mrf.mxu0
  %v681 = vadd.f32 %v117, %v680
  %682 = vmatmul.bf16.gmra.mxu0 %v461
  %v683 = vpop.f32.mrf.mxu0
  %v684 = vadd.f32 %v117, %v683
  %v685 = vpop.f32.mrf.mxu0
  %v686 = vadd.f32 %v117, %v685
  %687 = vmatmul.bf16.gmra.mxu0 %v464
  %v688 = vpop.f32.mrf.mxu0
  %v689 = vadd.f32 %v117, %v688
  %v690 = vpop.f32.mrf.mxu0
  %v691 = vadd.f32 %v117, %v690
  %692 = vmatmul.bf16.gmra.mxu0 %v467
  %v693 = vpop.f32.mrf.mxu0
  %v694 = vadd.f32 %v117, %v693
  %v695 = vpop.f32.mrf.mxu0
  %v696 = vadd.f32 %v117, %v695
  %697 = vmatmul.bf16.gmra.mxu0 %v470
  %v698 = vpop.f32.mrf.mxu0
  %v699 = vadd.f32 %v117, %v698
  %v700 = vpop.f32.mrf.mxu0
  %v701 = vadd.f32 %v117, %v700
  %702 = vmatmul.bf16.gmra.mxu0 %v473
  %v703 = vpop.f32.mrf.mxu0
  %v704 = vadd.f32 %v117, %v703
  %v705 = vpop.f32.mrf.mxu0
  %v706 = vadd.f32 %v117, %v705
  %707 = vmatmul.bf16.gmra.mxu0 %v476
  %v708 = vpop.f32.mrf.mxu0
  %v709 = vadd.f32 %v117, %v708
  %v710 = vpop.f32.mrf.mxu0
  %v711 = vadd.f32 %v117, %v710
  %712 = vmatmul.bf16.gmra.mxu0 %v479
  %v713 = vpop.f32.mrf.mxu0
  %v714 = vadd.f32 %v117, %v713
  %v715 = vpop.f32.mrf.mxu0
  %v716 = vadd.f32 %v117, %v715
  %717 = vmatmul.bf16.gmra.mxu0 %v482
  %v718 = vpop.f32.mrf.mxu0
  %v719 = vadd.f32 %v117, %v718
  %v720 = vpop.f32.mrf.mxu0
  %v721 = vadd.f32 %v117, %v720
  %722 = vmatmul.bf16.gmra.mxu0 %v485
  %v723 = vpop.f32.mrf.mxu0
  %v724 = vadd.f32 %v117, %v723
  %v725 = vpop.f32.mrf.mxu0
  %v726 = vadd.f32 %v117, %v725
  %727 = vmatmul.bf16.gmra.mxu0 %v488
  %v728 = vpop.f32.mrf.mxu0
  %v729 = vadd.f32 %v117, %v728
  %v730 = vpop.f32.mrf.mxu0
  %v731 = vadd.f32 %v117, %v730
  %732 = vmatmul.bf16.gmra.mxu0 %v491
  %v733 = vpop.f32.mrf.mxu0
  %v734 = vadd.f32 %v117, %v733
  %v735 = vpop.f32.mrf.mxu0
  %v736 = vadd.f32 %v117, %v735
  %737 = vmatmul.bf16.gmra.mxu0 %v494
  %v738 = vpop.f32.mrf.mxu0
  %v739 = vadd.f32 %v117, %v738
  %v740 = vpop.f32.mrf.mxu0
  %v741 = vadd.f32 %v117, %v740
  %742 = vmatmul.bf16.gmra.mxu0 %v497
  %v743 = vpop.f32.mrf.mxu0
  %v744 = vadd.f32 %v117, %v743
  %v745 = vpop.f32.mrf.mxu0
  %v746 = vadd.f32 %v117, %v745
  %747 = vmatmul.bf16.gmra.mxu0 %v500
  %v748 = vpop.f32.mrf.mxu0
  %v749 = vadd.f32 %v117, %v748
  %v750 = vpop.f32.mrf.mxu0
  %v751 = vadd.f32 %v117, %v750
  %752 = vmatmul.bf16.gmra.mxu0 %v503
  %v753 = vpop.f32.mrf.mxu0
  %v754 = vadd.f32 %v117, %v753
  %v755 = vpop.f32.mrf.mxu0
  %v756 = vadd.f32 %v117, %v755
  %757 = vmatmul.bf16.gmra.mxu0 %v506
  %v758 = vpop.f32.mrf.mxu0
  %v759 = vadd.f32 %v117, %v758
  %v760 = vpop.f32.mrf.mxu0
  %v761 = vadd.f32 %v117, %v760
  %762 = vmatmul.bf16.gmra.mxu0 %v509
  %v763 = vpop.f32.mrf.mxu0
  %v764 = vadd.f32 %v117, %v763
  %v765 = vpop.f32.mrf.mxu0
  %v766 = vadd.f32 %v117, %v765
  %767 = vmatmul.bf16.gmra.mxu0 %v512
  %v768 = vpop.f32.mrf.mxu0
  %v769 = vadd.f32 %v117, %v768
  %v770 = vpop.f32.mrf.mxu0
  %v771 = vadd.f32 %v117, %v770
  %772 = vmatmul.bf16.gmra.mxu0 %v515
  %v773 = vpop.f32.mrf.mxu0
  %v774 = vadd.f32 %v117, %v773
  %v775 = vpop.f32.mrf.mxu0
  %v776 = vadd.f32 %v117, %v775
  %777 = vdwg.mxu0
  %v778 = vmax.f32 %v534, 0.0
  %v779 = vmax.f32 %v536, 0.0
  %v780 = vmax.f32 %v539, 0.0
  %v781 = vmax.f32 %v541, 0.0
  %v782 = vmax.f32 %v544, 0.0
  %v783 = vmax.f32 %v546, 0.0
  %v784 = vmax.f32 %v549, 0.0
  %v785 = vmax.f32 %v551, 0.0
  %v786 = vmax.f32 %v554, 0.0
  %v787 = vmax.f32 %v556, 0.0
  %v788 = vmax.f32 %v559, 0.0
  %v789 = vmax.f32 %v561, 0.0
  %v790 = vmax.f32 %v564, 0.0
  %v791 = vmax.f32 %v566, 0.0
  %v792 = vmax.f32 %v569, 0.0
  %v793 = vmax.f32 %v571, 0.0
  %v794 = vmax.f32 %v574, 0.0
  %v795 = vmax.f32 %v576, 0.0
  %v796 = vmax.f32 %v579, 0.0
  %v797 = vmax.f32 %v581, 0.0
  %v798 = vmax.f32 %v584, 0.0
  %v799 = vmax.f32 %v586, 0.0
  %v800 = vmax.f32 %v589, 0.0
  %v801 = vmax.f32 %v591, 0.0
  %v802 = vmax.f32 %v594, 0.0
  %v803 = vmax.f32 %v596, 0.0
  %v804 = vmax.f32 %v599, 0.0
  %v805 = vmax.f32 %v601, 0.0
  %v806 = vmax.f32 %v604, 0.0
  %v807 = vmax.f32 %v606, 0.0
  %v808 = vmax.f32 %v609, 0.0
  %v809 = vmax.f32 %v611, 0.0
  %v810 = vmax.f32 %v614, 0.0
  %v811 = vmax.f32 %v616, 0.0
  %v812 = vmax.f32 %v619, 0.0
  %v813 = vmax.f32 %v621, 0.0
  %v814 = vmax.f32 %v624, 0.0
  %v815 = vmax.f32 %v626, 0.0
  %v816 = vmax.f32 %v629, 0.0
  %v817 = vmax.f32 %v631, 0.0
  %v818 = vmax.f32 %v634, 0.0
  %v819 = vmax.f32 %v636, 0.0
  %v820 = vmax.f32 %v639, 0.0
  %v821 = vmax.f32 %v641, 0.0
  %v822 = vmax.f32 %v644, 0.0
  %v823 = vmax.f32 %v646, 0.0
  %v824 = vmax.f32 %v649, 0.0
  %v825 = vmax.f32 %v651, 0.0
  %v826 = vmax.f32 %v654, 0.0
  %v827 = vmax.f32 %v656, 0.0
  %v828 = vmax.f32 %v659, 0.0
  %v829 = vmax.f32 %v661, 0.0
  %v830 = vmax.f32 %v664, 0.0
  %v831 = vmax.f32 %v666, 0.0
  %v832 = vmax.f32 %v669, 0.0
  %v833 = vmax.f32 %v671, 0.0
  %v834 = vmax.f32 %v674, 0.0
  %v835 = vmax.f32 %v676, 0.0
  %v836 = vmax.f32 %v679, 0.0
  %v837 = vmax.f32 %v681, 0.0
  %v838 = vmax.f32 %v684, 0.0
  %v839 = vmax.f32 %v686, 0.0
  %v840 = vmax.f32 %v689, 0.0
  %v841 = vmax.f32 %v691, 0.0
  %v842 = vmax.f32 %v694, 0.0
  %v843 = vmax.f32 %v696, 0.0
  %v844 = vmax.f32 %v699, 0.0
  %v845 = vmax.f32 %v701, 0.0
  %v846 = vmax.f32 %v704, 0.0
  %v847 = vmax.f32 %v706, 0.0
  %v848 = vmax.f32 %v709, 0.0
  %v849 = vmax.f32 %v711, 0.0
  %v850 = vmax.f32 %v714, 0.0
  %v851 = vmax.f32 %v716, 0.0
  %v852 = vmax.f32 %v719, 0.0
  %v853 = vmax.f32 %v721, 0.0
  %v854 = vmax.f32 %v724, 0.0
  %v855 = vmax.f32 %v726, 0.0
  %v856 = vmax.f32 %v729, 0.0
  %v857 = vmax.f32 %v731, 0.0
  %v858 = vmax.f32 %v734, 0.0
  %v859 = vmax.f32 %v736, 0.0
  %v860 = vmax.f32 %v739, 0.0
  %v861 = vmax.f32 %v741, 0.0
  %v862 = vmax.f32 %v744, 0.0
  %v863 = vmax.f32 %v746, 0.0
  %v864 = vmax.f32 %v749, 0.0
  %v865 = vmax.f32 %v751, 0.0
  %v866 = vmax.f32 %v754, 0.0
  %v867 = vmax.f32 %v756, 0.0
  %v868 = vmax.f32 %v759, 0.0
  %v869 = vmax.f32 %v761, 0.0
  %v870 = vmax.f32 %v764, 0.0
  %v871 = vmax.f32 %v766, 0.0
  %v872 = vmax.f32 %v769, 0.0
  %v873 = vmax.f32 %v771, 0.0
  %v874 = vmax.f32 %v774, 0.0
  %v875 = vmax.f32 %v776, 0.0
  %v876 = vpack.c.bf16 %v778, %v778
  %v877 = vpack.c.bf16 %v779, %v779
  %v878 = vpack.c.bf16 %v780, %v780
  %v879 = vpack.c.bf16 %v781, %v781
  %v880 = vpack.c.bf16 %v782, %v782
  %v881 = vpack.c.bf16 %v783, %v783
  %v882 = vpack.c.bf16 %v784, %v784
  %v883 = vpack.c.bf16 %v785, %v785
  %v884 = vpack.c.bf16 %v786, %v786
  %v885 = vpack.c.bf16 %v787, %v787
  %v886 = vpack.c.bf16 %v788, %v788
  %v887 = vpack.c.bf16 %v789, %v789
  %v888 = vpack.c.bf16 %v790, %v790
  %v889 = vpack.c.bf16 %v791, %v791
  %v890 = vpack.c.bf16 %v792, %v792
  %v891 = vpack.c.bf16 %v793, %v793
  %v892 = vpack.c.bf16 %v794, %v794
  %v893 = vpack.c.bf16 %v795, %v795
  %v894 = vpack.c.bf16 %v796, %v796
  %v895 = vpack.c.bf16 %v797, %v797
  %v896 = vpack.c.bf16 %v798, %v798
  %v897 = vpack.c.bf16 %v799, %v799
  %v898 = vpack.c.bf16 %v800, %v800
  %v899 = vpack.c.bf16 %v801, %v801
  %v900 = vpack.c.bf16 %v802, %v802
  %v901 = vpack.c.bf16 %v803, %v803
  %v902 = vpack.c.bf16 %v804, %v804
  %v903 = vpack.c.bf16 %v805, %v805
  %v904 = vpack.c.bf16 %v806, %v806
  %v905 = vpack.c.bf16 %v807, %v807
  %v906 = vpack.c.bf16 %v808, %v808
  %v907 = vpack.c.bf16 %v809, %v809
  %v908 = vpack.c.bf16 %v810, %v810
  %v909 = vpack.c.bf16 %v811, %v811
  %v910 = vpack.c.bf16 %v812, %v812
  %v911 = vpack.c.bf16 %v813, %v813
  %v912 = vpack.c.bf16 %v814, %v814
  %v913 = vpack.c.bf16 %v815, %v815
  %v914 = vpack.c.bf16 %v816, %v816
  %v915 = vpack.c.bf16 %v817, %v817
  %v916 = vpack.c.bf16 %v818, %v818
  %v917 = vpack.c.bf16 %v819, %v819
  %v918 = vpack.c.bf16 %v820, %v820
  %v919 = vpack.c.bf16 %v821, %v821
  %v920 = vpack.c.bf16 %v822, %v822
  %v921 = vpack.c.bf16 %v823, %v823
  %v922 = vpack.c.bf16 %v824, %v824
  %v923 = vpack.c.bf16 %v825, %v825
  %v924 = vpack.c.bf16 %v826, %v826
  %v925 = vpack.c.bf16 %v827, %v827
  %v926 = vpack.c.bf16 %v828, %v828
  %v927 = vpack.c.bf16 %v829, %v829
  %v928 = vpack.c.bf16 %v830, %v830
  %v929 = vpack.c.bf16 %v831, %v831
  %v930 = vpack.c.bf16 %v832, %v832
  %v931 = vpack.c.bf16 %v833, %v833
  %v932 = vpack.c.bf16 %v834, %v834
  %v933 = vpack.c.bf16 %v835, %v835
  %v934 = vpack.c.bf16 %v836, %v836
  %v935 = vpack.c.bf16 %v837, %v837
  %v936 = vpack.c.bf16 %v838, %v838
  %v937 = vpack.c.bf16 %v839, %v839
  %v938 = vpack.c.bf16 %v840, %v840
  %v939 = vpack.c.bf16 %v841, %v841
  %v940 = vpack.c.bf16 %v842, %v842
  %v941 = vpack.c.bf16 %v843, %v843
  %v942 = vpack.c.bf16 %v844, %v844
  %v943 = vpack.c.bf16 %v845, %v845
  %v944 = vpack.c.bf16 %v846, %v846
  %v945 = vpack.c.bf16 %v847, %v847
  %v946 = vpack.c.bf16 %v848, %v848
  %v947 = vpack.c.bf16 %v849, %v849
  %v948 = vpack.c.bf16 %v850, %v850
  %v949 = vpack.c.bf16 %v851, %v851
  %v950 = vpack.c.bf16 %v852, %v852
  %v951 = vpack.c.bf16 %v853, %v853
  %v952 = vpack.c.bf16 %v854, %v854
  %v953 = vpack.c.bf16 %v855, %v855
  %v954 = vpack.c.bf16 %v856, %v856
  %v955 = vpack.c.bf16 %v857, %v857
  %v956 = vpack.c.bf16 %v858, %v858
  %v957 = vpack.c.bf16 %v859, %v859
  %v958 = vpack.c.bf16 %v860, %v860
  %v959 = vpack.c.bf16 %v861, %v861
  %v960 = vpack.c.bf16 %v862, %v862
  %v961 = vpack.c.bf16 %v863, %v863
  %v962 = vpack.c.bf16 %v864, %v864
  %v963 = vpack.c.bf16 %v865, %v865
  %v964 = vpack.c.bf16 %v866, %v866
  %v965 = vpack.c.bf16 %v867, %v867
  %v966 = vpack.c.bf16 %v868, %v868
  %v967 = vpack.c.bf16 %v869, %v869
  %v968 = vpack.c.bf16 %v870, %v870
  %v969 = vpack.c.bf16 %v871, %v871
  %v970 = vpack.c.bf16 %v872, %v872
  %v971 = vpack.c.bf16 %v873, %v873
  %v972 = vpack.c.bf16 %v874, %v874
  %v973 = vpack.c.bf16 %v875, %v875
  %vm974 = vcmask 257024
  %975 = vst.msk [vmem:[%s3] sm:$0xf] %vm974, %v876
  %976 = vst.msk [vmem:[%s3 + $0x4] sm:$0xf] %vm974, %v877
  %977 = vst.msk [vmem:[%s3 + $0x8] sm:$0xf] %vm974, %v878
  %978 = vst.msk [vmem:[%s3 + $0xc] sm:$0xf] %vm974, %v879
  %979 = vst.msk [vmem:[%s3 + $0x10] sm:$0xf] %vm974, %v880
  %980 = vst.msk [vmem:[%s3 + $0x14] sm:$0xf] %vm974, %v881
  %981 = vst.msk [vmem:[%s3 + $0x18] sm:$0xf] %vm974, %v882
  %982 = vst.msk [vmem:[%s3 + $0x1c] sm:$0xf] %vm974, %v883
  %983 = vst.msk [vmem:[%s3 + $0x20] sm:$0xf] %vm974, %v884
  %984 = vst.msk [vmem:[%s3 + $0x24] sm:$0xf] %vm974, %v885
  %985 = vst.msk [vmem:[%s3 + $0x28] sm:$0xf] %vm974, %v886
  %986 = vst.msk [vmem:[%s3 + $0x2c] sm:$0xf] %vm974, %v887
  %987 = vst.msk [vmem:[%s3 + $0x30] sm:$0xf] %vm974, %v888
  %988 = vst.msk [vmem:[%s3 + $0x34] sm:$0xf] %vm974, %v889
  %989 = vst.msk [vmem:[%s3 + $0x38] sm:$0xf] %vm974, %v890
  %990 = vst.msk [vmem:[%s3 + $0x3c] sm:$0xf] %vm974, %v891
  %991 = vst.msk [vmem:[%s3 + $0x40] sm:$0xf] %vm974, %v892
  %992 = vst.msk [vmem:[%s3 + $0x44] sm:$0xf] %vm974, %v893
  %993 = vst.msk [vmem:[%s3 + $0x48] sm:$0xf] %vm974, %v894
  %994 = vst.msk [vmem:[%s3 + $0x4c] sm:$0xf] %vm974, %v895
  %995 = vst.msk [vmem:[%s3 + $0x50] sm:$0xf] %vm974, %v896
  %996 = vst.msk [vmem:[%s3 + $0x54] sm:$0xf] %vm974, %v897
  %997 = vst.msk [vmem:[%s3 + $0x58] sm:$0xf] %vm974, %v898
  %998 = vst.msk [vmem:[%s3 + $0x5c] sm:$0xf] %vm974, %v899
  %999 = vst.msk [vmem:[%s3 + $0x60] sm:$0xf] %vm974, %v900
  %1000 = vst.msk [vmem:[%s3 + $0x64] sm:$0xf] %vm974, %v901
  %1001 = vst.msk [vmem:[%s3 + $0x68] sm:$0xf] %vm974, %v902
  %1002 = vst.msk [vmem:[%s3 + $0x6c] sm:$0xf] %vm974, %v903
  %1003 = vst.msk [vmem:[%s3 + $0x70] sm:$0xf] %vm974, %v904
  %1004 = vst.msk [vmem:[%s3 + $0x74] sm:$0xf] %vm974, %v905
  %1005 = vst.msk [vmem:[%s3 + $0x78] sm:$0xf] %vm974, %v906
  %1006 = vst.msk [vmem:[%s3 + $0x7c] sm:$0xf] %vm974, %v907
  %1007 = vst.msk [vmem:[%s3 + $0x80] sm:$0xf] %vm974, %v908
  %1008 = vst.msk [vmem:[%s3 + $0x84] sm:$0xf] %vm974, %v909
  %1009 = vst.msk [vmem:[%s3 + $0x88] sm:$0xf] %vm974, %v910
  %1010 = vst.msk [vmem:[%s3 + $0x8c] sm:$0xf] %vm974, %v911
  %1011 = vst.msk [vmem:[%s3 + $0x90] sm:$0xf] %vm974, %v912
  %1012 = vst.msk [vmem:[%s3 + $0x94] sm:$0xf] %vm974, %v913
  %1013 = vst.msk [vmem:[%s3 + $0x98] sm:$0xf] %vm974, %v914
  %1014 = vst.msk [vmem:[%s3 + $0x9c] sm:$0xf] %vm974, %v915
  %1015 = vst.msk [vmem:[%s3 + $0xa0] sm:$0xf] %vm974, %v916
  %1016 = vst.msk [vmem:[%s3 + $0xa4] sm:$0xf] %vm974, %v917
  %1017 = vst.msk [vmem:[%s3 + $0xa8] sm:$0xf] %vm974, %v918
  %1018 = vst.msk [vmem:[%s3 + $0xac] sm:$0xf] %vm974, %v919
  %1019 = vst.msk [vmem:[%s3 + $0xb0] sm:$0xf] %vm974, %v920
  %1020 = vst.msk [vmem:[%s3 + $0xb4] sm:$0xf] %vm974, %v921
  %1021 = vst.msk [vmem:[%s3 + $0xb8] sm:$0xf] %vm974, %v922
  %1022 = vst.msk [vmem:[%s3 + $0xbc] sm:$0xf] %vm974, %v923
  %1023 = vst.msk [vmem:[%s3 + $0xc0] sm:$0xf] %vm974, %v924
  %1024 = vst.msk [vmem:[%s3 + $0xc4] sm:$0xf] %vm974, %v925
  %1025 = vst.msk [vmem:[%s3 + $0xc8] sm:$0xf] %vm974, %v926
  %1026 = vst.msk [vmem:[%s3 + $0xcc] sm:$0xf] %vm974, %v927
  %1027 = vst.msk [vmem:[%s3 + $0xd0] sm:$0xf] %vm974, %v928
  %1028 = vst.msk [vmem:[%s3 + $0xd4] sm:$0xf] %vm974, %v929
  %1029 = vst.msk [vmem:[%s3 + $0xd8] sm:$0xf] %vm974, %v930
  %1030 = vst.msk [vmem:[%s3 + $0xdc] sm:$0xf] %vm974, %v931
  %1031 = vst.msk [vmem:[%s3 + $0xe0] sm:$0xf] %vm974, %v932
  %1032 = vst.msk [vmem:[%s3 + $0xe4] sm:$0xf] %vm974, %v933
  %1033 = vst.msk [vmem:[%s3 + $0xe8] sm:$0xf] %vm974, %v934
  %1034 = vst.msk [vmem:[%s3 + $0xec] sm:$0xf] %vm974, %v935
  %1035 = vst.msk [vmem:[%s3 + $0xf0] sm:$0xf] %vm974, %v936
  %1036 = vst.msk [vmem:[%s3 + $0xf4] sm:$0xf] %vm974, %v937
  %1037 = vst.msk [vmem:[%s3 + $0xf8] sm:$0xf] %vm974, %v938
  %1038 = vst.msk [vmem:[%s3 + $0xfc] sm:$0xf] %vm974, %v939
  %1039 = vst.msk [vmem:[%s3 + $0x100] sm:$0xf] %vm974, %v940
  %1040 = vst.msk [vmem:[%s3 + $0x104] sm:$0xf] %vm974, %v941
  %1041 = vst.msk [vmem:[%s3 + $0x108] sm:$0xf] %vm974, %v942
  %1042 = vst.msk [vmem:[%s3 + $0x10c] sm:$0xf] %vm974, %v943
  %1043 = vst.msk [vmem:[%s3 + $0x110] sm:$0xf] %vm974, %v944
  %1044 = vst.msk [vmem:[%s3 + $0x114] sm:$0xf] %vm974, %v945
  %1045 = vst.msk [vmem:[%s3 + $0x118] sm:$0xf] %vm974, %v946
  %1046 = vst.msk [vmem:[%s3 + $0x11c] sm:$0xf] %vm974, %v947
  %1047 = vst.msk [vmem:[%s3 + $0x120] sm:$0xf] %vm974, %v948
  %1048 = vst.msk [vmem:[%s3 + $0x124] sm:$0xf] %vm974, %v949
  %1049 = vst.msk [vmem:[%s3 + $0x128] sm:$0xf] %vm974, %v950
  %1050 = vst.msk [vmem:[%s3 + $0x12c] sm:$0xf] %vm974, %v951
  %1051 = vst.msk [vmem:[%s3 + $0x130] sm:$0xf] %vm974, %v952
  %1052 = vst.msk [vmem:[%s3 + $0x134] sm:$0xf] %vm974, %v953
  %1053 = vst.msk [vmem:[%s3 + $0x138] sm:$0xf] %vm974, %v954
  %1054 = vst.msk [vmem:[%s3 + $0x13c] sm:$0xf] %vm974, %v955
  %1055 = vst.msk [vmem:[%s3 + $0x140] sm:$0xf] %vm974, %v956
  %1056 = vst.msk [vmem:[%s3 + $0x144] sm:$0xf] %vm974, %v957
  %1057 = vst.msk [vmem:[%s3 + $0x148] sm:$0xf] %vm974, %v958
  %1058 = vst.msk [vmem:[%s3 + $0x14c] sm:$0xf] %vm974, %v959
  %1059 = vst.msk [vmem:[%s3 + $0x150] sm:$0xf] %vm974, %v960
  %1060 = vst.msk [vmem:[%s3 + $0x154] sm:$0xf] %vm974, %v961
  %1061 = vst.msk [vmem:[%s3 + $0x158] sm:$0xf] %vm974, %v962
  %1062 = vst.msk [vmem:[%s3 + $0x15c] sm:$0xf] %vm974, %v963
  %1063 = vst.msk [vmem:[%s3 + $0x160] sm:$0xf] %vm974, %v964
  %1064 = vst.msk [vmem:[%s3 + $0x164] sm:$0xf] %vm974, %v965
  %1065 = vst.msk [vmem:[%s3 + $0x168] sm:$0xf] %vm974, %v966
  %1066 = vst.msk [vmem:[%s3 + $0x16c] sm:$0xf] %vm974, %v967
  %1067 = vst.msk [vmem:[%s3 + $0x170] sm:$0xf] %vm974, %v968
  %1068 = vst.msk [vmem:[%s3 + $0x174] sm:$0xf] %vm974, %v969
  %1069 = vst.msk [vmem:[%s3 + $0x178] sm:$0xf] %vm974, %v970
  %1070 = vst.msk [vmem:[%s3 + $0x17c] sm:$0xf] %vm974, %v971
  %1071 = vst.msk [vmem:[%s3 + $0x180] sm:$0xf] %vm974, %v972
  %1072 = vst.msk [vmem:[%s3 + $0x184] sm:$0xf] %vm974, %v973
  // Predicated region
  $region14: #{conv_pcida_forward.7} parent=0 // pred_check
    _
  $region15: #{conv_pcida_forward.7} parent=0 // pred_check_branch
    %1074 = sbr.rel (0) target = $region17
  $region16: #{conv_pcida_forward.7} parent=0 // pred_region
    _
  $region17: #{conv_pcida_forward.7} parent=0 // pred_fallthru
    _
  // Predicated region
  $region18: #{conv_pcida_forward.7} parent=0 // pred_check
    _
  $region19: #{conv_pcida_forward.7} parent=0 // pred_check_branch
    %1076 = sbr.rel (0) target = $region21
  $region20: #{conv_pcida_forward.7} parent=0 // pred_region
    _
  $region21: #{conv_pcida_forward.7} parent=0 // pred_fallthru
    _

// kernel: conv_pcida_forward.8
$region0: #{conv_pcida_forward.8}
  #allocation0 [shape = 'u32[]', space=smem, size = 0x4, offset = 0x4, fixed_abs, tag = 'smem constant byte address 0x4 - core index']
  #allocation1 [shape = 'u32[72,128]{1,0:T(1,128)}', space=vmem, size = 0x9000, scoped, tag = 'internal scratch']
  %s0 = inlined_call_operand.vmem [shape: bf16[196,288], index: 0, kind: input, shape index: {}]
  %s1 = inlined_call_operand.vmem [shape: bf16[288,32], index: 1, kind: input, shape index: {}]
  %s2 = inlined_call_operand.vmem [shape: f32[1,32], index: 2, kind: input, shape index: {}]
  %s3 = inlined_call_operand.vmem [shape: bf16[196,32], index: 3, kind: output, shape index: {}]
  %s4 = sld [smem:[#allocation0]]
  $region22: #{conv_pcida_forward.8} parent=0
    _
  %s6 = ssub.s32 1, %s4
  %s7 = scalar_select 0, %s6, %s4
  // Predicated region
  $region2: #{conv_pcida_forward.8} parent=0 // pred_check
    _
  $region3: #{conv_pcida_forward.8} parent=0 // pred_check_branch
    %9 = sbr.rel (0) target = $region5
  $region4: #{conv_pcida_forward.8} parent=0 // pred_region
    _
  $region5: #{conv_pcida_forward.8} parent=0 // pred_fallthru
    _
  // Predicated region
  $region6: #{conv_pcida_forward.8} parent=0 // pred_check
    _
  $region7: #{conv_pcida_forward.8} parent=0 // pred_check_branch
    %11 = sbr.rel (0) target = $region9
  $region8: #{conv_pcida_forward.8} parent=0 // pred_region
    _
  $region9: #{conv_pcida_forward.8} parent=0 // pred_fallthru
    _
  // Predicated region
  $region10: #{conv_pcida_forward.8} parent=0 // pred_check
    _
  $region11: #{conv_pcida_forward.8} parent=0 // pred_check_branch
    %13 = sbr.rel (0) target = $region13
  $region12: #{conv_pcida_forward.8} parent=0 // pred_region
    _
  $region13: #{conv_pcida_forward.8} parent=0 // pred_fallthru
    _
  %v15 = vld [vmem:[%s0] sm:$0xff]
  %v16 = vld [vmem:[%s0 + $0x8] sm:$0xf]
  %v17 = vld [vmem:[%s0 + $0xc] sm:$0xff]
  %v18 = vld [vmem:[%s0 + $0x14] sm:$0xf]
  %v19 = vld [vmem:[%s0 + $0x18] sm:$0xff]
  %v20 = vld [vmem:[%s0 + $0x20] sm:$0xf]
  %v21 = vld [vmem:[%s0 + $0x24] sm:$0xff]
  %v22 = vld [vmem:[%s0 + $0x2c] sm:$0xf]
  %v23 = vld [vmem:[%s0 + $0x30] sm:$0xff]
  %v24 = vld [vmem:[%s0 + $0x38] sm:$0xf]
  %v25 = vld [vmem:[%s0 + $0x3c] sm:$0xff]
  %v26 = vld [vmem:[%s0 + $0x44] sm:$0xf]
  %v27 = vld [vmem:[%s0 + $0x48] sm:$0xff]
  %v28 = vld [vmem:[%s0 + $0x50] sm:$0xf]
  %v29 = vld [vmem:[%s0 + $0x54] sm:$0xff]
  %v30 = vld [vmem:[%s0 + $0x5c] sm:$0xf]
  %v31 = vld [vmem:[%s0 + $0x60] sm:$0xff]
  %v32 = vld [vmem:[%s0 + $0x68] sm:$0xf]
  %v33 = vld [vmem:[%s0 + $0x6c] sm:$0xff]
  %v34 = vld [vmem:[%s0 + $0x74] sm:$0xf]
  %v35 = vld [vmem:[%s0 + $0x78] sm:$0xff]
  %v36 = vld [vmem:[%s0 + $0x80] sm:$0xf]
  %v37 = vld [vmem:[%s0 + $0x84] sm:$0xff]
  %v38 = vld [vmem:[%s0 + $0x8c] sm:$0xf]
  %v39 = vld [vmem:[%s0 + $0x90] sm:$0xff]
  %v40 = vld [vmem:[%s0 + $0x98] sm:$0xf]
  %v41 = vld [vmem:[%s0 + $0x9c] sm:$0xff]
  %v42 = vld [vmem:[%s0 + $0xa4] sm:$0xf]
  %v43 = vld [vmem:[%s0 + $0xa8] sm:$0xff]
  %v44 = vld [vmem:[%s0 + $0xb0] sm:$0xf]
  %v45 = vld [vmem:[%s0 + $0xb4] sm:$0xff]
  %v46 = vld [vmem:[%s0 + $0xbc] sm:$0xf]
  %v47 = vld [vmem:[%s0 + $0xc0] sm:$0xff]
  %v48 = vld [vmem:[%s0 + $0xc8] sm:$0xf]
  %v49 = vld [vmem:[%s0 + $0xcc] sm:$0xff]
  %v50 = vld [vmem:[%s0 + $0xd4] sm:$0xf]
  %v51 = vld [vmem:[%s0 + $0xd8] sm:$0xff]
  %v52 = vld [vmem:[%s0 + $0xe0] sm:$0xf]
  %v53 = vld [vmem:[%s0 + $0xe4] sm:$0xff]
  %v54 = vld [vmem:[%s0 + $0xec] sm:$0xf]
  %v55 = vld [vmem:[%s0 + $0xf0] sm:$0xff]
  %v56 = vld [vmem:[%s0 + $0xf8] sm:$0xf]
  %v57 = vld [vmem:[%s0 + $0xfc] sm:$0xff]
  %v58 = vld [vmem:[%s0 + $0x104] sm:$0xf]
  %v59 = vld [vmem:[%s0 + $0x108] sm:$0xff]
  %v60 = vld [vmem:[%s0 + $0x110] sm:$0xf]
  %v61 = vld [vmem:[%s0 + $0x114] sm:$0xff]
  %v62 = vld [vmem:[%s0 + $0x11c] sm:$0xf]
  %v63 = vld [vmem:[%s0 + $0x120] sm:$0x33]
  %v64 = vld [vmem:[%s0 + $0x128] sm:$0x3]
  %v65 = vld [vmem:[%s1] sm:$0xf]
  %v66 = vld [vmem:[%s1 + $0x4] sm:$0xf]
  %v67 = vld [vmem:[%s1 + $0x8] sm:$0xf]
  %v68 = vld [vmem:[%s1 + $0xc] sm:$0xf]
  %v69 = vld [vmem:[%s1 + $0x10] sm:$0xf]
  %v70 = vld [vmem:[%s1 + $0x14] sm:$0xf]
  %v71 = vld [vmem:[%s1 + $0x18] sm:$0xf]
  %v72 = vld [vmem:[%s1 + $0x1c] sm:$0xf]
  %v73 = vld [vmem:[%s1 + $0x20] sm:$0xf]
  %v74 = vld [vmem:[%s1 + $0x24] sm:$0xf]
  %v75 = vld [vmem:[%s1 + $0x28] sm:$0xf]
  %v76 = vld [vmem:[%s1 + $0x2c] sm:$0xf]
  %v77 = vld [vmem:[%s1 + $0x30] sm:$0xf]
  %v78 = vld [vmem:[%s1 + $0x34] sm:$0xf]
  %v79 = vld [vmem:[%s1 + $0x38] sm:$0xf]
  %v80 = vld [vmem:[%s1 + $0x3c] sm:$0xf]
  %v81 = vld [vmem:[%s1 + $0x40] sm:$0xf]
  %v82 = vld [vmem:[%s1 + $0x44] sm:$0xf]
  %v83 = vld [vmem:[%s1 + $0x48] sm:$0xf]
  %v84 = vld [vmem:[%s1 + $0x4c] sm:$0xf]
  %v85 = vld [vmem:[%s1 + $0x50] sm:$0xf]
  %v86 = vld [vmem:[%s1 + $0x54] sm:$0xf]
  %v87 = vld [vmem:[%s1 + $0x58] sm:$0xf]
  %v88 = vld [vmem:[%s1 + $0x5c] sm:$0xf]
  %v89 = vld [vmem:[%s1 + $0x60] sm:$0xf]
  %v90 = vld [vmem:[%s1 + $0x64] sm:$0xf]
  %v91 = vld [vmem:[%s1 + $0x68] sm:$0xf]
  %v92 = vld [vmem:[%s1 + $0x6c] sm:$0xf]
  %v93 = vld [vmem:[%s1 + $0x70] sm:$0xf]
  %v94 = vld [vmem:[%s1 + $0x74] sm:$0xf]
  %v95 = vld [vmem:[%s1 + $0x78] sm:$0xf]
  %v96 = vld [vmem:[%s1 + $0x7c] sm:$0xf]
  %v97 = vld [vmem:[%s1 + $0x80] sm:$0xf]
  %v98 = vld [vmem:[%s1 + $0x84] sm:$0xf]
  %v99 = vld [vmem:[%s1 + $0x88] sm:$0xf]
  %v100 = vld [vmem:[%s1 + $0x8c] sm:$0xf]
  %v101 = vld [vmem:[%s2] sm:$0x1]
  %v103 = vperm.slane %v101, 0
  %v155 = vunpack.c.l.b16 %v15
  %v156 = vunpack.c.h.b16 %v15
  %v157 = vunpack.c.l.b16 %v16
  %v158 = vunpack.c.l.b16 %v17
  %v159 = vunpack.c.h.b16 %v17
  %v160 = vunpack.c.l.b16 %v18
  %v161 = vunpack.c.l.b16 %v19
  %v162 = vunpack.c.h.b16 %v19
  %v163 = vunpack.c.l.b16 %v20
  %v164 = vunpack.c.l.b16 %v21
  %v165 = vunpack.c.h.b16 %v21
  %v166 = vunpack.c.l.b16 %v22
  %v167 = vunpack.c.l.b16 %v23
  %v168 = vunpack.c.h.b16 %v23
  %v169 = vunpack.c.l.b16 %v24
  %v170 = vunpack.c.l.b16 %v25
  %v171 = vunpack.c.h.b16 %v25
  %v172 = vunpack.c.l.b16 %v26
  %v173 = vunpack.c.l.b16 %v27
  %v174 = vunpack.c.h.b16 %v27
  %v175 = vunpack.c.l.b16 %v28
  %v176 = vunpack.c.l.b16 %v29
  %v177 = vunpack.c.h.b16 %v29
  %v178 = vunpack.c.l.b16 %v30
  %v179 = vunpack.c.l.b16 %v31
  %v180 = vunpack.c.h.b16 %v31
  %v181 = vunpack.c.l.b16 %v32
  %v182 = vunpack.c.l.b16 %v33
  %v183 = vunpack.c.h.b16 %v33
  %v184 = vunpack.c.l.b16 %v34
  %v185 = vunpack.c.l.b16 %v35
  %v186 = vunpack.c.h.b16 %v35
  %v187 = vunpack.c.l.b16 %v36
  %v188 = vunpack.c.l.b16 %v37
  %v189 = vunpack.c.h.b16 %v37
  %v190 = vunpack.c.l.b16 %v38
  %v191 = vunpack.c.l.b16 %v39
  %v192 = vunpack.c.h.b16 %v39
  %v193 = vunpack.c.l.b16 %v40
  %v194 = vunpack.c.l.b16 %v41
  %v195 = vunpack.c.h.b16 %v41
  %v196 = vunpack.c.l.b16 %v42
  %v197 = vunpack.c.l.b16 %v43
  %v198 = vunpack.c.h.b16 %v43
  %v199 = vunpack.c.l.b16 %v44
  %v200 = vunpack.c.l.b16 %v45
  %v201 = vunpack.c.h.b16 %v45
  %v202 = vunpack.c.l.b16 %v46
  %v203 = vunpack.c.l.b16 %v47
  %v204 = vunpack.c.h.b16 %v47
  %v205 = vunpack.c.l.b16 %v48
  %v206 = vunpack.c.l.b16 %v49
  %v207 = vunpack.c.h.b16 %v49
  %v208 = vunpack.c.l.b16 %v50
  %v209 = vunpack.c.l.b16 %v51
  %v210 = vunpack.c.h.b16 %v51
  %v211 = vunpack.c.l.b16 %v52
  %v212 = vunpack.c.l.b16 %v53
  %v213 = vunpack.c.h.b16 %v53
  %v214 = vunpack.c.l.b16 %v54
  %v215 = vunpack.c.l.b16 %v55
  %v216 = vunpack.c.h.b16 %v55
  %v217 = vunpack.c.l.b16 %v56
  %v218 = vunpack.c.l.b16 %v57
  %v219 = vunpack.c.h.b16 %v57
  %v220 = vunpack.c.l.b16 %v58
  %v221 = vunpack.c.l.b16 %v59
  %v222 = vunpack.c.h.b16 %v59
  %v223 = vunpack.c.l.b16 %v60
  %v224 = vunpack.c.l.b16 %v61
  %v225 = vunpack.c.h.b16 %v61
  %v226 = vunpack.c.l.b16 %v62
  %v227 = vunpack.c.l.b16 %v63
  %v228 = vunpack.c.h.b16 %v63
  %v229 = vunpack.c.l.b16 %v64
  %v230 = vpack.c.b16 %v158, %v155
  %v231 = vpack.c.b16 %v159, %v156
  %v232 = vpack.c.b16 %v160, %v157
  %v233 = vpack.c.b16 %v164, %v161
  %v234 = vpack.c.b16 %v165, %v162
  %v235 = vpack.c.b16 %v166, %v163
  %v236 = vpack.c.b16 %v170, %v167
  %v237 = vpack.c.b16 %v171, %v168
  %v238 = vpack.c.b16 %v172, %v169
  %v239 = vpack.c.b16 %v176, %v173
  %v240 = vpack.c.b16 %v177, %v174
  %v241 = vpack.c.b16 %v178, %v175
  %v242 = vpack.c.b16 %v182, %v179
  %v243 = vpack.c.b16 %v183, %v180
  %v244 = vpack.c.b16 %v184, %v181
  %v245 = vpack.c.b16 %v188, %v185
  %v246 = vpack.c.b16 %v189, %v186
  %v247 = vpack.c.b16 %v190, %v187
  %v248 = vpack.c.b16 %v194, %v191
  %v249 = vpack.c.b16 %v195, %v192
  %v250 = vpack.c.b16 %v196, %v193
  %v251 = vpack.c.b16 %v200, %v197
  %v252 = vpack.c.b16 %v201, %v198
  %v253 = vpack.c.b16 %v202, %v199
  %v254 = vpack.c.b16 %v206, %v203
  %v255 = vpack.c.b16 %v207, %v204
  %v256 = vpack.c.b16 %v208, %v205
  %v257 = vpack.c.b16 %v212, %v209
  %v258 = vpack.c.b16 %v213, %v210
  %v259 = vpack.c.b16 %v214, %v211
  %v260 = vpack.c.b16 %v218, %v215
  %v261 = vpack.c.b16 %v219, %v216
  %v262 = vpack.c.b16 %v220, %v217
  %v263 = vpack.c.b16 %v224, %v221
  %v264 = vpack.c.b16 %v225, %v222
  %v265 = vpack.c.b16 %v226, %v223
  %v266 = vpack.c.b16 %v227, %v227
  %v267 = vpack.c.b16 %v228, %v228
  %v268 = vpack.c.b16 %v229, %v229
  %v331 = vunpack.c.l.b16 %v65
  %v332 = vunpack.c.l.b16 %v66
  %v333 = vunpack.c.l.b16 %v67
  %v334 = vunpack.c.l.b16 %v68
  %v335 = vunpack.c.l.b16 %v69
  %v336 = vunpack.c.l.b16 %v70
  %v337 = vunpack.c.l.b16 %v71
  %v338 = vunpack.c.l.b16 %v72
  %v339 = vunpack.c.l.b16 %v73
  %v340 = vunpack.c.l.b16 %v74
  %v341 = vunpack.c.l.b16 %v75
  %v342 = vunpack.c.l.b16 %v76
  %v343 = vunpack.c.l.b16 %v77
  %v344 = vunpack.c.l.b16 %v78
  %v345 = vunpack.c.l.b16 %v79
  %v346 = vunpack.c.l.b16 %v80
  %v347 = vunpack.c.l.b16 %v81
  %v348 = vunpack.c.l.b16 %v82
  %v349 = vunpack.c.l.b16 %v83
  %v350 = vunpack.c.l.b16 %v84
  %v351 = vunpack.c.l.b16 %v85
  %v352 = vunpack.c.l.b16 %v86
  %v353 = vunpack.c.l.b16 %v87
  %v354 = vunpack.c.l.b16 %v88
  %v355 = vunpack.c.l.b16 %v89
  %v356 = vunpack.c.l.b16 %v90
  %v357 = vunpack.c.l.b16 %v91
  %v358 = vunpack.c.l.b16 %v92
  %v359 = vunpack.c.l.b16 %v93
  %v360 = vunpack.c.l.b16 %v94
  %v361 = vunpack.c.l.b16 %v95
  %v362 = vunpack.c.l.b16 %v96
  %v363 = vunpack.c.l.b16 %v97
  %v364 = vunpack.c.l.b16 %v98
  %v365 = vunpack.c.l.b16 %v99
  %v366 = vunpack.c.l.b16 %v100
  %v367 = vpack.c.b16 %v332, %v331
  %v368 = vpack.c.b16 %v334, %v333
  %v369 = vpack.c.b16 %v336, %v335
  %v370 = vpack.c.b16 %v338, %v337
  %v371 = vpack.c.b16 %v340, %v339
  %v372 = vpack.c.b16 %v342, %v341
  %v373 = vpack.c.b16 %v344, %v343
  %v374 = vpack.c.b16 %v346, %v345
  %v375 = vpack.c.b16 %v348, %v347
  %v376 = vpack.c.b16 %v350, %v349
  %v377 = vpack.c.b16 %v352, %v351
  %v378 = vpack.c.b16 %v354, %v353
  %v379 = vpack.c.b16 %v356, %v355
  %v380 = vpack.c.b16 %v358, %v357
  %v381 = vpack.c.b16 %v360, %v359
  %v382 = vpack.c.b16 %v362, %v361
  %v383 = vpack.c.b16 %v364, %v363
  %v384 = vpack.c.b16 %v366, %v365
  %vm403 = vcmask 261120
  %v405 = vsel %vm403, %v232, 0
  %v408 = vsel %vm403, %v235, 0
  %v411 = vsel %vm403, %v238, 0
  %v414 = vsel %vm403, %v241, 0
  %v417 = vsel %vm403, %v244, 0
  %v420 = vsel %vm403, %v247, 0
  %v423 = vsel %vm403, %v250, 0
  %v426 = vsel %vm403, %v253, 0
  %v429 = vsel %vm403, %v256, 0
  %v432 = vsel %vm403, %v259, 0
  %v435 = vsel %vm403, %v262, 0
  %v438 = vsel %vm403, %v265, 0
  %v441 = vsel %vm403, %v268, 0
  %443 = vmatpush.bf16.msra.mxu0 %v374
  %444 = vmatpush.bf16.msra.mxu0 %v373
  %445 = vmatpush.bf16.msra.mxu0 %v372
  %446 = vmatpush.bf16.msra.mxu0 %v371
  %447 = vmatpush.bf16.msra.mxu0 %v370
  %448 = vmatpush.bf16.msra.mxu0 %v369
  %449 = vmatpush.bf16.msra.mxu0 %v368
  %450 = vmatpush.bf16.msra.mxu0 %v367
  %451 = vmatmul.bf16.gmra.mxu0 %v230
  %v452 = vpop.f32.mrf.mxu0
  %v453 = vadd.f32 %v103, %v452
  %v454 = vpop.f32.mrf.mxu0
  %v455 = vadd.f32 %v103, %v454
  %456 = vmatmul.bf16.gmra.mxu0 %v233
  %v457 = vpop.f32.mrf.mxu0
  %v458 = vadd.f32 %v103, %v457
  %v459 = vpop.f32.mrf.mxu0
  %v460 = vadd.f32 %v103, %v459
  %461 = vmatmul.bf16.gmra.mxu0 %v236
  %v462 = vpop.f32.mrf.mxu0
  %v463 = vadd.f32 %v103, %v462
  %v464 = vpop.f32.mrf.mxu0
  %v465 = vadd.f32 %v103, %v464
  %466 = vmatmul.bf16.gmra.mxu0 %v239
  %v467 = vpop.f32.mrf.mxu0
  %v468 = vadd.f32 %v103, %v467
  %v469 = vpop.f32.mrf.mxu0
  %v470 = vadd.f32 %v103, %v469
  %471 = vmatmul.bf16.gmra.mxu0 %v242
  %v472 = vpop.f32.mrf.mxu0
  %v473 = vadd.f32 %v103, %v472
  %v474 = vpop.f32.mrf.mxu0
  %v475 = vadd.f32 %v103, %v474
  %476 = vmatmul.bf16.gmra.mxu0 %v245
  %v477 = vpop.f32.mrf.mxu0
  %v478 = vadd.f32 %v103, %v477
  %v479 = vpop.f32.mrf.mxu0
  %v480 = vadd.f32 %v103, %v479
  %481 = vmatmul.bf16.gmra.mxu0 %v248
  %v482 = vpop.f32.mrf.mxu0
  %v483 = vadd.f32 %v103, %v482
  %v484 = vpop.f32.mrf.mxu0
  %v485 = vadd.f32 %v103, %v484
  %486 = vmatmul.bf16.gmra.mxu0 %v251
  %v487 = vpop.f32.mrf.mxu0
  %v488 = vadd.f32 %v103, %v487
  %v489 = vpop.f32.mrf.mxu0
  %v490 = vadd.f32 %v103, %v489
  %491 = vmatmul.bf16.gmra.mxu0 %v254
  %v492 = vpop.f32.mrf.mxu0
  %v493 = vadd.f32 %v103, %v492
  %v494 = vpop.f32.mrf.mxu0
  %v495 = vadd.f32 %v103, %v494
  %496 = vmatmul.bf16.gmra.mxu0 %v257
  %v497 = vpop.f32.mrf.mxu0
  %v498 = vadd.f32 %v103, %v497
  %v499 = vpop.f32.mrf.mxu0
  %v500 = vadd.f32 %v103, %v499
  %501 = vmatmul.bf16.gmra.mxu0 %v260
  %v502 = vpop.f32.mrf.mxu0
  %v503 = vadd.f32 %v103, %v502
  %v504 = vpop.f32.mrf.mxu0
  %v505 = vadd.f32 %v103, %v504
  %506 = vmatmul.bf16.gmra.mxu0 %v263
  %v507 = vpop.f32.mrf.mxu0
  %v508 = vadd.f32 %v103, %v507
  %v509 = vpop.f32.mrf.mxu0
  %v510 = vadd.f32 %v103, %v509
  %511 = vmatmul.bf16.gmra.mxu0 %v266
  %v512 = vpop.f32.mrf.mxu0
  %v513 = vadd.f32 %v103, %v512
  %v514 = vpop.f32.mrf.mxu0
  %515 = vdwg.mxu0
  %516 = vmatpush.bf16.msra.mxu0 %v382
  %517 = vmatpush.bf16.msra.mxu0 %v381
  %518 = vmatpush.bf16.msra.mxu0 %v380
  %519 = vmatpush.bf16.msra.mxu0 %v379
  %520 = vmatpush.bf16.msra.mxu0 %v378
  %521 = vmatpush.bf16.msra.mxu0 %v377
  %522 = vmatpush.bf16.msra.mxu0 %v376
  %523 = vmatpush.bf16.msra.mxu0 %v375
  %524 = vmatmul.bf16.gmra.mxu0 %v231
  %v525 = vpop.f32.mrf.mxu0
  %v526 = vadd.f32 %v453, %v525
  %v527 = vpop.f32.mrf.mxu0
  %v528 = vadd.f32 %v455, %v527
  %529 = vmatmul.bf16.gmra.mxu0 %v234
  %v530 = vpop.f32.mrf.mxu0
  %v531 = vadd.f32 %v458, %v530
  %v532 = vpop.f32.mrf.mxu0
  %v533 = vadd.f32 %v460, %v532
  %534 = vmatmul.bf16.gmra.mxu0 %v237
  %v535 = vpop.f32.mrf.mxu0
  %v536 = vadd.f32 %v463, %v535
  %v537 = vpop.f32.mrf.mxu0
  %v538 = vadd.f32 %v465, %v537
  %539 = vmatmul.bf16.gmra.mxu0 %v240
  %v540 = vpop.f32.mrf.mxu0
  %v541 = vadd.f32 %v468, %v540
  %v542 = vpop.f32.mrf.mxu0
  %v543 = vadd.f32 %v470, %v542
  %544 = vmatmul.bf16.gmra.mxu0 %v243
  %v545 = vpop.f32.mrf.mxu0
  %v546 = vadd.f32 %v473, %v545
  %v547 = vpop.f32.mrf.mxu0
  %v548 = vadd.f32 %v475, %v547
  %549 = vmatmul.bf16.gmra.mxu0 %v246
  %v550 = vpop.f32.mrf.mxu0
  %v551 = vadd.f32 %v478, %v550
  %v552 = vpop.f32.mrf.mxu0
  %v553 = vadd.f32 %v480, %v552
  %554 = vmatmul.bf16.gmra.mxu0 %v249
  %v555 = vpop.f32.mrf.mxu0
  %v556 = vadd.f32 %v483, %v555
  %v557 = vpop.f32.mrf.mxu0
  %v558 = vadd.f32 %v485, %v557
  %559 = vmatmul.bf16.gmra.mxu0 %v252
  %v560 = vpop.f32.mrf.mxu0
  %v561 = vadd.f32 %v488, %v560
  %v562 = vpop.f32.mrf.mxu0
  %v563 = vadd.f32 %v490, %v562
  %564 = vmatmul.bf16.gmra.mxu0 %v255
  %v565 = vpop.f32.mrf.mxu0
  %v566 = vadd.f32 %v493, %v565
  %v567 = vpop.f32.mrf.mxu0
  %v568 = vadd.f32 %v495, %v567
  %569 = vmatmul.bf16.gmra.mxu0 %v258
  %v570 = vpop.f32.mrf.mxu0
  %v571 = vadd.f32 %v498, %v570
  %v572 = vpop.f32.mrf.mxu0
  %v573 = vadd.f32 %v500, %v572
  %574 = vmatmul.bf16.gmra.mxu0 %v261
  %v575 = vpop.f32.mrf.mxu0
  %v576 = vadd.f32 %v503, %v575
  %v577 = vpop.f32.mrf.mxu0
  %v578 = vadd.f32 %v505, %v577
  %579 = vmatmul.bf16.gmra.mxu0 %v264
  %v580 = vpop.f32.mrf.mxu0
  %v581 = vadd.f32 %v508, %v580
  %v582 = vpop.f32.mrf.mxu0
  %v583 = vadd.f32 %v510, %v582
  %584 = vmatmul.bf16.gmra.mxu0 %v267
  %v585 = vpop.f32.mrf.mxu0
  %v586 = vadd.f32 %v513, %v585
  %v587 = vpop.f32.mrf.mxu0
  %588 = vdwg.mxu0
  %589 = vmatpush.bf16.msra.mxu0 0
  %590 = vmatpush.bf16.msra.mxu0 0
  %591 = vmatpush.bf16.msra.mxu0 0
  %592 = vmatpush.bf16.msra.mxu0 0
  %593 = vmatpush.bf16.msra.mxu0 0
  %594 = vmatpush.bf16.msra.mxu0 0
  %595 = vmatpush.bf16.msra.mxu0 %v384
  %596 = vmatpush.bf16.msra.mxu0 %v383
  %597 = vmatmul.bf16.gmra.mxu0 %v405
  %v598 = vpop.f32.mrf.mxu0
  %v599 = vadd.f32 %v526, %v598
  %v600 = vpop.f32.mrf.mxu0
  %v601 = vadd.f32 %v528, %v600
  %602 = vmatmul.bf16.gmra.mxu0 %v408
  %v603 = vpop.f32.mrf.mxu0
  %v604 = vadd.f32 %v531, %v603
  %v605 = vpop.f32.mrf.mxu0
  %v606 = vadd.f32 %v533, %v605
  %607 = vmatmul.bf16.gmra.mxu0 %v411
  %v608 = vpop.f32.mrf.mxu0
  %v609 = vadd.f32 %v536, %v608
  %v610 = vpop.f32.mrf.mxu0
  %v611 = vadd.f32 %v538, %v610
  %612 = vmatmul.bf16.gmra.mxu0 %v414
  %v613 = vpop.f32.mrf.mxu0
  %v614 = vadd.f32 %v541, %v613
  %v615 = vpop.f32.mrf.mxu0
  %v616 = vadd.f32 %v543, %v615
  %617 = vmatmul.bf16.gmra.mxu0 %v417
  %v618 = vpop.f32.mrf.mxu0
  %v619 = vadd.f32 %v546, %v618
  %v620 = vpop.f32.mrf.mxu0
  %v621 = vadd.f32 %v548, %v620
  %622 = vmatmul.bf16.gmra.mxu0 %v420
  %v623 = vpop.f32.mrf.mxu0
  %v624 = vadd.f32 %v551, %v623
  %v625 = vpop.f32.mrf.mxu0
  %v626 = vadd.f32 %v553, %v625
  %627 = vmatmul.bf16.gmra.mxu0 %v423
  %v628 = vpop.f32.mrf.mxu0
  %v629 = vadd.f32 %v556, %v628
  %v630 = vpop.f32.mrf.mxu0
  %v631 = vadd.f32 %v558, %v630
  %632 = vmatmul.bf16.gmra.mxu0 %v426
  %v633 = vpop.f32.mrf.mxu0
  %v634 = vadd.f32 %v561, %v633
  %v635 = vpop.f32.mrf.mxu0
  %v636 = vadd.f32 %v563, %v635
  %637 = vmatmul.bf16.gmra.mxu0 %v429
  %v638 = vpop.f32.mrf.mxu0
  %v639 = vadd.f32 %v566, %v638
  %v640 = vpop.f32.mrf.mxu0
  %v641 = vadd.f32 %v568, %v640
  %642 = vmatmul.bf16.gmra.mxu0 %v432
  %v643 = vpop.f32.mrf.mxu0
  %v644 = vadd.f32 %v571, %v643
  %v645 = vpop.f32.mrf.mxu0
  %v646 = vadd.f32 %v573, %v645
  %647 = vmatmul.bf16.gmra.mxu0 %v435
  %v648 = vpop.f32.mrf.mxu0
  %v649 = vadd.f32 %v576, %v648
  %v650 = vpop.f32.mrf.mxu0
  %v651 = vadd.f32 %v578, %v650
  %652 = vmatmul.bf16.gmra.mxu0 %v438
  %v653 = vpop.f32.mrf.mxu0
  %v654 = vadd.f32 %v581, %v653
  %v655 = vpop.f32.mrf.mxu0
  %v656 = vadd.f32 %v583, %v655
  %657 = vmatmul.bf16.gmra.mxu0 %v441
  %v658 = vpop.f32.mrf.mxu0
  %v659 = vadd.f32 %v586, %v658
  %v660 = vpop.f32.mrf.mxu0
  %661 = vdwg.mxu0
  %v662 = vmax.f32 %v599, 0.0
  %v663 = vmax.f32 %v601, 0.0
  %v664 = vmax.f32 %v604, 0.0
  %v665 = vmax.f32 %v606, 0.0
  %v666 = vmax.f32 %v609, 0.0
  %v667 = vmax.f32 %v611, 0.0
  %v668 = vmax.f32 %v614, 0.0
  %v669 = vmax.f32 %v616, 0.0
  %v670 = vmax.f32 %v619, 0.0
  %v671 = vmax.f32 %v621, 0.0
  %v672 = vmax.f32 %v624, 0.0
  %v673 = vmax.f32 %v626, 0.0
  %v674 = vmax.f32 %v629, 0.0
  %v675 = vmax.f32 %v631, 0.0
  %v676 = vmax.f32 %v634, 0.0
  %v677 = vmax.f32 %v636, 0.0
  %v678 = vmax.f32 %v639, 0.0
  %v679 = vmax.f32 %v641, 0.0
  %v680 = vmax.f32 %v644, 0.0
  %v681 = vmax.f32 %v646, 0.0
  %v682 = vmax.f32 %v649, 0.0
  %v683 = vmax.f32 %v651, 0.0
  %v684 = vmax.f32 %v654, 0.0
  %v685 = vmax.f32 %v656, 0.0
  %v686 = vmax.f32 %v659, 0.0
  %v687 = vpack.c.bf16 %v662, %v662
  %v688 = vpack.c.bf16 %v663, %v663
  %v689 = vpack.c.bf16 %v664, %v664
  %v690 = vpack.c.bf16 %v665, %v665
  %v691 = vpack.c.bf16 %v666, %v666
  %v692 = vpack.c.bf16 %v667, %v667
  %v693 = vpack.c.bf16 %v668, %v668
  %v694 = vpack.c.bf16 %v669, %v669
  %v695 = vpack.c.bf16 %v670, %v670
  %v696 = vpack.c.bf16 %v671, %v671
  %v697 = vpack.c.bf16 %v672, %v672
  %v698 = vpack.c.bf16 %v673, %v673
  %v699 = vpack.c.bf16 %v674, %v674
  %v700 = vpack.c.bf16 %v675, %v675
  %v701 = vpack.c.bf16 %v676, %v676
  %v702 = vpack.c.bf16 %v677, %v677
  %v703 = vpack.c.bf16 %v678, %v678
  %v704 = vpack.c.bf16 %v679, %v679
  %v705 = vpack.c.bf16 %v680, %v680
  %v706 = vpack.c.bf16 %v681, %v681
  %v707 = vpack.c.bf16 %v682, %v682
  %v708 = vpack.c.bf16 %v683, %v683
  %v709 = vpack.c.bf16 %v684, %v684
  %v710 = vpack.c.bf16 %v685, %v685
  %v711 = vpack.c.bf16 %v686, %v686
  %vm712 = vcmask 257024
  %713 = vst.msk [vmem:[%s3] sm:$0xf] %vm712, %v687
  %714 = vst.msk [vmem:[%s3 + $0x4] sm:$0xf] %vm712, %v688
  %715 = vst.msk [vmem:[%s3 + $0x8] sm:$0xf] %vm712, %v689
  %716 = vst.msk [vmem:[%s3 + $0xc] sm:$0xf] %vm712, %v690
  %717 = vst.msk [vmem:[%s3 + $0x10] sm:$0xf] %vm712, %v691
  %718 = vst.msk [vmem:[%s3 + $0x14] sm:$0xf] %vm712, %v692
  %719 = vst.msk [vmem:[%s3 + $0x18] sm:$0xf] %vm712, %v693
  %720 = vst.msk [vmem:[%s3 + $0x1c] sm:$0xf] %vm712, %v694
  %721 = vst.msk [vmem:[%s3 + $0x20] sm:$0xf] %vm712, %v695
  %722 = vst.msk [vmem:[%s3 + $0x24] sm:$0xf] %vm712, %v696
  %723 = vst.msk [vmem:[%s3 + $0x28] sm:$0xf] %vm712, %v697
  %724 = vst.msk [vmem:[%s3 + $0x2c] sm:$0xf] %vm712, %v698
  %725 = vst.msk [vmem:[%s3 + $0x30] sm:$0xf] %vm712, %v699
  %726 = vst.msk [vmem:[%s3 + $0x34] sm:$0xf] %vm712, %v700
  %727 = vst.msk [vmem:[%s3 + $0x38] sm:$0xf] %vm712, %v701
  %728 = vst.msk [vmem:[%s3 + $0x3c] sm:$0xf] %vm712, %v702
  %729 = vst.msk [vmem:[%s3 + $0x40] sm:$0xf] %vm712, %v703
  %730 = vst.msk [vmem:[%s3 + $0x44] sm:$0xf] %vm712, %v704
  %731 = vst.msk [vmem:[%s3 + $0x48] sm:$0xf] %vm712, %v705
  %732 = vst.msk [vmem:[%s3 + $0x4c] sm:$0xf] %vm712, %v706
  %733 = vst.msk [vmem:[%s3 + $0x50] sm:$0xf] %vm712, %v707
  %734 = vst.msk [vmem:[%s3 + $0x54] sm:$0xf] %vm712, %v708
  %735 = vst.msk [vmem:[%s3 + $0x58] sm:$0xf] %vm712, %v709
  %736 = vst.msk [vmem:[%s3 + $0x5c] sm:$0xf] %vm712, %v710
  %vm737 = vcmask 254976
  %738 = vst.msk [vmem:[%s3 + $0x60] sm:$0x3] %vm737, %v711
  // Predicated region
  $region14: #{conv_pcida_forward.8} parent=0 // pred_check
    _
  $region15: #{conv_pcida_forward.8} parent=0 // pred_check_branch
    %740 = sbr.rel (0) target = $region17
  $region16: #{conv_pcida_forward.8} parent=0 // pred_region
    _
  $region17: #{conv_pcida_forward.8} parent=0 // pred_fallthru
    _
  // Predicated region
  $region18: #{conv_pcida_forward.8} parent=0 // pred_check
    _
  $region19: #{conv_pcida_forward.8} parent=0 // pred_check_branch
    %742 = sbr.rel (0) target = $region21
  $region20: #{conv_pcida_forward.8} parent=0 // pred_region
    _
  $region21: #{conv_pcida_forward.8} parent=0 // pred_fallthru
    _

// kernel: conv_pcida_forward.9
$region0: #{conv_pcida_forward.9}
  #allocation0 [shape = 'u32[]', space=smem, size = 0x4, offset = 0x4, fixed_abs, tag = 'smem constant byte address 0x4 - core index']
  #allocation1 [shape = 'u32[72,128]{1,0:T(1,128)}', space=vmem, size = 0x9000, scoped, tag = 'internal scratch']
  %s0 = inlined_call_operand.vmem [shape: bf16[64,288], index: 0, kind: input, shape index: {}]
  %s1 = inlined_call_operand.vmem [shape: bf16[288,32], index: 1, kind: input, shape index: {}]
  %s2 = inlined_call_operand.vmem [shape: f32[1,32], index: 2, kind: input, shape index: {}]
  %s3 = inlined_call_operand.vmem [shape: bf16[64,32], index: 3, kind: output, shape index: {}]
  %s4 = sld [smem:[#allocation0]]
  $region22: #{conv_pcida_forward.9} parent=0
    _
  %s6 = ssub.s32 1, %s4
  %s7 = scalar_select 0, %s6, %s4
  // Predicated region
  $region2: #{conv_pcida_forward.9} parent=0 // pred_check
    _
  $region3: #{conv_pcida_forward.9} parent=0 // pred_check_branch
    %9 = sbr.rel (0) target = $region5
  $region4: #{conv_pcida_forward.9} parent=0 // pred_region
    _
  $region5: #{conv_pcida_forward.9} parent=0 // pred_fallthru
    _
  // Predicated region
  $region6: #{conv_pcida_forward.9} parent=0 // pred_check
    _
  $region7: #{conv_pcida_forward.9} parent=0 // pred_check_branch
    %11 = sbr.rel (0) target = $region9
  $region8: #{conv_pcida_forward.9} parent=0 // pred_region
    _
  $region9: #{conv_pcida_forward.9} parent=0 // pred_fallthru
    _
  // Predicated region
  $region10: #{conv_pcida_forward.9} parent=0 // pred_check
    _
  $region11: #{conv_pcida_forward.9} parent=0 // pred_check_branch
    %13 = sbr.rel (0) target = $region13
  $region12: #{conv_pcida_forward.9} parent=0 // pred_region
    _
  $region13: #{conv_pcida_forward.9} parent=0 // pred_fallthru
    _
  %v15 = vld [vmem:[%s0] sm:$0xff]
  %v16 = vld [vmem:[%s0 + $0x8] sm:$0xf]
  %v17 = vld [vmem:[%s0 + $0xc] sm:$0xff]
  %v18 = vld [vmem:[%s0 + $0x14] sm:$0xf]
  %v19 = vld [vmem:[%s0 + $0x18] sm:$0xff]
  %v20 = vld [vmem:[%s0 + $0x20] sm:$0xf]
  %v21 = vld [vmem:[%s0 + $0x24] sm:$0xff]
  %v22 = vld [vmem:[%s0 + $0x2c] sm:$0xf]
  %v23 = vld [vmem:[%s0 + $0x30] sm:$0xff]
  %v24 = vld [vmem:[%s0 + $0x38] sm:$0xf]
  %v25 = vld [vmem:[%s0 + $0x3c] sm:$0xff]
  %v26 = vld [vmem:[%s0 + $0x44] sm:$0xf]
  %v27 = vld [vmem:[%s0 + $0x48] sm:$0xff]
  %v28 = vld [vmem:[%s0 + $0x50] sm:$0xf]
  %v29 = vld [vmem:[%s0 + $0x54] sm:$0xff]
  %v30 = vld [vmem:[%s0 + $0x5c] sm:$0xf]
  %v31 = vld [vmem:[%s1] sm:$0xf]
  %v32 = vld [vmem:[%s1 + $0x4] sm:$0xf]
  %v33 = vld [vmem:[%s1 + $0x8] sm:$0xf]
  %v34 = vld [vmem:[%s1 + $0xc] sm:$0xf]
  %v35 = vld [vmem:[%s1 + $0x10] sm:$0xf]
  %v36 = vld [vmem:[%s1 + $0x14] sm:$0xf]
  %v37 = vld [vmem:[%s1 + $0x18] sm:$0xf]
  %v38 = vld [vmem:[%s1 + $0x1c] sm:$0xf]
  %v39 = vld [vmem:[%s1 + $0x20] sm:$0xf]
  %v40 = vld [vmem:[%s1 + $0x24] sm:$0xf]
  %v41 = vld [vmem:[%s1 + $0x28] sm:$0xf]
  %v42 = vld [vmem:[%s1 + $0x2c] sm:$0xf]
  %v43 = vld [vmem:[%s1 + $0x30] sm:$0xf]
  %v44 = vld [vmem:[%s1 + $0x34] sm:$0xf]
  %v45 = vld [vmem:[%s1 + $0x38] sm:$0xf]
  %v46 = vld [vmem:[%s1 + $0x3c] sm:$0xf]
  %v47 = vld [vmem:[%s1 + $0x40] sm:$0xf]
  %v48 = vld [vmem:[%s1 + $0x44] sm:$0xf]
  %v49 = vld [vmem:[%s1 + $0x48] sm:$0xf]
  %v50 = vld [vmem:[%s1 + $0x4c] sm:$0xf]
  %v51 = vld [vmem:[%s1 + $0x50] sm:$0xf]
  %v52 = vld [vmem:[%s1 + $0x54] sm:$0xf]
  %v53 = vld [vmem:[%s1 + $0x58] sm:$0xf]
  %v54 = vld [vmem:[%s1 + $0x5c] sm:$0xf]
  %v55 = vld [vmem:[%s1 + $0x60] sm:$0xf]
  %v56 = vld [vmem:[%s1 + $0x64] sm:$0xf]
  %v57 = vld [vmem:[%s1 + $0x68] sm:$0xf]
  %v58 = vld [vmem:[%s1 + $0x6c] sm:$0xf]
  %v59 = vld [vmem:[%s1 + $0x70] sm:$0xf]
  %v60 = vld [vmem:[%s1 + $0x74] sm:$0xf]
  %v61 = vld [vmem:[%s1 + $0x78] sm:$0xf]
  %v62 = vld [vmem:[%s1 + $0x7c] sm:$0xf]
  %v63 = vld [vmem:[%s1 + $0x80] sm:$0xf]
  %v64 = vld [vmem:[%s1 + $0x84] sm:$0xf]
  %v65 = vld [vmem:[%s1 + $0x88] sm:$0xf]
  %v66 = vld [vmem:[%s1 + $0x8c] sm:$0xf]
  %v67 = vld [vmem:[%s2] sm:$0x1]
  %v69 = vperm.slane %v67, 0
  %v87 = vunpack.c.l.b16 %v15
  %v88 = vunpack.c.h.b16 %v15
  %v89 = vunpack.c.l.b16 %v16
  %v90 = vunpack.c.l.b16 %v17
  %v91 = vunpack.c.h.b16 %v17
  %v92 = vunpack.c.l.b16 %v18
  %v93 = vunpack.c.l.b16 %v19
  %v94 = vunpack.c.h.b16 %v19
  %v95 = vunpack.c.l.b16 %v20
  %v96 = vunpack.c.l.b16 %v21
  %v97 = vunpack.c.h.b16 %v21
  %v98 = vunpack.c.l.b16 %v22
  %v99 = vunpack.c.l.b16 %v23
  %v100 = vunpack.c.h.b16 %v23
  %v101 = vunpack.c.l.b16 %v24
  %v102 = vunpack.c.l.b16 %v25
  %v103 = vunpack.c.h.b16 %v25
  %v104 = vunpack.c.l.b16 %v26
  %v105 = vunpack.c.l.b16 %v27
  %v106 = vunpack.c.h.b16 %v27
  %v107 = vunpack.c.l.b16 %v28
  %v108 = vunpack.c.l.b16 %v29
  %v109 = vunpack.c.h.b16 %v29
  %v110 = vunpack.c.l.b16 %v30
  %v111 = vpack.c.b16 %v90, %v87
  %v112 = vpack.c.b16 %v91, %v88
  %v113 = vpack.c.b16 %v92, %v89
  %v114 = vpack.c.b16 %v96, %v93
  %v115 = vpack.c.b16 %v97, %v94
  %v116 = vpack.c.b16 %v98, %v95
  %v117 = vpack.c.b16 %v102, %v99
  %v118 = vpack.c.b16 %v103, %v100
  %v119 = vpack.c.b16 %v104, %v101
  %v120 = vpack.c.b16 %v108, %v105
  %v121 = vpack.c.b16 %v109, %v106
  %v122 = vpack.c.b16 %v110, %v107
  %v167 = vunpack.c.l.b16 %v31
  %v168 = vunpack.c.l.b16 %v32
  %v169 = vunpack.c.l.b16 %v33
  %v170 = vunpack.c.l.b16 %v34
  %v171 = vunpack.c.l.b16 %v35
  %v172 = vunpack.c.l.b16 %v36
  %v173 = vunpack.c.l.b16 %v37
  %v174 = vunpack.c.l.b16 %v38
  %v175 = vunpack.c.l.b16 %v39
  %v176 = vunpack.c.l.b16 %v40
  %v177 = vunpack.c.l.b16 %v41
  %v178 = vunpack.c.l.b16 %v42
  %v179 = vunpack.c.l.b16 %v43
  %v180 = vunpack.c.l.b16 %v44
  %v181 = vunpack.c.l.b16 %v45
  %v182 = vunpack.c.l.b16 %v46
  %v183 = vunpack.c.l.b16 %v47
  %v184 = vunpack.c.l.b16 %v48
  %v185 = vunpack.c.l.b16 %v49
  %v186 = vunpack.c.l.b16 %v50
  %v187 = vunpack.c.l.b16 %v51
  %v188 = vunpack.c.l.b16 %v52
  %v189 = vunpack.c.l.b16 %v53
  %v190 = vunpack.c.l.b16 %v54
  %v191 = vunpack.c.l.b16 %v55
  %v192 = vunpack.c.l.b16 %v56
  %v193 = vunpack.c.l.b16 %v57
  %v194 = vunpack.c.l.b16 %v58
  %v195 = vunpack.c.l.b16 %v59
  %v196 = vunpack.c.l.b16 %v60
  %v197 = vunpack.c.l.b16 %v61
  %v198 = vunpack.c.l.b16 %v62
  %v199 = vunpack.c.l.b16 %v63
  %v200 = vunpack.c.l.b16 %v64
  %v201 = vunpack.c.l.b16 %v65
  %v202 = vunpack.c.l.b16 %v66
  %v203 = vpack.c.b16 %v168, %v167
  %v204 = vpack.c.b16 %v170, %v169
  %v205 = vpack.c.b16 %v172, %v171
  %v206 = vpack.c.b16 %v174, %v173
  %v207 = vpack.c.b16 %v176, %v175
  %v208 = vpack.c.b16 %v178, %v177
  %v209 = vpack.c.b16 %v180, %v179
  %v210 = vpack.c.b16 %v182, %v181
  %v211 = vpack.c.b16 %v184, %v183
  %v212 = vpack.c.b16 %v186, %v185
  %v213 = vpack.c.b16 %v188, %v187
  %v214 = vpack.c.b16 %v190, %v189
  %v215 = vpack.c.b16 %v192, %v191
  %v216 = vpack.c.b16 %v194, %v193
  %v217 = vpack.c.b16 %v196, %v195
  %v218 = vpack.c.b16 %v198, %v197
  %v219 = vpack.c.b16 %v200, %v199
  %v220 = vpack.c.b16 %v202, %v201
  %vm239 = vcmask 261120
  %v241 = vsel %vm239, %v113, 0
  %v244 = vsel %vm239, %v116, 0
  %v247 = vsel %vm239, %v119, 0
  %v250 = vsel %vm239, %v122, 0
  %252 = vmatpush.bf16.msra.mxu0 %v210
  %253 = vmatpush.bf16.msra.mxu0 %v209
  %254 = vmatpush.bf16.msra.mxu0 %v208
  %255 = vmatpush.bf16.msra.mxu0 %v207
  %256 = vmatpush.bf16.msra.mxu0 %v206
  %257 = vmatpush.bf16.msra.mxu0 %v205
  %258 = vmatpush.bf16.msra.mxu0 %v204
  %259 = vmatpush.bf16.msra.mxu0 %v203
  %260 = vmatmul.bf16.gmra.mxu0 %v111
  %v261 = vpop.f32.mrf.mxu0
  %v262 = vadd.f32 %v69, %v261
  %v263 = vpop.f32.mrf.mxu0
  %v264 = vadd.f32 %v69, %v263
  %265 = vmatmul.bf16.gmra.mxu0 %v114
  %v266 = vpop.f32.mrf.mxu0
  %v267 = vadd.f32 %v69, %v266
  %v268 = vpop.f32.mrf.mxu0
  %v269 = vadd.f32 %v69, %v268
  %270 = vmatmul.bf16.gmra.mxu0 %v117
  %v271 = vpop.f32.mrf.mxu0
  %v272 = vadd.f32 %v69, %v271
  %v273 = vpop.f32.mrf.mxu0
  %v274 = vadd.f32 %v69, %v273
  %275 = vmatmul.bf16.gmra.mxu0 %v120
  %v276 = vpop.f32.mrf.mxu0
  %v277 = vadd.f32 %v69, %v276
  %v278 = vpop.f32.mrf.mxu0
  %v279 = vadd.f32 %v69, %v278
  %280 = vdwg.mxu0
  %281 = vmatpush.bf16.msra.mxu0 %v218
  %282 = vmatpush.bf16.msra.mxu0 %v217
  %283 = vmatpush.bf16.msra.mxu0 %v216
  %284 = vmatpush.bf16.msra.mxu0 %v215
  %285 = vmatpush.bf16.msra.mxu0 %v214
  %286 = vmatpush.bf16.msra.mxu0 %v213
  %287 = vmatpush.bf16.msra.mxu0 %v212
  %288 = vmatpush.bf16.msra.mxu0 %v211
  %289 = vmatmul.bf16.gmra.mxu0 %v112
  %v290 = vpop.f32.mrf.mxu0
  %v291 = vadd.f32 %v262, %v290
  %v292 = vpop.f32.mrf.mxu0
  %v293 = vadd.f32 %v264, %v292
  %294 = vmatmul.bf16.gmra.mxu0 %v115
  %v295 = vpop.f32.mrf.mxu0
  %v296 = vadd.f32 %v267, %v295
  %v297 = vpop.f32.mrf.mxu0
  %v298 = vadd.f32 %v269, %v297
  %299 = vmatmul.bf16.gmra.mxu0 %v118
  %v300 = vpop.f32.mrf.mxu0
  %v301 = vadd.f32 %v272, %v300
  %v302 = vpop.f32.mrf.mxu0
  %v303 = vadd.f32 %v274, %v302
  %304 = vmatmul.bf16.gmra.mxu0 %v121
  %v305 = vpop.f32.mrf.mxu0
  %v306 = vadd.f32 %v277, %v305
  %v307 = vpop.f32.mrf.mxu0
  %v308 = vadd.f32 %v279, %v307
  %309 = vdwg.mxu0
  %310 = vmatpush.bf16.msra.mxu0 0
  %311 = vmatpush.bf16.msra.mxu0 0
  %312 = vmatpush.bf16.msra.mxu0 0
  %313 = vmatpush.bf16.msra.mxu0 0
  %314 = vmatpush.bf16.msra.mxu0 0
  %315 = vmatpush.bf16.msra.mxu0 0
  %316 = vmatpush.bf16.msra.mxu0 %v220
  %317 = vmatpush.bf16.msra.mxu0 %v219
  %318 = vmatmul.bf16.gmra.mxu0 %v241
  %v319 = vpop.f32.mrf.mxu0
  %v320 = vadd.f32 %v291, %v319
  %v321 = vpop.f32.mrf.mxu0
  %v322 = vadd.f32 %v293, %v321
  %323 = vmatmul.bf16.gmra.mxu0 %v244
  %v324 = vpop.f32.mrf.mxu0
  %v325 = vadd.f32 %v296, %v324
  %v326 = vpop.f32.mrf.mxu0
  %v327 = vadd.f32 %v298, %v326
  %328 = vmatmul.bf16.gmra.mxu0 %v247
  %v329 = vpop.f32.mrf.mxu0
  %v330 = vadd.f32 %v301, %v329
  %v331 = vpop.f32.mrf.mxu0
  %v332 = vadd.f32 %v303, %v331
  %333 = vmatmul.bf16.gmra.mxu0 %v250
  %v334 = vpop.f32.mrf.mxu0
  %v335 = vadd.f32 %v306, %v334
  %v336 = vpop.f32.mrf.mxu0
  %v337 = vadd.f32 %v308, %v336
  %338 = vdwg.mxu0
  %v339 = vmax.f32 %v320, 0.0
  %v340 = vmax.f32 %v322, 0.0
  %v341 = vmax.f32 %v325, 0.0
  %v342 = vmax.f32 %v327, 0.0
  %v343 = vmax.f32 %v330, 0.0
  %v344 = vmax.f32 %v332, 0.0
  %v345 = vmax.f32 %v335, 0.0
  %v346 = vmax.f32 %v337, 0.0
  %v347 = vpack.c.bf16 %v339, %v339
  %v348 = vpack.c.bf16 %v340, %v340
  %v349 = vpack.c.bf16 %v341, %v341
  %v350 = vpack.c.bf16 %v342, %v342
  %v351 = vpack.c.bf16 %v343, %v343
  %v352 = vpack.c.bf16 %v344, %v344
  %v353 = vpack.c.bf16 %v345, %v345
  %v354 = vpack.c.bf16 %v346, %v346
  %vm355 = vcmask 257024
  %356 = vst.msk [vmem:[%s3] sm:$0xf] %vm355, %v347
  %357 = vst.msk [vmem:[%s3 + $0x4] sm:$0xf] %vm355, %v348
  %358 = vst.msk [vmem:[%s3 + $0x8] sm:$0xf] %vm355, %v349
  %359 = vst.msk [vmem:[%s3 + $0xc] sm:$0xf] %vm355, %v350
  %360 = vst.msk [vmem:[%s3 + $0x10] sm:$0xf] %vm355, %v351
  %361 = vst.msk [vmem:[%s3 + $0x14] sm:$0xf] %vm355, %v352
  %362 = vst.msk [vmem:[%s3 + $0x18] sm:$0xf] %vm355, %v353
  %363 = vst.msk [vmem:[%s3 + $0x1c] sm:$0xf] %vm355, %v354
  // Predicated region
  $region14: #{conv_pcida_forward.9} parent=0 // pred_check
    _
  $region15: #{conv_pcida_forward.9} parent=0 // pred_check_branch
    %365 = sbr.rel (0) target = $region17
  $region16: #{conv_pcida_forward.9} parent=0 // pred_region
    _
  $region17: #{conv_pcida_forward.9} parent=0 // pred_fallthru
    _
  // Predicated region
  $region18: #{conv_pcida_forward.9} parent=0 // pred_check
    _
  $region19: #{conv_pcida_forward.9} parent=0 // pred_check_branch
    %367 = sbr.rel (0) target = $region21
  $region20: #{conv_pcida_forward.9} parent=0 // pred_region
    _
  $region21: #{conv_pcida_forward.9} parent=0 // pred_fallthru
    _

// kernel: conv_pcida_forward.11
$region0: #{conv_pcida_forward.11}
  #allocation0 [shape = 'u32[]', space=smem, size = 0x4, offset = 0x4, fixed_abs, tag = 'smem constant byte address 0x4 - core index']
  #allocation1 [shape = 'u32[72,128]{1,0:T(1,128)}', space=vmem, size = 0x9000, scoped, tag = 'internal scratch']
  %s0 = inlined_call_operand.vmem [shape: f32[4,16], index: 0, kind: input, shape index: {}]
  %s1 = inlined_call_operand.vmem [shape: f32[16,32], index: 1, kind: input, shape index: {}]
  %s2 = inlined_call_operand.vmem [shape: f32[1,32], index: 2, kind: input, shape index: {}]
  %s3 = inlined_call_operand.vmem [shape: f32[32,32], index: 3, kind: input, shape index: {}]
  %s4 = inlined_call_operand.vmem [shape: f32[1,32], index: 4, kind: input, shape index: {}]
  %s5 = inlined_call_operand.vmem [shape: f32[32,10], index: 5, kind: input, shape index: {}]
  %s6 = inlined_call_operand.vmem [shape: f32[1,10], index: 6, kind: input, shape index: {}]
  %s7 = inlined_call_operand.vmem [shape: f32[4,10], index: 7, kind: output, shape index: {}]
  %s8 = sld [smem:[#allocation0]]
  $region38: #{conv_pcida_forward.11} parent=0
    _
  %s10 = ssub.s32 1, %s8
  %s11 = scalar_select 0, %s10, %s8
  // Predicated region
  $region2: #{conv_pcida_forward.11} parent=0 // pred_check
    _
  $region3: #{conv_pcida_forward.11} parent=0 // pred_check_branch
    %13 = sbr.rel (0) target = $region5
  $region4: #{conv_pcida_forward.11} parent=0 // pred_region
    _
  $region5: #{conv_pcida_forward.11} parent=0 // pred_fallthru
    _
  // Predicated region
  $region6: #{conv_pcida_forward.11} parent=0 // pred_check
    _
  $region7: #{conv_pcida_forward.11} parent=0 // pred_check_branch
    %15 = sbr.rel (0) target = $region9
  $region8: #{conv_pcida_forward.11} parent=0 // pred_region
    _
  $region9: #{conv_pcida_forward.11} parent=0 // pred_fallthru
    _
  // Predicated region
  $region10: #{conv_pcida_forward.11} parent=0 // pred_check
    _
  $region11: #{conv_pcida_forward.11} parent=0 // pred_check_branch
    %17 = sbr.rel (0) target = $region13
  $region12: #{conv_pcida_forward.11} parent=0 // pred_region
    _
  $region13: #{conv_pcida_forward.11} parent=0 // pred_fallthru
    _
  // Predicated region
  $region14: #{conv_pcida_forward.11} parent=0 // pred_check
    _
  $region15: #{conv_pcida_forward.11} parent=0 // pred_check_branch
    %19 = sbr.rel (0) target = $region17
  $region16: #{conv_pcida_forward.11} parent=0 // pred_region
    _
  $region17: #{conv_pcida_forward.11} parent=0 // pred_fallthru
    _
  // Predicated region
  $region18: #{conv_pcida_forward.11} parent=0 // pred_check
    _
  $region19: #{conv_pcida_forward.11} parent=0 // pred_check_branch
    %21 = sbr.rel (0) target = $region21
  $region20: #{conv_pcida_forward.11} parent=0 // pred_region
    _
  $region21: #{conv_pcida_forward.11} parent=0 // pred_fallthru
    _
  // Predicated region
  $region22: #{conv_pcida_forward.11} parent=0 // pred_check
    _
  $region23: #{conv_pcida_forward.11} parent=0 // pred_check_branch
    %23 = sbr.rel (0) target = $region25
  $region24: #{conv_pcida_forward.11} parent=0 // pred_region
    _
  $region25: #{conv_pcida_forward.11} parent=0 // pred_fallthru
    _
  // Predicated region
  $region26: #{conv_pcida_forward.11} parent=0 // pred_check
    _
  $region27: #{conv_pcida_forward.11} parent=0 // pred_check_branch
    %25 = sbr.rel (0) target = $region29
  $region28: #{conv_pcida_forward.11} parent=0 // pred_region
    _
  $region29: #{conv_pcida_forward.11} parent=0 // pred_fallthru
    _
  %v26 = vld [vmem:[%s0] sm:$0xf]
  %v27 = vld [vmem:[%s1] sm:$0xff]
  %v28 = vld [vmem:[%s1 + $0x8] sm:$0xff]
  %v29 = vld [vmem:[%s2] sm:$0x1]
  %v31 = vperm.slane %v29, 0
  %vm33 = vcmask 130048
  %v35 = vsel %vm33, %v26, 0
  %37 = vmatpush.msra.mxu0 0.0
  %38 = vmatpush.msra.mxu0 0.0
  %39 = vmatpush.msra.mxu0 0.0
  %40 = vmatpush.msra.mxu0 0.0
  %41 = vmatpush.msra.mxu0 0.0
  %42 = vmatpush.msra.mxu0 0.0
  %43 = vmatpush.msra.mxu0 0.0
  %44 = vmatpush.msra.mxu0 0.0
  %45 = vmatpush.msra.mxu0 0.0
  %46 = vmatpush.msra.mxu0 0.0
  %47 = vmatpush.msra.mxu0 0.0
  %48 = vmatpush.msra.mxu0 0.0
  %49 = vmatpush.msra.mxu0 0.0
  %50 = vmatpush.msra.mxu0 0.0
  %51 = vmatpush.msra.mxu0 %v28
  %52 = vmatpush.msra.mxu0 %v27
  %53 = vmatmul.f32.gmra.mxu0 %v35
  %v54 = vpop.f32.mrf.mxu0
  %v55 = vadd.f32 %v31, %v54
  %56 = vdwg.mxu0
  %v57 = vmax.f32 %v55, 0.0
  %v58 = vld [vmem:[%s3] sm:$0xff]
  %v59 = vld [vmem:[%s3 + $0x8] sm:$0xff]
  %v60 = vld [vmem:[%s3 + $0x10] sm:$0xff]
  %v61 = vld [vmem:[%s3 + $0x18] sm:$0xff]
  %v62 = vld [vmem:[%s4] sm:$0x1]
  %v64 = vperm.slane %v62, 0
  %vm66 = vcmask 261120
  %v68 = vsel %vm66, %v57, 0
  %70 = vmatpush.msra.mxu0 0.0
  %71 = vmatpush.msra.mxu0 0.0
  %72 = vmatpush.msra.mxu0 0.0
  %73 = vmatpush.msra.mxu0 0.0
  %74 = vmatpush.msra.mxu0 0.0
  %75 = vmatpush.msra.mxu0 0.0
  %76 = vmatpush.msra.mxu0 0.0
  %77 = vmatpush.msra.mxu0 0.0
  %78 = vmatpush.msra.mxu0 0.0
  %79 = vmatpush.msra.mxu0 0.0
  %80 = vmatpush.msra.mxu0 0.0
  %81 = vmatpush.msra.mxu0 0.0
  %82 = vmatpush.msra.mxu0 %v61
  %83 = vmatpush.msra.mxu0 %v60
  %84 = vmatpush.msra.mxu0 %v59
  %85 = vmatpush.msra.mxu0 %v58
  %86 = vmatmul.f32.gmra.mxu0 %v68
  %v87 = vpop.f32.mrf.mxu0
  %v88 = vadd.f32 %v64, %v87
  %89 = vdwg.mxu0
  %v90 = vmax.f32 %v88, 0.0
  %v91 = vld [vmem:[%s5] sm:$0xff]
  %v92 = vld [vmem:[%s5 + $0x8] sm:$0xff]
  %v93 = vld [vmem:[%s5 + $0x10] sm:$0xff]
  %v94 = vld [vmem:[%s5 + $0x18] sm:$0xff]
  %v95 = vld [vmem:[%s6] sm:$0x1]
  %v97 = vperm.slane %v95, 0
  %v100 = vsel %vm66, %v90, 0
  %102 = vmatpush.msra.mxu0 0.0
  %103 = vmatpush.msra.mxu0 0.0
  %104 = vmatpush.msra.mxu0 0.0
  %105 = vmatpush.msra.mxu0 0.0
  %106 = vmatpush.msra.mxu0 0.0
  %107 = vmatpush.msra.mxu0 0.0
  %108 = vmatpush.msra.mxu0 0.0
  %109 = vmatpush.msra.mxu0 0.0
  %110 = vmatpush.msra.mxu0 0.0
  %111 = vmatpush.msra.mxu0 0.0
  %112 = vmatpush.msra.mxu0 0.0
  %113 = vmatpush.msra.mxu0 0.0
  %114 = vmatpush.msra.mxu0 %v94
  %115 = vmatpush.msra.mxu0 %v93
  %116 = vmatpush.msra.mxu0 %v92
  %117 = vmatpush.msra.mxu0 %v91
  %118 = vmatmul.f32.gmra.mxu0 %v100
  %v119 = vpop.f32.mrf.mxu0
  %v120 = vadd.f32 %v97, %v119
  %121 = vdwg.mxu0
  %vm122 = vcmask 76800
  %v123 = vsel %vm122, %v120, -inf
  %124 = vmax.xlane.f32.xlu0 %v123
  %v125 = vpop.xlane.xlu0 %124
  %v126 = vsub.f32 %v120, %v125
  %v127 = vmul.f32 %v126, 1.442695
  %v128 = vpow.pop %v127
  %v129 = vsel %vm122, %v128, 0.0
  %130 = vadd.xlane.f32.xlu0 %v129
  %v131 = vpop.xlane.xlu0 %130
  %v132 = vlog2.pop %v131
  %v133 = vmul.f32 %v132, 0.6931472
  %v134 = vsub.f32 %v126, %v133
  %135 = vst.msk [vmem:[%s7] sm:$0xf] %vm122, %v134
  // Predicated region
  $region30: #{conv_pcida_forward.11} parent=0 // pred_check
    _
  $region31: #{conv_pcida_forward.11} parent=0 // pred_check_branch
    %137 = sbr.rel (0) target = $region33
  $region32: #{conv_pcida_forward.11} parent=0 // pred_region
    _
  $region33: #{conv_pcida_forward.11} parent=0 // pred_fallthru
    _
  // Predicated region
  $region34: #{conv_pcida_forward.11} parent=0 // pred_check
    _
  $region35: #{conv_pcida_forward.11} parent=0 // pred_check_branch
    %139 = sbr.rel (0) target = $region37
  $region36: #{conv_pcida_forward.11} parent=0 // pred_region
    _
  $region37: #{conv_pcida_forward.11} parent=0 // pred_fallthru
    _

// kernel: conv_pcida_forward.10
$region0: #{conv_pcida_forward.10}
  #allocation0 [shape = 'u32[]', space=smem, size = 0x4, offset = 0x4, fixed_abs, tag = 'smem constant byte address 0x4 - core index']
  #allocation1 [shape = 'u32[72,128]{1,0:T(1,128)}', space=vmem, size = 0x9000, scoped, tag = 'internal scratch']
  %s0 = inlined_call_operand.vmem [shape: bf16[4,512], index: 0, kind: input, shape index: {}]
  %s1 = inlined_call_operand.vmem [shape: bf16[512,16], index: 1, kind: input, shape index: {}]
  %s2 = inlined_call_operand.vmem [shape: f32[1,16], index: 2, kind: input, shape index: {}]
  %s3 = inlined_call_operand.vmem [shape: f32[4,16], index: 3, kind: output, shape index: {}]
  %s4 = sld [smem:[#allocation0]]
  $region22: #{conv_pcida_forward.10} parent=0
    _
  %s6 = ssub.s32 1, %s4
  %s7 = scalar_select 0, %s6, %s4
  // Predicated region
  $region2: #{conv_pcida_forward.10} parent=0 // pred_check
    _
  $region3: #{conv_pcida_forward.10} parent=0 // pred_check_branch
    %9 = sbr.rel (0) target = $region5
  $region4: #{conv_pcida_forward.10} parent=0 // pred_region
    _
  $region5: #{conv_pcida_forward.10} parent=0 // pred_fallthru
    _
  // Predicated region
  $region6: #{conv_pcida_forward.10} parent=0 // pred_check
    _
  $region7: #{conv_pcida_forward.10} parent=0 // pred_check_branch
    %11 = sbr.rel (0) target = $region9
  $region8: #{conv_pcida_forward.10} parent=0 // pred_region
    _
  $region9: #{conv_pcida_forward.10} parent=0 // pred_fallthru
    _
  // Predicated region
  $region10: #{conv_pcida_forward.10} parent=0 // pred_check
    _
  $region11: #{conv_pcida_forward.10} parent=0 // pred_check_branch
    %13 = sbr.rel (0) target = $region13
  $region12: #{conv_pcida_forward.10} parent=0 // pred_region
    _
  $region13: #{conv_pcida_forward.10} parent=0 // pred_fallthru
    _
  %v14 = vld [vmem:[%s0] sm:$0xff]
  %v15 = vld [vmem:[%s1] sm:$0xf]
  %v16 = vld [vmem:[%s1 + $0x4] sm:$0xf]
  %v17 = vld [vmem:[%s1 + $0x8] sm:$0xf]
  %v18 = vld [vmem:[%s1 + $0xc] sm:$0xf]
  %v19 = vld [vmem:[%s1 + $0x10] sm:$0xf]
  %v20 = vld [vmem:[%s1 + $0x14] sm:$0xf]
  %v21 = vld [vmem:[%s1 + $0x18] sm:$0xf]
  %v22 = vld [vmem:[%s1 + $0x1c] sm:$0xf]
  %v23 = vld [vmem:[%s1 + $0x20] sm:$0xf]
  %v24 = vld [vmem:[%s1 + $0x24] sm:$0xf]
  %v25 = vld [vmem:[%s1 + $0x28] sm:$0xf]
  %v26 = vld [vmem:[%s1 + $0x2c] sm:$0xf]
  %v27 = vld [vmem:[%s1 + $0x30] sm:$0xf]
  %v28 = vld [vmem:[%s1 + $0x34] sm:$0xf]
  %v29 = vld [vmem:[%s1 + $0x38] sm:$0xf]
  %v30 = vld [vmem:[%s1 + $0x3c] sm:$0xf]
  %v31 = vld [vmem:[%s1 + $0x40] sm:$0xf]
  %v32 = vld [vmem:[%s1 + $0x44] sm:$0xf]
  %v33 = vld [vmem:[%s1 + $0x48] sm:$0xf]
  %v34 = vld [vmem:[%s1 + $0x4c] sm:$0xf]
  %v35 = vld [vmem:[%s1 + $0x50] sm:$0xf]
  %v36 = vld [vmem:[%s1 + $0x54] sm:$0xf]
  %v37 = vld [vmem:[%s1 + $0x58] sm:$0xf]
  %v38 = vld [vmem:[%s1 + $0x5c] sm:$0xf]
  %v39 = vld [vmem:[%s1 + $0x60] sm:$0xf]
  %v40 = vld [vmem:[%s1 + $0x64] sm:$0xf]
  %v41 = vld [vmem:[%s1 + $0x68] sm:$0xf]
  %v42 = vld [vmem:[%s1 + $0x6c] sm:$0xf]
  %v43 = vld [vmem:[%s1 + $0x70] sm:$0xf]
  %v44 = vld [vmem:[%s1 + $0x74] sm:$0xf]
  %v45 = vld [vmem:[%s1 + $0x78] sm:$0xf]
  %v46 = vld [vmem:[%s1 + $0x7c] sm:$0xf]
  %v47 = vld [vmem:[%s1 + $0x80] sm:$0xf]
  %v48 = vld [vmem:[%s1 + $0x84] sm:$0xf]
  %v49 = vld [vmem:[%s1 + $0x88] sm:$0xf]
  %v50 = vld [vmem:[%s1 + $0x8c] sm:$0xf]
  %v51 = vld [vmem:[%s1 + $0x90] sm:$0xf]
  %v52 = vld [vmem:[%s1 + $0x94] sm:$0xf]
  %v53 = vld [vmem:[%s1 + $0x98] sm:$0xf]
  %v54 = vld [vmem:[%s1 + $0x9c] sm:$0xf]
  %v55 = vld [vmem:[%s1 + $0xa0] sm:$0xf]
  %v56 = vld [vmem:[%s1 + $0xa4] sm:$0xf]
  %v57 = vld [vmem:[%s1 + $0xa8] sm:$0xf]
  %v58 = vld [vmem:[%s1 + $0xac] sm:$0xf]
  %v59 = vld [vmem:[%s1 + $0xb0] sm:$0xf]
  %v60 = vld [vmem:[%s1 + $0xb4] sm:$0xf]
  %v61 = vld [vmem:[%s1 + $0xb8] sm:$0xf]
  %v62 = vld [vmem:[%s1 + $0xbc] sm:$0xf]
  %v63 = vld [vmem:[%s1 + $0xc0] sm:$0xf]
  %v64 = vld [vmem:[%s1 + $0xc4] sm:$0xf]
  %v65 = vld [vmem:[%s1 + $0xc8] sm:$0xf]
  %v66 = vld [vmem:[%s1 + $0xcc] sm:$0xf]
  %v67 = vld [vmem:[%s1 + $0xd0] sm:$0xf]
  %v68 = vld [vmem:[%s1 + $0xd4] sm:$0xf]
  %v69 = vld [vmem:[%s1 + $0xd8] sm:$0xf]
  %v70 = vld [vmem:[%s1 + $0xdc] sm:$0xf]
  %v71 = vld [vmem:[%s1 + $0xe0] sm:$0xf]
  %v72 = vld [vmem:[%s1 + $0xe4] sm:$0xf]
  %v73 = vld [vmem:[%s1 + $0xe8] sm:$0xf]
  %v74 = vld [vmem:[%s1 + $0xec] sm:$0xf]
  %v75 = vld [vmem:[%s1 + $0xf0] sm:$0xf]
  %v76 = vld [vmem:[%s1 + $0xf4] sm:$0xf]
  %v77 = vld [vmem:[%s1 + $0xf8] sm:$0xf]
  %v78 = vld [vmem:[%s1 + $0xfc] sm:$0xf]
  %v79 = vld [vmem:[%s2] sm:$0x1]
  %v81 = vperm.slane %v79, 0
  %84 = vst [vmem:[#allocation1] ss:$4 sm:$0xff] %v14
  %v85 = vld.sshfl [vmem:[#allocation1] sm:$0xff pattern:$0x73625140]
  %v86 = vld.sshfl [vmem:[#allocation1 + $0x8] sm:$0xff pattern:$0x73625140]
  %v87 = vld.sshfl [vmem:[#allocation1 + $0x10] sm:$0xff pattern:$0x73625140]
  %v88 = vld.sshfl [vmem:[#allocation1 + $0x18] sm:$0xff pattern:$0x73625140]
  %v157 = vunpack.c.l.b16 %v15
  %v158 = vunpack.c.l.b16 %v16
  %v159 = vunpack.c.l.b16 %v17
  %v160 = vunpack.c.l.b16 %v18
  %v161 = vunpack.c.l.b16 %v19
  %v162 = vunpack.c.l.b16 %v20
  %v163 = vunpack.c.l.b16 %v21
  %v164 = vunpack.c.l.b16 %v22
  %v165 = vunpack.c.l.b16 %v23
  %v166 = vunpack.c.l.b16 %v24
  %v167 = vunpack.c.l.b16 %v25
  %v168 = vunpack.c.l.b16 %v26
  %v169 = vunpack.c.l.b16 %v27
  %v170 = vunpack.c.l.b16 %v28
  %v171 = vunpack.c.l.b16 %v29
  %v172 = vunpack.c.l.b16 %v30
  %v173 = vunpack.c.l.b16 %v31
  %v174 = vunpack.c.l.b16 %v32
  %v175 = vunpack.c.l.b16 %v33
  %v176 = vunpack.c.l.b16 %v34
  %v177 = vunpack.c.l.b16 %v35
  %v178 = vunpack.c.l.b16 %v36
  %v179 = vunpack.c.l.b16 %v37
  %v180 = vunpack.c.l.b16 %v38
  %v181 = vunpack.c.l.b16 %v39
  %v182 = vunpack.c.l.b16 %v40
  %v183 = vunpack.c.l.b16 %v41
  %v184 = vunpack.c.l.b16 %v42
  %v185 = vunpack.c.l.b16 %v43
  %v186 = vunpack.c.l.b16 %v44
  %v187 = vunpack.c.l.b16 %v45
  %v188 = vunpack.c.l.b16 %v46
  %v189 = vunpack.c.l.b16 %v47
  %v190 = vunpack.c.l.b16 %v48
  %v191 = vunpack.c.l.b16 %v49
  %v192 = vunpack.c.l.b16 %v50
  %v193 = vunpack.c.l.b16 %v51
  %v194 = vunpack.c.l.b16 %v52
  %v195 = vunpack.c.l.b16 %v53
  %v196 = vunpack.c.l.b16 %v54
  %v197 = vunpack.c.l.b16 %v55
  %v198 = vunpack.c.l.b16 %v56
  %v199 = vunpack.c.l.b16 %v57
  %v200 = vunpack.c.l.b16 %v58
  %v201 = vunpack.c.l.b16 %v59
  %v202 = vunpack.c.l.b16 %v60
  %v203 = vunpack.c.l.b16 %v61
  %v204 = vunpack.c.l.b16 %v62
  %v205 = vunpack.c.l.b16 %v63
  %v206 = vunpack.c.l.b16 %v64
  %v207 = vunpack.c.l.b16 %v65
  %v208 = vunpack.c.l.b16 %v66
  %v209 = vunpack.c.l.b16 %v67
  %v210 = vunpack.c.l.b16 %v68
  %v211 = vunpack.c.l.b16 %v69
  %v212 = vunpack.c.l.b16 %v70
  %v213 = vunpack.c.l.b16 %v71
  %v214 = vunpack.c.l.b16 %v72
  %v215 = vunpack.c.l.b16 %v73
  %v216 = vunpack.c.l.b16 %v74
  %v217 = vunpack.c.l.b16 %v75
  %v218 = vunpack.c.l.b16 %v76
  %v219 = vunpack.c.l.b16 %v77
  %v220 = vunpack.c.l.b16 %v78
  %v221 = vpack.c.b16 %v158, %v157
  %v222 = vpack.c.b16 %v160, %v159
  %v223 = vpack.c.b16 %v162, %v161
  %v224 = vpack.c.b16 %v164, %v163
  %v225 = vpack.c.b16 %v166, %v165
  %v226 = vpack.c.b16 %v168, %v167
  %v227 = vpack.c.b16 %v170, %v169
  %v228 = vpack.c.b16 %v172, %v171
  %v229 = vpack.c.b16 %v174, %v173
  %v230 = vpack.c.b16 %v176, %v175
  %v231 = vpack.c.b16 %v178, %v177
  %v232 = vpack.c.b16 %v180, %v179
  %v233 = vpack.c.b16 %v182, %v181
  %v234 = vpack.c.b16 %v184, %v183
  %v235 = vpack.c.b16 %v186, %v185
  %v236 = vpack.c.b16 %v188, %v187
  %v237 = vpack.c.b16 %v190, %v189
  %v238 = vpack.c.b16 %v192, %v191
  %v239 = vpack.c.b16 %v194, %v193
  %v240 = vpack.c.b16 %v196, %v195
  %v241 = vpack.c.b16 %v198, %v197
  %v242 = vpack.c.b16 %v200, %v199
  %v243 = vpack.c.b16 %v202, %v201
  %v244 = vpack.c.b16 %v204, %v203
  %v245 = vpack.c.b16 %v206, %v205
  %v246 = vpack.c.b16 %v208, %v207
  %v247 = vpack.c.b16 %v210, %v209
  %v248 = vpack.c.b16 %v212, %v211
  %v249 = vpack.c.b16 %v214, %v213
  %v250 = vpack.c.b16 %v216, %v215
  %v251 = vpack.c.b16 %v218, %v217
  %v252 = vpack.c.b16 %v220, %v219
  %285 = vmatpush.bf16.msra.mxu0 %v228
  %286 = vmatpush.bf16.msra.mxu0 %v227
  %287 = vmatpush.bf16.msra.mxu0 %v226
  %288 = vmatpush.bf16.msra.mxu0 %v225
  %289 = vmatpush.bf16.msra.mxu0 %v224
  %290 = vmatpush.bf16.msra.mxu0 %v223
  %291 = vmatpush.bf16.msra.mxu0 %v222
  %292 = vmatpush.bf16.msra.mxu0 %v221
  %293 = vmatmul.bf16.gmra.mxu0 %v85
  %v294 = vpop.f32.mrf.mxu0
  %v295 = vadd.f32 %v81, %v294
  %v296 = vpop.f32.mrf.mxu0
  %297 = vdwg.mxu0
  %298 = vmatpush.bf16.msra.mxu0 %v236
  %299 = vmatpush.bf16.msra.mxu0 %v235
  %300 = vmatpush.bf16.msra.mxu0 %v234
  %301 = vmatpush.bf16.msra.mxu0 %v233
  %302 = vmatpush.bf16.msra.mxu0 %v232
  %303 = vmatpush.bf16.msra.mxu0 %v231
  %304 = vmatpush.bf16.msra.mxu0 %v230
  %305 = vmatpush.bf16.msra.mxu0 %v229
  %306 = vmatmul.bf16.gmra.mxu0 %v86
  %v307 = vpop.f32.mrf.mxu0
  %v308 = vadd.f32 %v295, %v307
  %v309 = vpop.f32.mrf.mxu0
  %310 = vdwg.mxu0
  %311 = vmatpush.bf16.msra.mxu0 %v244
  %312 = vmatpush.bf16.msra.mxu0 %v243
  %313 = vmatpush.bf16.msra.mxu0 %v242
  %314 = vmatpush.bf16.msra.mxu0 %v241
  %315 = vmatpush.bf16.msra.mxu0 %v240
  %316 = vmatpush.bf16.msra.mxu0 %v239
  %317 = vmatpush.bf16.msra.mxu0 %v238
  %318 = vmatpush.bf16.msra.mxu0 %v237
  %319 = vmatmul.bf16.gmra.mxu0 %v87
  %v320 = vpop.f32.mrf.mxu0
  %v321 = vadd.f32 %v308, %v320
  %v322 = vpop.f32.mrf.mxu0
  %323 = vdwg.mxu0
  %324 = vmatpush.bf16.msra.mxu0 %v252
  %325 = vmatpush.bf16.msra.mxu0 %v251
  %326 = vmatpush.bf16.msra.mxu0 %v250
  %327 = vmatpush.bf16.msra.mxu0 %v249
  %328 = vmatpush.bf16.msra.mxu0 %v248
  %329 = vmatpush.bf16.msra.mxu0 %v247
  %330 = vmatpush.bf16.msra.mxu0 %v246
  %331 = vmatpush.bf16.msra.mxu0 %v245
  %332 = vmatmul.bf16.gmra.mxu0 %v88
  %v333 = vpop.f32.mrf.mxu0
  %v334 = vadd.f32 %v321, %v333
  %v335 = vpop.f32.mrf.mxu0
  %336 = vdwg.mxu0
  %v337 = vmax.f32 %v334, 0.0
  %vm338 = vcmask 125952
  %339 = vst.msk [vmem:[%s3] sm:$0xf] %vm338, %v337
  // Predicated region
  $region14: #{conv_pcida_forward.10} parent=0 // pred_check
    _
  $region15: #{conv_pcida_forward.10} parent=0 // pred_check_branch
    %341 = sbr.rel (0) target = $region17
  $region16: #{conv_pcida_forward.10} parent=0 // pred_region
    _
  $region17: #{conv_pcida_forward.10} parent=0 // pred_fallthru
    _
  // Predicated region
  $region18: #{conv_pcida_forward.10} parent=0 // pred_check
    _
  $region19: #{conv_pcida_forward.10} parent=0 // pred_check_branch
    %343 = sbr.rel (0) target = $region21
  $region20: #{conv_pcida_forward.10} parent=0 // pred_region
    _
  $region21: #{conv_pcida_forward.10} parent=0 // pred_fallthru
    _

</llo_original>
